<compile_context>
chip_gen: v7x
topology: tpu7x:2x2x1
jax: 0.10.0
libtpu: 0.0.40
codegen_flags: <defaults>
</compile_context>

<pallas_src>
import jax
import jax.numpy as jnp
from jax.experimental import pallas as pl
from jax.experimental.pallas import tpu as pltpu

NEG_SLOPE = 0.01    # nn.LeakyReLU default negative_slope
LANE = 128          # TPU lane width
TB_MAX = 1024       # batch tile for bulk sampling (weights stay VMEM-resident)


def _leaky_relu(x):
    # max(x, a*x) == LeakyReLU for 0 < a < 1; lowers to vmul+vmax (2 VPU ops)
    # instead of vcmp+vsel+vmul (3) from jnp.where.
    return jnp.maximum(x, NEG_SLOPE * x)


def _layer1_dtype():
    """bf16 layer 1 on chips with a bf16-native VPU (v6e/v7x); f32 otherwise."""
    try:
        kind = jax.devices()[0].device_kind.lower()
    except Exception:
        return jnp.float32
    if any(t in kind for t in ("v2", "v3", "v4", "v5")):
        return jnp.float32
    return jnp.bfloat16


def generator_kernel(x_ref, w1_ref, b1_ref, w2_ref, b2_ref, w3_ref, b3_ref, o_ref):
    # Layer 1 (K=2): VPU broadcast-MAC (keeps the MXU free for the big matmul).
    # Compute dtype follows w1: bf16 on v6e/v7x, f32 on v5e and older.
    x = x_ref[...].astype(w1_ref.dtype)          # (TB, 2)
    w1 = w1_ref[...]                              # (2, Hp)
    h1 = x[:, 0:1] * w1[0:1, :] + x[:, 1:2] * w1[1:2, :] + b1_ref[...]
    h1 = _leaky_relu(h1)

    # Layer 2 (Hp x Hp): the only large matmul. bf16 operands, f32 MXU accumulation.
    h2 = jnp.dot(h1.astype(jnp.bfloat16), w2_ref[...],
                 preferred_element_type=jnp.float32) + b2_ref[...]
    h2 = _leaky_relu(h2)

    # Layer 3 (Hp x 2): tiny; explicit bf16 operands force a single MXU pass.
    out = jnp.dot(h2.astype(jnp.bfloat16), w3_ref[...],
                  preferred_element_type=jnp.float32) + b3_ref[...]
    o_ref[...] = out.astype(o_ref.dtype)


def prepare_params(params, layer1_dtype=None):
    """One-time prep: pad hidden 1000 -> 1024, cast w2/w3 to bf16, and pick the
    layer-1 compute dtype per TPU generation. Padding is exact for the forward
    pass (zeros propagate to zeros through LeakyReLU; zero weight rows/cols
    contribute nothing)."""
    if layer1_dtype is None:
        layer1_dtype = _layer1_dtype()
    w1, b1 = params["w1"], params["b1"]
    w2, b2 = params["w2"], params["b2"]
    w3, b3 = params["w3"], params["b3"]
    H = w1.shape[1]
    Hp = pl.cdiv(H, LANE) * LANE
    p = Hp - H
    return {
        "w1": jnp.pad(w1, ((0, 0), (0, p))).astype(layer1_dtype),
        "b1": jnp.pad(b1, ((0, 0), (0, p))).astype(layer1_dtype),
        "w2": jnp.pad(w2, ((0, p), (0, p))).astype(jnp.bfloat16),   # 4 MB -> 2 MB
        "b2": jnp.pad(b2, ((0, 0), (0, p))).astype(jnp.float32),
        "w3": jnp.pad(w3, ((0, p), (0, 0))).astype(jnp.bfloat16),
        "b3": b3.astype(jnp.float32),
    }


def _choose_batch_tiling(B, tb_max):
    """Pick (tile, padded_B). For bulk batches, keep the grid length even so the
    'parallel' batch axis can actually be split across v7x's two TensorCores."""
    if B <= tb_max:
        return B, B
    steps = pl.cdiv(B, tb_max)
    if steps % 2:
        steps += 1
    tb = pl.cdiv(pl.cdiv(B, steps), 8) * 8        # sublane-aligned batch tile
    return tb, steps * tb


def generator_forward(x, prepped, tb_max=TB_MAX):
    """x: (B, 2) float32. prepped: output of prepare_params."""
    w1, b1 = prepped["w1"], prepped["b1"]
    w2, b2 = prepped["w2"], prepped["b2"]
    w3, b3 = prepped["w3"], prepped["b3"]
    B, in_dim = x.shape
    out_dim = w3.shape[1]

    tb, bp = _choose_batch_tiling(B, tb_max)
    x_in = x if bp == B else jnp.pad(x, ((0, bp - B), (0, 0)))
    grid = (bp // tb,)

    const2 = lambda i: (0, 0)   # weights/biases: constant block -> fetched once

    out = pl.pallas_call(
        generator_kernel,
        out_shape=jax.ShapeDtypeStruct((bp, out_dim), jnp.float32),
        grid=grid,
        in_specs=[
            pl.BlockSpec((tb, in_dim), lambda i: (i, 0)),
            pl.BlockSpec(w1.shape, const2),
            pl.BlockSpec(b1.shape, const2),
            pl.BlockSpec(w2.shape, const2),
            pl.BlockSpec(b2.shape, const2),
            pl.BlockSpec(w3.shape, const2),
            pl.BlockSpec(b3.shape, const2),
        ],
        out_specs=pl.BlockSpec((tb, out_dim), lambda i: (i, 0)),
        compiler_params=pltpu.CompilerParams(
            dimension_semantics=("parallel",),   # shard batch steps over v7x's 2 TCs
            vmem_limit_bytes=32 << 20,           # ~20 MiB peak at tb=1024
        ),
    )(x_in, w1, b1, w2, b2, w3, b3)

    return out[:B] if bp != B else out


def init_params(key, hidden=1000, in_dim=2, out_dim=2):
    """Deterministic init mimicking PyTorch's default (Kaiming-uniform-ish) bounds."""
    ks = jax.random.split(key, 6)

    def linear(kw, kb, fan_in, fan_out):
        bound = 1.0 / jnp.sqrt(fan_in)
        w = jax.random.uniform(kw, (fan_in, fan_out), jnp.float32, -bound, bound)
        b = jax.random.uniform(kb, (1, fan_out), jnp.float32, -bound, bound)
        return w, b

    w1, b1 = linear(ks[0], ks[1], in_dim, hidden)
    w2, b2 = linear(ks[2], ks[3], hidden, hidden)
    w3, b3 = linear(ks[4], ks[5], hidden, out_dim)
    return {"w1": w1, "b1": b1, "w2": w2, "b2": b2, "w3": w3, "b3": b3}


def reference_forward_f32(x, p):
    """Pure f32 reference of the original module."""
    h1 = _leaky_relu(x @ p["w1"] + p["b1"])
    h2 = _leaky_relu(h1 @ p["w2"] + p["b2"])
    return h2 @ p["w3"] + p["b3"]


def reference_forward_quant(x, p, layer1_dtype=None):
    """Reference mirroring the kernel's per-layer dtypes and op structure."""
    if layer1_dtype is None:
        layer1_dtype = _layer1_dtype()
    xd = x.astype(layer1_dtype)
    w1 = p["w1"].astype(layer1_dtype)
    b1 = p["b1"].astype(layer1_dtype)
    h1 = _leaky_relu(xd[:, 0:1] * w1[0:1, :] + xd[:, 1:2] * w1[1:2, :] + b1)
    h2 = jnp.dot(h1.astype(jnp.bfloat16), p["w2"].astype(jnp.bfloat16),
                 preferred_element_type=jnp.float32) + p["b2"]
    h2 = _leaky_relu(h2)
    return jnp.dot(h2.astype(jnp.bfloat16), p["w3"].astype(jnp.bfloat16),
                   preferred_element_type=jnp.float32) + p["b3"]


if __name__ == "__main__":
    key = jax.random.PRNGKey(0)
    k_param, k_x = jax.random.split(key)

    params = init_params(k_param)
    prepped = prepare_params(params)

    # Small demo batch (matches the module: 2 input features, 2 outputs).
    x = jax.random.normal(k_x, (8, 2), jnp.float32)
    out = jax.block_until_ready(generator_forward(x, prepped))
    assert out.shape == (8, 2), out.shape

    # Tight check against a reference using the kernel's exact quantization.
    ref_q = reference_forward_quant(x, params)
    assert jnp.allclose(out, ref_q, atol=5e-3, rtol=5e-3), \
        float(jnp.max(jnp.abs(out - ref_q)))

    # Looser check against the full-f32 module semantics.
    ref_f32 = reference_forward_f32(x, params)
    assert jnp.allclose(out, ref_f32, atol=3e-2, rtol=3e-2), \
        float(jnp.max(jnp.abs(out - ref_f32)))

    # Exercise the multi-step (padded batch, even grid length) path with a tiny tile.
    x2 = jax.random.normal(jax.random.PRNGKey(1), (24, 2), jnp.float32)
    out2 = jax.block_until_ready(generator_forward(x2, prepped, tb_max=8))
    assert out2.shape == (24, 2), out2.shape
    ref2 = reference_forward_quant(x2, params)
    assert jnp.allclose(out2, ref2, atol=5e-3, rtol=5e-3), \
        float(jnp.max(jnp.abs(out2 - ref2)))

    print("KERNEL_OK")
</pallas_src>

<mosaic_0001>
module attributes {stable_mosaic.version = 11 : i64} {
  func.func @generator_kernel(%arg0: i32, %arg1: memref<8x2xf32, #tpu.memory_space<vmem>>, %arg2: memref<2x1024xbf16, #tpu.memory_space<vmem>>, %arg3: memref<1x1024xbf16, #tpu.memory_space<vmem>>, %arg4: memref<1024x1024xbf16, #tpu.memory_space<vmem>>, %arg5: memref<1x1024xf32, #tpu.memory_space<vmem>>, %arg6: memref<1024x2xbf16, #tpu.memory_space<vmem>>, %arg7: memref<1x2xf32, #tpu.memory_space<vmem>>, %arg8: memref<8x2xf32, #tpu.memory_space<vmem>>) attributes {dimension_semantics = [#tpu.dimension_semantics<parallel>], iteration_bounds = array<i64: 1>, scalar_prefetch = 0 : i64, scratch_operands = 0 : i64, tpu.core_type = #tpu.core_type<tc>, window_params = [{transform_indices = @transform_0, window_bounds = array<i64: 8, 2>}, {pipeline_mode = #tpu.pipeline_mode<synchronous>, transform_indices = @transform_1, window_bounds = array<i64: 2, 1024>}, {pipeline_mode = #tpu.pipeline_mode<synchronous>, transform_indices = @transform_2, window_bounds = array<i64: 1, 1024>}, {pipeline_mode = #tpu.pipeline_mode<synchronous>, transform_indices = @transform_3, window_bounds = array<i64: 1024, 1024>}, {pipeline_mode = #tpu.pipeline_mode<synchronous>, transform_indices = @transform_4, window_bounds = array<i64: 1, 1024>}, {pipeline_mode = #tpu.pipeline_mode<synchronous>, transform_indices = @transform_5, window_bounds = array<i64: 1024, 2>}, {pipeline_mode = #tpu.pipeline_mode<synchronous>, transform_indices = @transform_6, window_bounds = array<i64: 1, 2>}, {transform_indices = @transform_7, window_bounds = array<i64: 8, 2>}]} {
    %c0 = arith.constant 0 : index
    %c0_0 = arith.constant 0 : index
    %0 = vector.load %arg1[%c0, %c0_0] : memref<8x2xf32, #tpu.memory_space<vmem>>, vector<8x2xf32>
    %1 = arith.truncf %0 : vector<8x2xf32> to vector<8x2xbf16>
    %c0_1 = arith.constant 0 : index
    %c0_2 = arith.constant 0 : index
    %2 = vector.load %arg2[%c0_1, %c0_2] : memref<2x1024xbf16, #tpu.memory_space<vmem>>, vector<2x1024xbf16>
    %3 = vector.extract_strided_slice %1 {offsets = [0, 0], sizes = [8, 1], strides = [1, 1]} : vector<8x2xbf16> to vector<8x1xbf16>
    %4 = vector.extract_strided_slice %2 {offsets = [0, 0], sizes = [1, 1024], strides = [1, 1]} : vector<2x1024xbf16> to vector<1x1024xbf16>
    %5 = vector.broadcast %3 : vector<8x1xbf16> to vector<8x1024xbf16>
    %6 = vector.broadcast %4 : vector<1x1024xbf16> to vector<8x1024xbf16>
    %7 = arith.mulf %5, %6 : vector<8x1024xbf16>
    %8 = vector.extract_strided_slice %1 {offsets = [0, 1], sizes = [8, 1], strides = [1, 1]} : vector<8x2xbf16> to vector<8x1xbf16>
    %9 = vector.extract_strided_slice %2 {offsets = [1, 0], sizes = [1, 1024], strides = [1, 1]} : vector<2x1024xbf16> to vector<1x1024xbf16>
    %10 = vector.broadcast %8 : vector<8x1xbf16> to vector<8x1024xbf16>
    %11 = vector.broadcast %9 : vector<1x1024xbf16> to vector<8x1024xbf16>
    %12 = arith.mulf %10, %11 : vector<8x1024xbf16>
    %13 = arith.addf %7, %12 : vector<8x1024xbf16>
    %c0_3 = arith.constant 0 : index
    %c0_4 = arith.constant 0 : index
    %14 = vector.load %arg3[%c0_3, %c0_4] : memref<1x1024xbf16, #tpu.memory_space<vmem>>, vector<1x1024xbf16>
    %15 = vector.broadcast %14 : vector<1x1024xbf16> to vector<8x1024xbf16>
    %16 = arith.addf %13, %15 : vector<8x1024xbf16>
    %cst = arith.constant 1.000980e-02 : bf16
    %17 = vector.broadcast %cst : bf16 to vector<8x1024xbf16>
    %18 = arith.mulf %17, %16 : vector<8x1024xbf16>
    %19 = arith.maximumf %16, %18 : vector<8x1024xbf16>
    %c0_5 = arith.constant 0 : index
    %c0_6 = arith.constant 0 : index
    %20 = vector.load %arg4[%c0_5, %c0_6] : memref<1024x1024xbf16, #tpu.memory_space<vmem>>, vector<1024x1024xbf16>
    %cst_7 = arith.constant dense<0.000000e+00> : vector<8x1024xf32>
    %21 = tpu.matmul %19, %20, %cst_7 {dimension_numbers = #tpu.dot_dimension_numbers<[1], [0], [0], [1], [0, 0, 1, 1], [], []>} : vector<8x1024xbf16>, vector<1024x1024xbf16>, vector<8x1024xf32> -> vector<8x1024xf32>
    %c0_8 = arith.constant 0 : index
    %c0_9 = arith.constant 0 : index
    %22 = vector.load %arg5[%c0_8, %c0_9] : memref<1x1024xf32, #tpu.memory_space<vmem>>, vector<1x1024xf32>
    %23 = vector.broadcast %22 : vector<1x1024xf32> to vector<8x1024xf32>
    %24 = arith.addf %21, %23 : vector<8x1024xf32>
    %cst_10 = arith.constant 0.00999999977 : f32
    %25 = vector.broadcast %cst_10 : f32 to vector<8x1024xf32>
    %26 = arith.mulf %25, %24 : vector<8x1024xf32>
    %27 = arith.maximumf %24, %26 : vector<8x1024xf32>
    %28 = arith.truncf %27 : vector<8x1024xf32> to vector<8x1024xbf16>
    %c0_11 = arith.constant 0 : index
    %c0_12 = arith.constant 0 : index
    %29 = vector.load %arg6[%c0_11, %c0_12] : memref<1024x2xbf16, #tpu.memory_space<vmem>>, vector<1024x2xbf16>
    %cst_13 = arith.constant dense<0.000000e+00> : vector<8x2xf32>
    %30 = tpu.matmul %28, %29, %cst_13 {dimension_numbers = #tpu.dot_dimension_numbers<[1], [0], [0], [1], [0, 0, 1, 1], [], []>} : vector<8x1024xbf16>, vector<1024x2xbf16>, vector<8x2xf32> -> vector<8x2xf32>
    %c0_14 = arith.constant 0 : index
    %c0_15 = arith.constant 0 : index
    %31 = vector.load %arg7[%c0_14, %c0_15] : memref<1x2xf32, #tpu.memory_space<vmem>>, vector<1x2xf32>
    %32 = vector.broadcast %31 : vector<1x2xf32> to vector<8x2xf32>
    %33 = arith.addf %30, %32 : vector<8x2xf32>
    %c0_16 = arith.constant 0 : index
    %c0_17 = arith.constant 0 : index
    %34 = vector.load %arg8[%c0_16, %c0_17] : memref<8x2xf32, #tpu.memory_space<vmem>>, vector<8x2xf32>
    tpu.vector_store %arg8[%c0_16, %c0_17], %33 {strides = array<i32>} : memref<8x2xf32, #tpu.memory_space<vmem>>, vector<8x2xf32>,
    return
  }
  func.func @transform_0(%arg0: i32) -> (i32, i32) {
    %c0_i32 = arith.constant 0 : i32
    %c0_i32_0 = arith.constant 0 : i32
    return %arg0, %c0_i32 : i32, i32
  }
  func.func @transform_1(%arg0: i32) -> (i32, i32) {
    %c0_i32 = arith.constant 0 : i32
    %c0_i32_0 = arith.constant 0 : i32
    %c0_i32_1 = arith.constant 0 : i32
    return %c0_i32, %c0_i32_0 : i32, i32
  }
  func.func @transform_2(%arg0: i32) -> (i32, i32) {
    %c0_i32 = arith.constant 0 : i32
    %c0_i32_0 = arith.constant 0 : i32
    %c0_i32_1 = arith.constant 0 : i32
    return %c0_i32, %c0_i32_0 : i32, i32
  }
  func.func @transform_3(%arg0: i32) -> (i32, i32) {
    %c0_i32 = arith.constant 0 : i32
    %c0_i32_0 = arith.constant 0 : i32
    %c0_i32_1 = arith.constant 0 : i32
    return %c0_i32, %c0_i32_0 : i32, i32
  }
  func.func @transform_4(%arg0: i32) -> (i32, i32) {
    %c0_i32 = arith.constant 0 : i32
    %c0_i32_0 = arith.constant 0 : i32
    %c0_i32_1 = arith.constant 0 : i32
    return %c0_i32, %c0_i32_0 : i32, i32
  }
  func.func @transform_5(%arg0: i32) -> (i32, i32) {
    %c0_i32 = arith.constant 0 : i32
    %c0_i32_0 = arith.constant 0 : i32
    %c0_i32_1 = arith.constant 0 : i32
    return %c0_i32, %c0_i32_0 : i32, i32
  }
  func.func @transform_6(%arg0: i32) -> (i32, i32) {
    %c0_i32 = arith.constant 0 : i32
    %c0_i32_0 = arith.constant 0 : i32
    %c0_i32_1 = arith.constant 0 : i32
    return %c0_i32, %c0_i32_0 : i32, i32
  }
  func.func @transform_7(%arg0: i32) -> (i32, i32) {
    %c0_i32 = arith.constant 0 : i32
    %c0_i32_0 = arith.constant 0 : i32
    return %arg0, %c0_i32 : i32, i32
  }
}

</mosaic_0001>

<llo_original>
// kernel: tpu_custom_call.1
$region0: #{tpu_custom_call.1}
  #allocation0 [shape = 'u32[]', space=smem, size = 0x4, offset = 0x4, fixed_abs, tag = 'smem constant byte address 0x4 - core index']
  #allocation1 [shape = 'u32[144,128]{1,0:T(1,128)}', space=vmem, size = 0x12000, scoped, tag = 'internal scratch']
  %s0 = inlined_call_operand.vmem [shape: f32[8,2], index: 0, kind: input, shape index: {}]
  %s1 = inlined_call_operand.hbm [shape: bf16[2,1024], index: 1, kind: input, shape index: {}]
  %s2 = inlined_call_operand.hbm [shape: bf16[1,1024], index: 2, kind: input, shape index: {}]
  %s3 = inlined_call_operand.hbm [shape: bf16[1024,1024], index: 3, kind: input, shape index: {}]
  %s4 = inlined_call_operand.hbm [shape: f32[1,1024], index: 4, kind: input, shape index: {}]
  %s5 = inlined_call_operand.vmem [shape: bf16[1024,2], index: 5, kind: input, shape index: {}]
  %s6 = inlined_call_operand.hbm [shape: f32[1,2], index: 6, kind: input, shape index: {}]
  %s7 = inlined_call_operand.vmem [shape: f32[8,2], index: 7, kind: output, shape index: {}]
  %s8 = sld [smem:[#allocation0]]
  $region58: #{tpu_custom_call.1} parent=0
    _
  %s10 = ssub.s32 1, %s8
  %s11 = scalar_select 0, %s10, %s8
  $region1: #{tpu_custom_call.1} parent=0
    #allocation2 [shape = 'u8[4096]{0}', space=vmem, size = 0x1000, scoped, tag = 'input window, operand 1, single buffered']
    #allocation3 [shape = 's32[1]{0}', space=sflag, size = 0x4, scoped, tag = 'scoped memory for tpu_custom_call.1']
    #allocation4 [shape = 'u8[4096]{0}', space=vmem, size = 0x1000, scoped, tag = 'input window, operand 2, single buffered']
    #allocation5 [shape = 's32[1]{0}', space=sflag, size = 0x4, scoped, tag = 'scoped memory for tpu_custom_call.1']
    #allocation6 [shape = 'u8[2097152]{0}', space=vmem, size = 0x200000, scoped, tag = 'input window, operand 3, single buffered']
    #allocation7 [shape = 'u8[4096]{0}', space=vmem, size = 0x1000, scoped, tag = 'input window, operand 4, single buffered']
    #allocation8 [shape = 's32[1]{0}', space=sflag, size = 0x4, scoped, tag = 'scoped memory for tpu_custom_call.1']
    #allocation9 [shape = 'u8[512]{0}', space=vmem, size = 0x400, scoped, tag = 'input window, operand 6, single buffered']
    %12 = vsyncpa [#allocation3], 0
    %13 = vsyncpa [#allocation5], 0
    %14 = vsyncpa [#allocation8], 0
    // Predicated region
    $region2: #{tpu_custom_call.1} parent=1 // pred_check
      _
    $region3: #{tpu_custom_call.1} parent=1 // pred_check_branch
      %16 = sbr.rel (0) target = $region5
    $region4: #{tpu_custom_call.1} parent=1 // pred_region
      _
    $region5: #{tpu_custom_call.1} parent=1 // pred_fallthru
      _
    // Predicated region
    $region6: #{tpu_custom_call.1} parent=1 // pred_check
      _
    $region7: #{tpu_custom_call.1} parent=1 // pred_check_branch
      %18 = sbr.rel (0) target = $region9
    $region8: #{tpu_custom_call.1} parent=1 // pred_region
      %s20 = ssub.s32 128, 128
      %21 = vsyncadd [#allocation3], %s20
      %s23 = sshll.u32 [#allocation2], 4
      %s24 = int_to_ptr.vmem [resolvable:$true] %s23
      %26 = dma.hbm_to_vmem [thread:$0]  %s1, 128, %s24, [#allocation3]
    $region9: #{tpu_custom_call.1} parent=1 // pred_fallthru
      _
    // Predicated region
    $region10: #{tpu_custom_call.1} parent=1 // pred_check
      _
    $region11: #{tpu_custom_call.1} parent=1 // pred_check_branch
      %28 = sbr.rel (0) target = $region13
    $region12: #{tpu_custom_call.1} parent=1 // pred_region
      %s30 = ssub.s32 128, 128
      %31 = vsyncadd [#allocation5], %s30
      %s33 = sshll.u32 [#allocation4], 4
      %s34 = int_to_ptr.vmem [resolvable:$true] %s33
      %36 = dma.hbm_to_vmem [thread:$0]  %s2, 128, %s34, [#allocation5]
    $region13: #{tpu_custom_call.1} parent=1 // pred_fallthru
      _
    // Predicated region
    $region14: #{tpu_custom_call.1} parent=1 // pred_check
      _
    $region15: #{tpu_custom_call.1} parent=1 // pred_check_branch
      %38 = sbr.rel (0) target = $region17
    $region16: #{tpu_custom_call.1} parent=1 // pred_region
      %s40 = ssub.s32 65536, 65536
      %41 = vsyncadd [#allocation5], %s40
      %s42 = sshll.u32 [#allocation6], 4
      %s43 = int_to_ptr.vmem [resolvable:$true] %s42
      %48 = dma.hbm_to_vmem [thread:$0]  %s3, 65536, %s43, [#allocation5], 512, 512, 32
    $region17: #{tpu_custom_call.1} parent=1 // pred_fallthru
      _
    // Predicated region
    $region18: #{tpu_custom_call.1} parent=1 // pred_check
      _
    $region19: #{tpu_custom_call.1} parent=1 // pred_check_branch
      %50 = sbr.rel (0) target = $region21
    $region20: #{tpu_custom_call.1} parent=1 // pred_region
      %s52 = ssub.s32 128, 128
      %53 = vsyncadd [#allocation8], %s52
      %s55 = sshll.u32 [#allocation7], 4
      %s56 = int_to_ptr.vmem [resolvable:$true] %s55
      %58 = dma.hbm_to_vmem [thread:$0]  %s4, 128, %s56, [#allocation8]
    $region21: #{tpu_custom_call.1} parent=1 // pred_fallthru
      _
    // Predicated region
    $region22: #{tpu_custom_call.1} parent=1 // pred_check
      _
    $region23: #{tpu_custom_call.1} parent=1 // pred_check_branch
      %60 = sbr.rel (0) target = $region25
    $region24: #{tpu_custom_call.1} parent=1 // pred_region
      _
    $region25: #{tpu_custom_call.1} parent=1 // pred_fallthru
      _
    // Predicated region
    $region26: #{tpu_custom_call.1} parent=1 // pred_check
      _
    $region27: #{tpu_custom_call.1} parent=1 // pred_check_branch
      %62 = sbr.rel (0) target = $region29
    $region28: #{tpu_custom_call.1} parent=1 // pred_region
      %s64 = ssub.s32 16, 16
      %65 = vsyncadd [#allocation8], %s64
      %s67 = sshll.u32 [#allocation9], 4
      %s68 = int_to_ptr.vmem [resolvable:$true] %s67
      %70 = dma.hbm_to_vmem [thread:$0]  %s6, 16, %s68, [#allocation8]
    $region29: #{tpu_custom_call.1} parent=1 // pred_fallthru
      _
    // Predicated region
    $region30: #{tpu_custom_call.1} parent=1 // pred_check
      _
    $region31: #{tpu_custom_call.1} parent=1 // pred_check_branch
      %72 = sbr.rel (0) target = $region33
    $region32: #{tpu_custom_call.1} parent=1 // pred_region
      %73 = dma.done [#allocation3], 128
    $region33: #{tpu_custom_call.1} parent=1 // pred_fallthru
      _
    // Predicated region
    $region34: #{tpu_custom_call.1} parent=1 // pred_check
      _
    $region35: #{tpu_custom_call.1} parent=1 // pred_check_branch
      %75 = sbr.rel (0) target = $region37
    $region36: #{tpu_custom_call.1} parent=1 // pred_region
      %76 = dma.done [#allocation5], 128
    $region37: #{tpu_custom_call.1} parent=1 // pred_fallthru
      _
    // Predicated region
    $region38: #{tpu_custom_call.1} parent=1 // pred_check
      _
    $region39: #{tpu_custom_call.1} parent=1 // pred_check_branch
      %78 = sbr.rel (0) target = $region41
    $region40: #{tpu_custom_call.1} parent=1 // pred_region
      %79 = dma.done [#allocation5], 65536
    $region41: #{tpu_custom_call.1} parent=1 // pred_fallthru
      _
    // Predicated region
    $region42: #{tpu_custom_call.1} parent=1 // pred_check
      _
    $region43: #{tpu_custom_call.1} parent=1 // pred_check_branch
      %81 = sbr.rel (0) target = $region45
    $region44: #{tpu_custom_call.1} parent=1 // pred_region
      %82 = dma.done [#allocation8], 128
    $region45: #{tpu_custom_call.1} parent=1 // pred_fallthru
      _
    // Predicated region
    $region46: #{tpu_custom_call.1} parent=1 // pred_check
      _
    $region47: #{tpu_custom_call.1} parent=1 // pred_check_branch
      %84 = sbr.rel (0) target = $region49
    $region48: #{tpu_custom_call.1} parent=1 // pred_region
      %85 = dma.done [#allocation8], 16
    $region49: #{tpu_custom_call.1} parent=1 // pred_fallthru
      _
    %v88 = vld [vmem:[%s0] sm:$0xff]
    %v89 = vpack.c.bf16 %v88, %v88
    %v90 = vld [vmem:[#allocation2] sm:$0xff]
    %92 = vset.pattern.permute.xlu0 0
    %93 = vperm.xlu0 %92, %v89
    %v94 = vpop.permute.xlu0 %93
    %v97 = vcombine.high %v90, %v90
    %v99 = vunpack.c.l.s4 1966171168
    %v100 = vunpack.c.0.s8 %v99
    %v101 = vlaneseq
    %v102 = vshrl.u32 %v101, 7
    %v103 = vsub.s32 %v100, %v102
    %v104 = vrot.slane %v90, %v103
    %v106 = vunpack.c.l.s4 1966171168
    %v107 = vunpack.c.0.s8 %v106
    %v108 = vlaneseq
    %v109 = vshrl.u32 %v108, 7
    %v110 = vsub.s32 %v107, %v109
    %v111 = vrot.slane %v97, %v110
    %v112 = vcombine.high %v104, %v104
    %v113 = vcombine.high %v111, %v111
    %v115 = vunpack.c.l.s4 1966171168
    %v116 = vunpack.c.0.s8 %v115
    %v117 = vlaneseq
    %v118 = vshrl.u32 %v117, 7
    %v119 = vsub.s32 %v116, %v118
    %v120 = vrot.slane %v104, %v119
    %v122 = vunpack.c.l.s4 1966171168
    %v123 = vunpack.c.0.s8 %v122
    %v124 = vlaneseq
    %v125 = vshrl.u32 %v124, 7
    %v126 = vsub.s32 %v123, %v125
    %v127 = vrot.slane %v111, %v126
    %v129 = vunpack.c.l.s4 1966171168
    %v130 = vunpack.c.0.s8 %v129
    %v131 = vlaneseq
    %v132 = vshrl.u32 %v131, 7
    %v133 = vsub.s32 %v130, %v132
    %v134 = vrot.slane %v112, %v133
    %v136 = vunpack.c.l.s4 1966171168
    %v137 = vunpack.c.0.s8 %v136
    %v138 = vlaneseq
    %v139 = vshrl.u32 %v138, 7
    %v140 = vsub.s32 %v137, %v139
    %v141 = vrot.slane %v113, %v140
    %v142 = vcombine.high %v120, %v120
    %v143 = vcombine.high %v127, %v127
    %v144 = vcombine.high %v134, %v134
    %v145 = vcombine.high %v141, %v141
    %v147 = vpack.i.b16 %v120, %v120
    %v149 = vlaneseq
    %v150 = vshrl.u32 %v149, 7
    %v151 = vsub.s32 0, %v150
    %v152 = vrot.slane %v147, %v151
    %v154 = vpack.i.b16 %v134, %v134
    %v156 = vlaneseq
    %v157 = vshrl.u32 %v156, 7
    %v158 = vsub.s32 0, %v157
    %v159 = vrot.slane %v154, %v158
    %v161 = vpack.i.b16 %v142, %v142
    %v163 = vlaneseq
    %v164 = vshrl.u32 %v163, 7
    %v165 = vsub.s32 0, %v164
    %v166 = vrot.slane %v161, %v165
    %v168 = vpack.i.b16 %v144, %v144
    %v170 = vlaneseq
    %v171 = vshrl.u32 %v170, 7
    %v172 = vsub.s32 0, %v171
    %v173 = vrot.slane %v168, %v172
    %v175 = vpack.i.b16 %v127, %v127
    %v177 = vlaneseq
    %v178 = vshrl.u32 %v177, 7
    %v179 = vsub.s32 0, %v178
    %v180 = vrot.slane %v175, %v179
    %v182 = vpack.i.b16 %v141, %v141
    %v184 = vlaneseq
    %v185 = vshrl.u32 %v184, 7
    %v186 = vsub.s32 0, %v185
    %v187 = vrot.slane %v182, %v186
    %v189 = vpack.i.b16 %v143, %v143
    %v191 = vlaneseq
    %v192 = vshrl.u32 %v191, 7
    %v193 = vsub.s32 0, %v192
    %v194 = vrot.slane %v189, %v193
    %v196 = vpack.i.b16 %v145, %v145
    %v198 = vlaneseq
    %v199 = vshrl.u32 %v198, 7
    %v200 = vsub.s32 0, %v199
    %v201 = vrot.slane %v196, %v200
    %v202 = vmul.bf16 %v94, %v152
    %v203 = vmul.bf16 %v94, %v159
    %v204 = vmul.bf16 %v94, %v166
    %v205 = vmul.bf16 %v94, %v173
    %v206 = vmul.bf16 %v94, %v180
    %v207 = vmul.bf16 %v94, %v187
    %v208 = vmul.bf16 %v94, %v194
    %v209 = vmul.bf16 %v94, %v201
    %210 = vset.pattern.permute.xlu0 1
    %211 = vperm.xlu0 %210, %v89
    %v212 = vpop.permute.xlu0 %211
    %v214 = vshrl.u32 %v120, 16
    %v215 = vpack.i.b16 %v214, %v214
    %v217 = vlaneseq
    %v218 = vshrl.u32 %v217, 7
    %v219 = vsub.s32 0, %v218
    %v220 = vrot.slane %v215, %v219
    %v221 = vshrl.u32 %v134, 16
    %v222 = vpack.i.b16 %v221, %v221
    %v224 = vlaneseq
    %v225 = vshrl.u32 %v224, 7
    %v226 = vsub.s32 0, %v225
    %v227 = vrot.slane %v222, %v226
    %v228 = vshrl.u32 %v142, 16
    %v229 = vpack.i.b16 %v228, %v228
    %v231 = vlaneseq
    %v232 = vshrl.u32 %v231, 7
    %v233 = vsub.s32 0, %v232
    %v234 = vrot.slane %v229, %v233
    %v235 = vshrl.u32 %v144, 16
    %v236 = vpack.i.b16 %v235, %v235
    %v238 = vlaneseq
    %v239 = vshrl.u32 %v238, 7
    %v240 = vsub.s32 0, %v239
    %v241 = vrot.slane %v236, %v240
    %v242 = vshrl.u32 %v127, 16
    %v243 = vpack.i.b16 %v242, %v242
    %v245 = vlaneseq
    %v246 = vshrl.u32 %v245, 7
    %v247 = vsub.s32 0, %v246
    %v248 = vrot.slane %v243, %v247
    %v249 = vshrl.u32 %v141, 16
    %v250 = vpack.i.b16 %v249, %v249
    %v252 = vlaneseq
    %v253 = vshrl.u32 %v252, 7
    %v254 = vsub.s32 0, %v253
    %v255 = vrot.slane %v250, %v254
    %v256 = vshrl.u32 %v143, 16
    %v257 = vpack.i.b16 %v256, %v256
    %v259 = vlaneseq
    %v260 = vshrl.u32 %v259, 7
    %v261 = vsub.s32 0, %v260
    %v262 = vrot.slane %v257, %v261
    %v263 = vshrl.u32 %v145, 16
    %v264 = vpack.i.b16 %v263, %v263
    %v266 = vlaneseq
    %v267 = vshrl.u32 %v266, 7
    %v268 = vsub.s32 0, %v267
    %v269 = vrot.slane %v264, %v268
    %v270 = vmul.bf16 %v212, %v220
    %v271 = vmul.bf16 %v212, %v227
    %v272 = vmul.bf16 %v212, %v234
    %v273 = vmul.bf16 %v212, %v241
    %v274 = vmul.bf16 %v212, %v248
    %v275 = vmul.bf16 %v212, %v255
    %v276 = vmul.bf16 %v212, %v262
    %v277 = vmul.bf16 %v212, %v269
    %v278 = vadd.bf16 %v202, %v270
    %v279 = vadd.bf16 %v203, %v271
    %v280 = vadd.bf16 %v204, %v272
    %v281 = vadd.bf16 %v205, %v273
    %v282 = vadd.bf16 %v206, %v274
    %v283 = vadd.bf16 %v207, %v275
    %v284 = vadd.bf16 %v208, %v276
    %v285 = vadd.bf16 %v209, %v277
    %v286 = vld [vmem:[#allocation4] sm:$0xff]
    %v288 = vcombine.high %v286, %v286
    %v290 = vunpack.c.l.s4 1966171168
    %v291 = vunpack.c.0.s8 %v290
    %v292 = vlaneseq
    %v293 = vshrl.u32 %v292, 7
    %v294 = vsub.s32 %v291, %v293
    %v295 = vrot.slane %v286, %v294
    %v297 = vunpack.c.l.s4 1966171168
    %v298 = vunpack.c.0.s8 %v297
    %v299 = vlaneseq
    %v300 = vshrl.u32 %v299, 7
    %v301 = vsub.s32 %v298, %v300
    %v302 = vrot.slane %v288, %v301
    %v303 = vcombine.high %v295, %v295
    %v304 = vcombine.high %v302, %v302
    %v306 = vunpack.c.l.s4 1966171168
    %v307 = vunpack.c.0.s8 %v306
    %v308 = vlaneseq
    %v309 = vshrl.u32 %v308, 7
    %v310 = vsub.s32 %v307, %v309
    %v311 = vrot.slane %v295, %v310
    %v313 = vunpack.c.l.s4 1966171168
    %v314 = vunpack.c.0.s8 %v313
    %v315 = vlaneseq
    %v316 = vshrl.u32 %v315, 7
    %v317 = vsub.s32 %v314, %v316
    %v318 = vrot.slane %v302, %v317
    %v320 = vunpack.c.l.s4 1966171168
    %v321 = vunpack.c.0.s8 %v320
    %v322 = vlaneseq
    %v323 = vshrl.u32 %v322, 7
    %v324 = vsub.s32 %v321, %v323
    %v325 = vrot.slane %v303, %v324
    %v327 = vunpack.c.l.s4 1966171168
    %v328 = vunpack.c.0.s8 %v327
    %v329 = vlaneseq
    %v330 = vshrl.u32 %v329, 7
    %v331 = vsub.s32 %v328, %v330
    %v332 = vrot.slane %v304, %v331
    %v333 = vcombine.high %v311, %v311
    %v334 = vcombine.high %v318, %v318
    %v335 = vcombine.high %v325, %v325
    %v336 = vcombine.high %v332, %v332
    %v338 = vpack.i.b16 %v311, %v311
    %v340 = vlaneseq
    %v341 = vshrl.u32 %v340, 7
    %v342 = vsub.s32 0, %v341
    %v343 = vrot.slane %v338, %v342
    %v345 = vpack.i.b16 %v325, %v325
    %v347 = vlaneseq
    %v348 = vshrl.u32 %v347, 7
    %v349 = vsub.s32 0, %v348
    %v350 = vrot.slane %v345, %v349
    %v352 = vpack.i.b16 %v333, %v333
    %v354 = vlaneseq
    %v355 = vshrl.u32 %v354, 7
    %v356 = vsub.s32 0, %v355
    %v357 = vrot.slane %v352, %v356
    %v359 = vpack.i.b16 %v335, %v335
    %v361 = vlaneseq
    %v362 = vshrl.u32 %v361, 7
    %v363 = vsub.s32 0, %v362
    %v364 = vrot.slane %v359, %v363
    %v366 = vpack.i.b16 %v318, %v318
    %v368 = vlaneseq
    %v369 = vshrl.u32 %v368, 7
    %v370 = vsub.s32 0, %v369
    %v371 = vrot.slane %v366, %v370
    %v373 = vpack.i.b16 %v332, %v332
    %v375 = vlaneseq
    %v376 = vshrl.u32 %v375, 7
    %v377 = vsub.s32 0, %v376
    %v378 = vrot.slane %v373, %v377
    %v380 = vpack.i.b16 %v334, %v334
    %v382 = vlaneseq
    %v383 = vshrl.u32 %v382, 7
    %v384 = vsub.s32 0, %v383
    %v385 = vrot.slane %v380, %v384
    %v387 = vpack.i.b16 %v336, %v336
    %v389 = vlaneseq
    %v390 = vshrl.u32 %v389, 7
    %v391 = vsub.s32 0, %v390
    %v392 = vrot.slane %v387, %v391
    %v393 = vadd.bf16 %v278, %v343
    %v394 = vadd.bf16 %v279, %v350
    %v395 = vadd.bf16 %v280, %v357
    %v396 = vadd.bf16 %v281, %v364
    %v397 = vadd.bf16 %v282, %v371
    %v398 = vadd.bf16 %v283, %v378
    %v399 = vadd.bf16 %v284, %v385
    %v400 = vadd.bf16 %v285, %v392
    %v401 = vmul.bf16 %v393, 1009007652
    %v402 = vmul.bf16 %v394, 1009007652
    %v403 = vmul.bf16 %v395, 1009007652
    %v404 = vmul.bf16 %v396, 1009007652
    %v405 = vmul.bf16 %v397, 1009007652
    %v406 = vmul.bf16 %v398, 1009007652
    %v407 = vmul.bf16 %v399, 1009007652
    %v408 = vmul.bf16 %v400, 1009007652
    %v409 = vmax.bf16 %v393, %v401
    %v410 = vmax.bf16 %v394, %v402
    %v411 = vmax.bf16 %v395, %v403
    %v412 = vmax.bf16 %v396, %v404
    %v413 = vmax.bf16 %v397, %v405
    %v414 = vmax.bf16 %v398, %v406
    %v415 = vmax.bf16 %v399, %v407
    %v416 = vmax.bf16 %v400, %v408
    %v417 = vld [vmem:[#allocation6] sm:$0xff]
    %v418 = vld [vmem:[#allocation6 + $0x8] sm:$0xff]
    %v419 = vld [vmem:[#allocation6 + $0x10] sm:$0xff]
    %v420 = vld [vmem:[#allocation6 + $0x18] sm:$0xff]
    %v421 = vld [vmem:[#allocation6 + $0x20] sm:$0xff]
    %v422 = vld [vmem:[#allocation6 + $0x28] sm:$0xff]
    %v423 = vld [vmem:[#allocation6 + $0x30] sm:$0xff]
    %v424 = vld [vmem:[#allocation6 + $0x38] sm:$0xff]
    %v425 = vld [vmem:[#allocation6 + $0x40] sm:$0xff]
    %v426 = vld [vmem:[#allocation6 + $0x48] sm:$0xff]
    %v427 = vld [vmem:[#allocation6 + $0x50] sm:$0xff]
    %v428 = vld [vmem:[#allocation6 + $0x58] sm:$0xff]
    %v429 = vld [vmem:[#allocation6 + $0x60] sm:$0xff]
    %v430 = vld [vmem:[#allocation6 + $0x68] sm:$0xff]
    %v431 = vld [vmem:[#allocation6 + $0x70] sm:$0xff]
    %v432 = vld [vmem:[#allocation6 + $0x78] sm:$0xff]
    %v433 = vld [vmem:[#allocation6 + $0x80] sm:$0xff]
    %v434 = vld [vmem:[#allocation6 + $0x88] sm:$0xff]
    %v435 = vld [vmem:[#allocation6 + $0x90] sm:$0xff]
    %v436 = vld [vmem:[#allocation6 + $0x98] sm:$0xff]
    %v437 = vld [vmem:[#allocation6 + $0xa0] sm:$0xff]
    %v438 = vld [vmem:[#allocation6 + $0xa8] sm:$0xff]
    %v439 = vld [vmem:[#allocation6 + $0xb0] sm:$0xff]
    %v440 = vld [vmem:[#allocation6 + $0xb8] sm:$0xff]
    %v441 = vld [vmem:[#allocation6 + $0xc0] sm:$0xff]
    %v442 = vld [vmem:[#allocation6 + $0xc8] sm:$0xff]
    %v443 = vld [vmem:[#allocation6 + $0xd0] sm:$0xff]
    %v444 = vld [vmem:[#allocation6 + $0xd8] sm:$0xff]
    %v445 = vld [vmem:[#allocation6 + $0xe0] sm:$0xff]
    %v446 = vld [vmem:[#allocation6 + $0xe8] sm:$0xff]
    %v447 = vld [vmem:[#allocation6 + $0xf0] sm:$0xff]
    %v448 = vld [vmem:[#allocation6 + $0xf8] sm:$0xff]
    %v449 = vld [vmem:[#allocation6 + $0x100] sm:$0xff]
    %v450 = vld [vmem:[#allocation6 + $0x108] sm:$0xff]
    %v451 = vld [vmem:[#allocation6 + $0x110] sm:$0xff]
    %v452 = vld [vmem:[#allocation6 + $0x118] sm:$0xff]
    %v453 = vld [vmem:[#allocation6 + $0x120] sm:$0xff]
    %v454 = vld [vmem:[#allocation6 + $0x128] sm:$0xff]
    %v455 = vld [vmem:[#allocation6 + $0x130] sm:$0xff]
    %v456 = vld [vmem:[#allocation6 + $0x138] sm:$0xff]
    %v457 = vld [vmem:[#allocation6 + $0x140] sm:$0xff]
    %v458 = vld [vmem:[#allocation6 + $0x148] sm:$0xff]
    %v459 = vld [vmem:[#allocation6 + $0x150] sm:$0xff]
    %v460 = vld [vmem:[#allocation6 + $0x158] sm:$0xff]
    %v461 = vld [vmem:[#allocation6 + $0x160] sm:$0xff]
    %v462 = vld [vmem:[#allocation6 + $0x168] sm:$0xff]
    %v463 = vld [vmem:[#allocation6 + $0x170] sm:$0xff]
    %v464 = vld [vmem:[#allocation6 + $0x178] sm:$0xff]
    %v465 = vld [vmem:[#allocation6 + $0x180] sm:$0xff]
    %v466 = vld [vmem:[#allocation6 + $0x188] sm:$0xff]
    %v467 = vld [vmem:[#allocation6 + $0x190] sm:$0xff]
    %v468 = vld [vmem:[#allocation6 + $0x198] sm:$0xff]
    %v469 = vld [vmem:[#allocation6 + $0x1a0] sm:$0xff]
    %v470 = vld [vmem:[#allocation6 + $0x1a8] sm:$0xff]
    %v471 = vld [vmem:[#allocation6 + $0x1b0] sm:$0xff]
    %v472 = vld [vmem:[#allocation6 + $0x1b8] sm:$0xff]
    %v473 = vld [vmem:[#allocation6 + $0x1c0] sm:$0xff]
    %v474 = vld [vmem:[#allocation6 + $0x1c8] sm:$0xff]
    %v475 = vld [vmem:[#allocation6 + $0x1d0] sm:$0xff]
    %v476 = vld [vmem:[#allocation6 + $0x1d8] sm:$0xff]
    %v477 = vld [vmem:[#allocation6 + $0x1e0] sm:$0xff]
    %v478 = vld [vmem:[#allocation6 + $0x1e8] sm:$0xff]
    %v479 = vld [vmem:[#allocation6 + $0x1f0] sm:$0xff]
    %v480 = vld [vmem:[#allocation6 + $0x1f8] sm:$0xff]
    %v481 = vld [vmem:[#allocation6 + $0x200] sm:$0xff]
    %v482 = vld [vmem:[#allocation6 + $0x208] sm:$0xff]
    %v483 = vld [vmem:[#allocation6 + $0x210] sm:$0xff]
    %v484 = vld [vmem:[#allocation6 + $0x218] sm:$0xff]
    %v485 = vld [vmem:[#allocation6 + $0x220] sm:$0xff]
    %v486 = vld [vmem:[#allocation6 + $0x228] sm:$0xff]
    %v487 = vld [vmem:[#allocation6 + $0x230] sm:$0xff]
    %v488 = vld [vmem:[#allocation6 + $0x238] sm:$0xff]
    %v489 = vld [vmem:[#allocation6 + $0x240] sm:$0xff]
    %v490 = vld [vmem:[#allocation6 + $0x248] sm:$0xff]
    %v491 = vld [vmem:[#allocation6 + $0x250] sm:$0xff]
    %v492 = vld [vmem:[#allocation6 + $0x258] sm:$0xff]
    %v493 = vld [vmem:[#allocation6 + $0x260] sm:$0xff]
    %v494 = vld [vmem:[#allocation6 + $0x268] sm:$0xff]
    %v495 = vld [vmem:[#allocation6 + $0x270] sm:$0xff]
    %v496 = vld [vmem:[#allocation6 + $0x278] sm:$0xff]
    %v497 = vld [vmem:[#allocation6 + $0x280] sm:$0xff]
    %v498 = vld [vmem:[#allocation6 + $0x288] sm:$0xff]
    %v499 = vld [vmem:[#allocation6 + $0x290] sm:$0xff]
    %v500 = vld [vmem:[#allocation6 + $0x298] sm:$0xff]
    %v501 = vld [vmem:[#allocation6 + $0x2a0] sm:$0xff]
    %v502 = vld [vmem:[#allocation6 + $0x2a8] sm:$0xff]
    %v503 = vld [vmem:[#allocation6 + $0x2b0] sm:$0xff]
    %v504 = vld [vmem:[#allocation6 + $0x2b8] sm:$0xff]
    %v505 = vld [vmem:[#allocation6 + $0x2c0] sm:$0xff]
    %v506 = vld [vmem:[#allocation6 + $0x2c8] sm:$0xff]
    %v507 = vld [vmem:[#allocation6 + $0x2d0] sm:$0xff]
    %v508 = vld [vmem:[#allocation6 + $0x2d8] sm:$0xff]
    %v509 = vld [vmem:[#allocation6 + $0x2e0] sm:$0xff]
    %v510 = vld [vmem:[#allocation6 + $0x2e8] sm:$0xff]
    %v511 = vld [vmem:[#allocation6 + $0x2f0] sm:$0xff]
    %v512 = vld [vmem:[#allocation6 + $0x2f8] sm:$0xff]
    %v513 = vld [vmem:[#allocation6 + $0x300] sm:$0xff]
    %v514 = vld [vmem:[#allocation6 + $0x308] sm:$0xff]
    %v515 = vld [vmem:[#allocation6 + $0x310] sm:$0xff]
    %v516 = vld [vmem:[#allocation6 + $0x318] sm:$0xff]
    %v517 = vld [vmem:[#allocation6 + $0x320] sm:$0xff]
    %v518 = vld [vmem:[#allocation6 + $0x328] sm:$0xff]
    %v519 = vld [vmem:[#allocation6 + $0x330] sm:$0xff]
    %v520 = vld [vmem:[#allocation6 + $0x338] sm:$0xff]
    %v521 = vld [vmem:[#allocation6 + $0x340] sm:$0xff]
    %v522 = vld [vmem:[#allocation6 + $0x348] sm:$0xff]
    %v523 = vld [vmem:[#allocation6 + $0x350] sm:$0xff]
    %v524 = vld [vmem:[#allocation6 + $0x358] sm:$0xff]
    %v525 = vld [vmem:[#allocation6 + $0x360] sm:$0xff]
    %v526 = vld [vmem:[#allocation6 + $0x368] sm:$0xff]
    %v527 = vld [vmem:[#allocation6 + $0x370] sm:$0xff]
    %v528 = vld [vmem:[#allocation6 + $0x378] sm:$0xff]
    %v529 = vld [vmem:[#allocation6 + $0x380] sm:$0xff]
    %v530 = vld [vmem:[#allocation6 + $0x388] sm:$0xff]
    %v531 = vld [vmem:[#allocation6 + $0x390] sm:$0xff]
    %v532 = vld [vmem:[#allocation6 + $0x398] sm:$0xff]
    %v533 = vld [vmem:[#allocation6 + $0x3a0] sm:$0xff]
    %v534 = vld [vmem:[#allocation6 + $0x3a8] sm:$0xff]
    %v535 = vld [vmem:[#allocation6 + $0x3b0] sm:$0xff]
    %v536 = vld [vmem:[#allocation6 + $0x3b8] sm:$0xff]
    %v537 = vld [vmem:[#allocation6 + $0x3c0] sm:$0xff]
    %v538 = vld [vmem:[#allocation6 + $0x3c8] sm:$0xff]
    %v539 = vld [vmem:[#allocation6 + $0x3d0] sm:$0xff]
    %v540 = vld [vmem:[#allocation6 + $0x3d8] sm:$0xff]
    %v541 = vld [vmem:[#allocation6 + $0x3e0] sm:$0xff]
    %v542 = vld [vmem:[#allocation6 + $0x3e8] sm:$0xff]
    %v543 = vld [vmem:[#allocation6 + $0x3f0] sm:$0xff]
    %v544 = vld [vmem:[#allocation6 + $0x3f8] sm:$0xff]
    %v545 = vld [vmem:[#allocation6 + $0x400] sm:$0xff]
    %v546 = vld [vmem:[#allocation6 + $0x408] sm:$0xff]
    %v547 = vld [vmem:[#allocation6 + $0x410] sm:$0xff]
    %v548 = vld [vmem:[#allocation6 + $0x418] sm:$0xff]
    %v549 = vld [vmem:[#allocation6 + $0x420] sm:$0xff]
    %v550 = vld [vmem:[#allocation6 + $0x428] sm:$0xff]
    %v551 = vld [vmem:[#allocation6 + $0x430] sm:$0xff]
    %v552 = vld [vmem:[#allocation6 + $0x438] sm:$0xff]
    %v553 = vld [vmem:[#allocation6 + $0x440] sm:$0xff]
    %v554 = vld [vmem:[#allocation6 + $0x448] sm:$0xff]
    %v555 = vld [vmem:[#allocation6 + $0x450] sm:$0xff]
    %v556 = vld [vmem:[#allocation6 + $0x458] sm:$0xff]
    %v557 = vld [vmem:[#allocation6 + $0x460] sm:$0xff]
    %v558 = vld [vmem:[#allocation6 + $0x468] sm:$0xff]
    %v559 = vld [vmem:[#allocation6 + $0x470] sm:$0xff]
    %v560 = vld [vmem:[#allocation6 + $0x478] sm:$0xff]
    %v561 = vld [vmem:[#allocation6 + $0x480] sm:$0xff]
    %v562 = vld [vmem:[#allocation6 + $0x488] sm:$0xff]
    %v563 = vld [vmem:[#allocation6 + $0x490] sm:$0xff]
    %v564 = vld [vmem:[#allocation6 + $0x498] sm:$0xff]
    %v565 = vld [vmem:[#allocation6 + $0x4a0] sm:$0xff]
    %v566 = vld [vmem:[#allocation6 + $0x4a8] sm:$0xff]
    %v567 = vld [vmem:[#allocation6 + $0x4b0] sm:$0xff]
    %v568 = vld [vmem:[#allocation6 + $0x4b8] sm:$0xff]
    %v569 = vld [vmem:[#allocation6 + $0x4c0] sm:$0xff]
    %v570 = vld [vmem:[#allocation6 + $0x4c8] sm:$0xff]
    %v571 = vld [vmem:[#allocation6 + $0x4d0] sm:$0xff]
    %v572 = vld [vmem:[#allocation6 + $0x4d8] sm:$0xff]
    %v573 = vld [vmem:[#allocation6 + $0x4e0] sm:$0xff]
    %v574 = vld [vmem:[#allocation6 + $0x4e8] sm:$0xff]
    %v575 = vld [vmem:[#allocation6 + $0x4f0] sm:$0xff]
    %v576 = vld [vmem:[#allocation6 + $0x4f8] sm:$0xff]
    %v577 = vld [vmem:[#allocation6 + $0x500] sm:$0xff]
    %v578 = vld [vmem:[#allocation6 + $0x508] sm:$0xff]
    %v579 = vld [vmem:[#allocation6 + $0x510] sm:$0xff]
    %v580 = vld [vmem:[#allocation6 + $0x518] sm:$0xff]
    %v581 = vld [vmem:[#allocation6 + $0x520] sm:$0xff]
    %v582 = vld [vmem:[#allocation6 + $0x528] sm:$0xff]
    %v583 = vld [vmem:[#allocation6 + $0x530] sm:$0xff]
    %v584 = vld [vmem:[#allocation6 + $0x538] sm:$0xff]
    %v585 = vld [vmem:[#allocation6 + $0x540] sm:$0xff]
    %v586 = vld [vmem:[#allocation6 + $0x548] sm:$0xff]
    %v587 = vld [vmem:[#allocation6 + $0x550] sm:$0xff]
    %v588 = vld [vmem:[#allocation6 + $0x558] sm:$0xff]
    %v589 = vld [vmem:[#allocation6 + $0x560] sm:$0xff]
    %v590 = vld [vmem:[#allocation6 + $0x568] sm:$0xff]
    %v591 = vld [vmem:[#allocation6 + $0x570] sm:$0xff]
    %v592 = vld [vmem:[#allocation6 + $0x578] sm:$0xff]
    %v593 = vld [vmem:[#allocation6 + $0x580] sm:$0xff]
    %v594 = vld [vmem:[#allocation6 + $0x588] sm:$0xff]
    %v595 = vld [vmem:[#allocation6 + $0x590] sm:$0xff]
    %v596 = vld [vmem:[#allocation6 + $0x598] sm:$0xff]
    %v597 = vld [vmem:[#allocation6 + $0x5a0] sm:$0xff]
    %v598 = vld [vmem:[#allocation6 + $0x5a8] sm:$0xff]
    %v599 = vld [vmem:[#allocation6 + $0x5b0] sm:$0xff]
    %v600 = vld [vmem:[#allocation6 + $0x5b8] sm:$0xff]
    %v601 = vld [vmem:[#allocation6 + $0x5c0] sm:$0xff]
    %v602 = vld [vmem:[#allocation6 + $0x5c8] sm:$0xff]
    %v603 = vld [vmem:[#allocation6 + $0x5d0] sm:$0xff]
    %v604 = vld [vmem:[#allocation6 + $0x5d8] sm:$0xff]
    %v605 = vld [vmem:[#allocation6 + $0x5e0] sm:$0xff]
    %v606 = vld [vmem:[#allocation6 + $0x5e8] sm:$0xff]
    %v607 = vld [vmem:[#allocation6 + $0x5f0] sm:$0xff]
    %v608 = vld [vmem:[#allocation6 + $0x5f8] sm:$0xff]
    %v609 = vld [vmem:[#allocation6 + $0x600] sm:$0xff]
    %v610 = vld [vmem:[#allocation6 + $0x608] sm:$0xff]
    %v611 = vld [vmem:[#allocation6 + $0x610] sm:$0xff]
    %v612 = vld [vmem:[#allocation6 + $0x618] sm:$0xff]
    %v613 = vld [vmem:[#allocation6 + $0x620] sm:$0xff]
    %v614 = vld [vmem:[#allocation6 + $0x628] sm:$0xff]
    %v615 = vld [vmem:[#allocation6 + $0x630] sm:$0xff]
    %v616 = vld [vmem:[#allocation6 + $0x638] sm:$0xff]
    %v617 = vld [vmem:[#allocation6 + $0x640] sm:$0xff]
    %v618 = vld [vmem:[#allocation6 + $0x648] sm:$0xff]
    %v619 = vld [vmem:[#allocation6 + $0x650] sm:$0xff]
    %v620 = vld [vmem:[#allocation6 + $0x658] sm:$0xff]
    %v621 = vld [vmem:[#allocation6 + $0x660] sm:$0xff]
    %v622 = vld [vmem:[#allocation6 + $0x668] sm:$0xff]
    %v623 = vld [vmem:[#allocation6 + $0x670] sm:$0xff]
    %v624 = vld [vmem:[#allocation6 + $0x678] sm:$0xff]
    %v625 = vld [vmem:[#allocation6 + $0x680] sm:$0xff]
    %v626 = vld [vmem:[#allocation6 + $0x688] sm:$0xff]
    %v627 = vld [vmem:[#allocation6 + $0x690] sm:$0xff]
    %v628 = vld [vmem:[#allocation6 + $0x698] sm:$0xff]
    %v629 = vld [vmem:[#allocation6 + $0x6a0] sm:$0xff]
    %v630 = vld [vmem:[#allocation6 + $0x6a8] sm:$0xff]
    %v631 = vld [vmem:[#allocation6 + $0x6b0] sm:$0xff]
    %v632 = vld [vmem:[#allocation6 + $0x6b8] sm:$0xff]
    %v633 = vld [vmem:[#allocation6 + $0x6c0] sm:$0xff]
    %v634 = vld [vmem:[#allocation6 + $0x6c8] sm:$0xff]
    %v635 = vld [vmem:[#allocation6 + $0x6d0] sm:$0xff]
    %v636 = vld [vmem:[#allocation6 + $0x6d8] sm:$0xff]
    %v637 = vld [vmem:[#allocation6 + $0x6e0] sm:$0xff]
    %v638 = vld [vmem:[#allocation6 + $0x6e8] sm:$0xff]
    %v639 = vld [vmem:[#allocation6 + $0x6f0] sm:$0xff]
    %v640 = vld [vmem:[#allocation6 + $0x6f8] sm:$0xff]
    %v641 = vld [vmem:[#allocation6 + $0x700] sm:$0xff]
    %v642 = vld [vmem:[#allocation6 + $0x708] sm:$0xff]
    %v643 = vld [vmem:[#allocation6 + $0x710] sm:$0xff]
    %v644 = vld [vmem:[#allocation6 + $0x718] sm:$0xff]
    %v645 = vld [vmem:[#allocation6 + $0x720] sm:$0xff]
    %v646 = vld [vmem:[#allocation6 + $0x728] sm:$0xff]
    %v647 = vld [vmem:[#allocation6 + $0x730] sm:$0xff]
    %v648 = vld [vmem:[#allocation6 + $0x738] sm:$0xff]
    %v649 = vld [vmem:[#allocation6 + $0x740] sm:$0xff]
    %v650 = vld [vmem:[#allocation6 + $0x748] sm:$0xff]
    %v651 = vld [vmem:[#allocation6 + $0x750] sm:$0xff]
    %v652 = vld [vmem:[#allocation6 + $0x758] sm:$0xff]
    %v653 = vld [vmem:[#allocation6 + $0x760] sm:$0xff]
    %v654 = vld [vmem:[#allocation6 + $0x768] sm:$0xff]
    %v655 = vld [vmem:[#allocation6 + $0x770] sm:$0xff]
    %v656 = vld [vmem:[#allocation6 + $0x778] sm:$0xff]
    %v657 = vld [vmem:[#allocation6 + $0x780] sm:$0xff]
    %v658 = vld [vmem:[#allocation6 + $0x788] sm:$0xff]
    %v659 = vld [vmem:[#allocation6 + $0x790] sm:$0xff]
    %v660 = vld [vmem:[#allocation6 + $0x798] sm:$0xff]
    %v661 = vld [vmem:[#allocation6 + $0x7a0] sm:$0xff]
    %v662 = vld [vmem:[#allocation6 + $0x7a8] sm:$0xff]
    %v663 = vld [vmem:[#allocation6 + $0x7b0] sm:$0xff]
    %v664 = vld [vmem:[#allocation6 + $0x7b8] sm:$0xff]
    %v665 = vld [vmem:[#allocation6 + $0x7c0] sm:$0xff]
    %v666 = vld [vmem:[#allocation6 + $0x7c8] sm:$0xff]
    %v667 = vld [vmem:[#allocation6 + $0x7d0] sm:$0xff]
    %v668 = vld [vmem:[#allocation6 + $0x7d8] sm:$0xff]
    %v669 = vld [vmem:[#allocation6 + $0x7e0] sm:$0xff]
    %v670 = vld [vmem:[#allocation6 + $0x7e8] sm:$0xff]
    %v671 = vld [vmem:[#allocation6 + $0x7f0] sm:$0xff]
    %v672 = vld [vmem:[#allocation6 + $0x7f8] sm:$0xff]
    %v673 = vld [vmem:[#allocation6 + $0x800] sm:$0xff]
    %v674 = vld [vmem:[#allocation6 + $0x808] sm:$0xff]
    %v675 = vld [vmem:[#allocation6 + $0x810] sm:$0xff]
    %v676 = vld [vmem:[#allocation6 + $0x818] sm:$0xff]
    %v677 = vld [vmem:[#allocation6 + $0x820] sm:$0xff]
    %v678 = vld [vmem:[#allocation6 + $0x828] sm:$0xff]
    %v679 = vld [vmem:[#allocation6 + $0x830] sm:$0xff]
    %v680 = vld [vmem:[#allocation6 + $0x838] sm:$0xff]
    %v681 = vld [vmem:[#allocation6 + $0x840] sm:$0xff]
    %v682 = vld [vmem:[#allocation6 + $0x848] sm:$0xff]
    %v683 = vld [vmem:[#allocation6 + $0x850] sm:$0xff]
    %v684 = vld [vmem:[#allocation6 + $0x858] sm:$0xff]
    %v685 = vld [vmem:[#allocation6 + $0x860] sm:$0xff]
    %v686 = vld [vmem:[#allocation6 + $0x868] sm:$0xff]
    %v687 = vld [vmem:[#allocation6 + $0x870] sm:$0xff]
    %v688 = vld [vmem:[#allocation6 + $0x878] sm:$0xff]
    %v689 = vld [vmem:[#allocation6 + $0x880] sm:$0xff]
    %v690 = vld [vmem:[#allocation6 + $0x888] sm:$0xff]
    %v691 = vld [vmem:[#allocation6 + $0x890] sm:$0xff]
    %v692 = vld [vmem:[#allocation6 + $0x898] sm:$0xff]
    %v693 = vld [vmem:[#allocation6 + $0x8a0] sm:$0xff]
    %v694 = vld [vmem:[#allocation6 + $0x8a8] sm:$0xff]
    %v695 = vld [vmem:[#allocation6 + $0x8b0] sm:$0xff]
    %v696 = vld [vmem:[#allocation6 + $0x8b8] sm:$0xff]
    %v697 = vld [vmem:[#allocation6 + $0x8c0] sm:$0xff]
    %v698 = vld [vmem:[#allocation6 + $0x8c8] sm:$0xff]
    %v699 = vld [vmem:[#allocation6 + $0x8d0] sm:$0xff]
    %v700 = vld [vmem:[#allocation6 + $0x8d8] sm:$0xff]
    %v701 = vld [vmem:[#allocation6 + $0x8e0] sm:$0xff]
    %v702 = vld [vmem:[#allocation6 + $0x8e8] sm:$0xff]
    %v703 = vld [vmem:[#allocation6 + $0x8f0] sm:$0xff]
    %v704 = vld [vmem:[#allocation6 + $0x8f8] sm:$0xff]
    %v705 = vld [vmem:[#allocation6 + $0x900] sm:$0xff]
    %v706 = vld [vmem:[#allocation6 + $0x908] sm:$0xff]
    %v707 = vld [vmem:[#allocation6 + $0x910] sm:$0xff]
    %v708 = vld [vmem:[#allocation6 + $0x918] sm:$0xff]
    %v709 = vld [vmem:[#allocation6 + $0x920] sm:$0xff]
    %v710 = vld [vmem:[#allocation6 + $0x928] sm:$0xff]
    %v711 = vld [vmem:[#allocation6 + $0x930] sm:$0xff]
    %v712 = vld [vmem:[#allocation6 + $0x938] sm:$0xff]
    %v713 = vld [vmem:[#allocation6 + $0x940] sm:$0xff]
    %v714 = vld [vmem:[#allocation6 + $0x948] sm:$0xff]
    %v715 = vld [vmem:[#allocation6 + $0x950] sm:$0xff]
    %v716 = vld [vmem:[#allocation6 + $0x958] sm:$0xff]
    %v717 = vld [vmem:[#allocation6 + $0x960] sm:$0xff]
    %v718 = vld [vmem:[#allocation6 + $0x968] sm:$0xff]
    %v719 = vld [vmem:[#allocation6 + $0x970] sm:$0xff]
    %v720 = vld [vmem:[#allocation6 + $0x978] sm:$0xff]
    %v721 = vld [vmem:[#allocation6 + $0x980] sm:$0xff]
    %v722 = vld [vmem:[#allocation6 + $0x988] sm:$0xff]
    %v723 = vld [vmem:[#allocation6 + $0x990] sm:$0xff]
    %v724 = vld [vmem:[#allocation6 + $0x998] sm:$0xff]
    %v725 = vld [vmem:[#allocation6 + $0x9a0] sm:$0xff]
    %v726 = vld [vmem:[#allocation6 + $0x9a8] sm:$0xff]
    %v727 = vld [vmem:[#allocation6 + $0x9b0] sm:$0xff]
    %v728 = vld [vmem:[#allocation6 + $0x9b8] sm:$0xff]
    %v729 = vld [vmem:[#allocation6 + $0x9c0] sm:$0xff]
    %v730 = vld [vmem:[#allocation6 + $0x9c8] sm:$0xff]
    %v731 = vld [vmem:[#allocation6 + $0x9d0] sm:$0xff]
    %v732 = vld [vmem:[#allocation6 + $0x9d8] sm:$0xff]
    %v733 = vld [vmem:[#allocation6 + $0x9e0] sm:$0xff]
    %v734 = vld [vmem:[#allocation6 + $0x9e8] sm:$0xff]
    %v735 = vld [vmem:[#allocation6 + $0x9f0] sm:$0xff]
    %v736 = vld [vmem:[#allocation6 + $0x9f8] sm:$0xff]
    %v737 = vld [vmem:[#allocation6 + $0xa00] sm:$0xff]
    %v738 = vld [vmem:[#allocation6 + $0xa08] sm:$0xff]
    %v739 = vld [vmem:[#allocation6 + $0xa10] sm:$0xff]
    %v740 = vld [vmem:[#allocation6 + $0xa18] sm:$0xff]
    %v741 = vld [vmem:[#allocation6 + $0xa20] sm:$0xff]
    %v742 = vld [vmem:[#allocation6 + $0xa28] sm:$0xff]
    %v743 = vld [vmem:[#allocation6 + $0xa30] sm:$0xff]
    %v744 = vld [vmem:[#allocation6 + $0xa38] sm:$0xff]
    %v745 = vld [vmem:[#allocation6 + $0xa40] sm:$0xff]
    %v746 = vld [vmem:[#allocation6 + $0xa48] sm:$0xff]
    %v747 = vld [vmem:[#allocation6 + $0xa50] sm:$0xff]
    %v748 = vld [vmem:[#allocation6 + $0xa58] sm:$0xff]
    %v749 = vld [vmem:[#allocation6 + $0xa60] sm:$0xff]
    %v750 = vld [vmem:[#allocation6 + $0xa68] sm:$0xff]
    %v751 = vld [vmem:[#allocation6 + $0xa70] sm:$0xff]
    %v752 = vld [vmem:[#allocation6 + $0xa78] sm:$0xff]
    %v753 = vld [vmem:[#allocation6 + $0xa80] sm:$0xff]
    %v754 = vld [vmem:[#allocation6 + $0xa88] sm:$0xff]
    %v755 = vld [vmem:[#allocation6 + $0xa90] sm:$0xff]
    %v756 = vld [vmem:[#allocation6 + $0xa98] sm:$0xff]
    %v757 = vld [vmem:[#allocation6 + $0xaa0] sm:$0xff]
    %v758 = vld [vmem:[#allocation6 + $0xaa8] sm:$0xff]
    %v759 = vld [vmem:[#allocation6 + $0xab0] sm:$0xff]
    %v760 = vld [vmem:[#allocation6 + $0xab8] sm:$0xff]
    %v761 = vld [vmem:[#allocation6 + $0xac0] sm:$0xff]
    %v762 = vld [vmem:[#allocation6 + $0xac8] sm:$0xff]
    %v763 = vld [vmem:[#allocation6 + $0xad0] sm:$0xff]
    %v764 = vld [vmem:[#allocation6 + $0xad8] sm:$0xff]
    %v765 = vld [vmem:[#allocation6 + $0xae0] sm:$0xff]
    %v766 = vld [vmem:[#allocation6 + $0xae8] sm:$0xff]
    %v767 = vld [vmem:[#allocation6 + $0xaf0] sm:$0xff]
    %v768 = vld [vmem:[#allocation6 + $0xaf8] sm:$0xff]
    %v769 = vld [vmem:[#allocation6 + $0xb00] sm:$0xff]
    %v770 = vld [vmem:[#allocation6 + $0xb08] sm:$0xff]
    %v771 = vld [vmem:[#allocation6 + $0xb10] sm:$0xff]
    %v772 = vld [vmem:[#allocation6 + $0xb18] sm:$0xff]
    %v773 = vld [vmem:[#allocation6 + $0xb20] sm:$0xff]
    %v774 = vld [vmem:[#allocation6 + $0xb28] sm:$0xff]
    %v775 = vld [vmem:[#allocation6 + $0xb30] sm:$0xff]
    %v776 = vld [vmem:[#allocation6 + $0xb38] sm:$0xff]
    %v777 = vld [vmem:[#allocation6 + $0xb40] sm:$0xff]
    %v778 = vld [vmem:[#allocation6 + $0xb48] sm:$0xff]
    %v779 = vld [vmem:[#allocation6 + $0xb50] sm:$0xff]
    %v780 = vld [vmem:[#allocation6 + $0xb58] sm:$0xff]
    %v781 = vld [vmem:[#allocation6 + $0xb60] sm:$0xff]
    %v782 = vld [vmem:[#allocation6 + $0xb68] sm:$0xff]
    %v783 = vld [vmem:[#allocation6 + $0xb70] sm:$0xff]
    %v784 = vld [vmem:[#allocation6 + $0xb78] sm:$0xff]
    %v785 = vld [vmem:[#allocation6 + $0xb80] sm:$0xff]
    %v786 = vld [vmem:[#allocation6 + $0xb88] sm:$0xff]
    %v787 = vld [vmem:[#allocation6 + $0xb90] sm:$0xff]
    %v788 = vld [vmem:[#allocation6 + $0xb98] sm:$0xff]
    %v789 = vld [vmem:[#allocation6 + $0xba0] sm:$0xff]
    %v790 = vld [vmem:[#allocation6 + $0xba8] sm:$0xff]
    %v791 = vld [vmem:[#allocation6 + $0xbb0] sm:$0xff]
    %v792 = vld [vmem:[#allocation6 + $0xbb8] sm:$0xff]
    %v793 = vld [vmem:[#allocation6 + $0xbc0] sm:$0xff]
    %v794 = vld [vmem:[#allocation6 + $0xbc8] sm:$0xff]
    %v795 = vld [vmem:[#allocation6 + $0xbd0] sm:$0xff]
    %v796 = vld [vmem:[#allocation6 + $0xbd8] sm:$0xff]
    %v797 = vld [vmem:[#allocation6 + $0xbe0] sm:$0xff]
    %v798 = vld [vmem:[#allocation6 + $0xbe8] sm:$0xff]
    %v799 = vld [vmem:[#allocation6 + $0xbf0] sm:$0xff]
    %v800 = vld [vmem:[#allocation6 + $0xbf8] sm:$0xff]
    %v801 = vld [vmem:[#allocation6 + $0xc00] sm:$0xff]
    %v802 = vld [vmem:[#allocation6 + $0xc08] sm:$0xff]
    %v803 = vld [vmem:[#allocation6 + $0xc10] sm:$0xff]
    %v804 = vld [vmem:[#allocation6 + $0xc18] sm:$0xff]
    %v805 = vld [vmem:[#allocation6 + $0xc20] sm:$0xff]
    %v806 = vld [vmem:[#allocation6 + $0xc28] sm:$0xff]
    %v807 = vld [vmem:[#allocation6 + $0xc30] sm:$0xff]
    %v808 = vld [vmem:[#allocation6 + $0xc38] sm:$0xff]
    %v809 = vld [vmem:[#allocation6 + $0xc40] sm:$0xff]
    %v810 = vld [vmem:[#allocation6 + $0xc48] sm:$0xff]
    %v811 = vld [vmem:[#allocation6 + $0xc50] sm:$0xff]
    %v812 = vld [vmem:[#allocation6 + $0xc58] sm:$0xff]
    %v813 = vld [vmem:[#allocation6 + $0xc60] sm:$0xff]
    %v814 = vld [vmem:[#allocation6 + $0xc68] sm:$0xff]
    %v815 = vld [vmem:[#allocation6 + $0xc70] sm:$0xff]
    %v816 = vld [vmem:[#allocation6 + $0xc78] sm:$0xff]
    %v817 = vld [vmem:[#allocation6 + $0xc80] sm:$0xff]
    %v818 = vld [vmem:[#allocation6 + $0xc88] sm:$0xff]
    %v819 = vld [vmem:[#allocation6 + $0xc90] sm:$0xff]
    %v820 = vld [vmem:[#allocation6 + $0xc98] sm:$0xff]
    %v821 = vld [vmem:[#allocation6 + $0xca0] sm:$0xff]
    %v822 = vld [vmem:[#allocation6 + $0xca8] sm:$0xff]
    %v823 = vld [vmem:[#allocation6 + $0xcb0] sm:$0xff]
    %v824 = vld [vmem:[#allocation6 + $0xcb8] sm:$0xff]
    %v825 = vld [vmem:[#allocation6 + $0xcc0] sm:$0xff]
    %v826 = vld [vmem:[#allocation6 + $0xcc8] sm:$0xff]
    %v827 = vld [vmem:[#allocation6 + $0xcd0] sm:$0xff]
    %v828 = vld [vmem:[#allocation6 + $0xcd8] sm:$0xff]
    %v829 = vld [vmem:[#allocation6 + $0xce0] sm:$0xff]
    %v830 = vld [vmem:[#allocation6 + $0xce8] sm:$0xff]
    %v831 = vld [vmem:[#allocation6 + $0xcf0] sm:$0xff]
    %v832 = vld [vmem:[#allocation6 + $0xcf8] sm:$0xff]
    %v833 = vld [vmem:[#allocation6 + $0xd00] sm:$0xff]
    %v834 = vld [vmem:[#allocation6 + $0xd08] sm:$0xff]
    %v835 = vld [vmem:[#allocation6 + $0xd10] sm:$0xff]
    %v836 = vld [vmem:[#allocation6 + $0xd18] sm:$0xff]
    %v837 = vld [vmem:[#allocation6 + $0xd20] sm:$0xff]
    %v838 = vld [vmem:[#allocation6 + $0xd28] sm:$0xff]
    %v839 = vld [vmem:[#allocation6 + $0xd30] sm:$0xff]
    %v840 = vld [vmem:[#allocation6 + $0xd38] sm:$0xff]
    %v841 = vld [vmem:[#allocation6 + $0xd40] sm:$0xff]
    %v842 = vld [vmem:[#allocation6 + $0xd48] sm:$0xff]
    %v843 = vld [vmem:[#allocation6 + $0xd50] sm:$0xff]
    %v844 = vld [vmem:[#allocation6 + $0xd58] sm:$0xff]
    %v845 = vld [vmem:[#allocation6 + $0xd60] sm:$0xff]
    %v846 = vld [vmem:[#allocation6 + $0xd68] sm:$0xff]
    %v847 = vld [vmem:[#allocation6 + $0xd70] sm:$0xff]
    %v848 = vld [vmem:[#allocation6 + $0xd78] sm:$0xff]
    %v849 = vld [vmem:[#allocation6 + $0xd80] sm:$0xff]
    %v850 = vld [vmem:[#allocation6 + $0xd88] sm:$0xff]
    %v851 = vld [vmem:[#allocation6 + $0xd90] sm:$0xff]
    %v852 = vld [vmem:[#allocation6 + $0xd98] sm:$0xff]
    %v853 = vld [vmem:[#allocation6 + $0xda0] sm:$0xff]
    %v854 = vld [vmem:[#allocation6 + $0xda8] sm:$0xff]
    %v855 = vld [vmem:[#allocation6 + $0xdb0] sm:$0xff]
    %v856 = vld [vmem:[#allocation6 + $0xdb8] sm:$0xff]
    %v857 = vld [vmem:[#allocation6 + $0xdc0] sm:$0xff]
    %v858 = vld [vmem:[#allocation6 + $0xdc8] sm:$0xff]
    %v859 = vld [vmem:[#allocation6 + $0xdd0] sm:$0xff]
    %v860 = vld [vmem:[#allocation6 + $0xdd8] sm:$0xff]
    %v861 = vld [vmem:[#allocation6 + $0xde0] sm:$0xff]
    %v862 = vld [vmem:[#allocation6 + $0xde8] sm:$0xff]
    %v863 = vld [vmem:[#allocation6 + $0xdf0] sm:$0xff]
    %v864 = vld [vmem:[#allocation6 + $0xdf8] sm:$0xff]
    %v865 = vld [vmem:[#allocation6 + $0xe00] sm:$0xff]
    %v866 = vld [vmem:[#allocation6 + $0xe08] sm:$0xff]
    %v867 = vld [vmem:[#allocation6 + $0xe10] sm:$0xff]
    %v868 = vld [vmem:[#allocation6 + $0xe18] sm:$0xff]
    %v869 = vld [vmem:[#allocation6 + $0xe20] sm:$0xff]
    %v870 = vld [vmem:[#allocation6 + $0xe28] sm:$0xff]
    %v871 = vld [vmem:[#allocation6 + $0xe30] sm:$0xff]
    %v872 = vld [vmem:[#allocation6 + $0xe38] sm:$0xff]
    %v873 = vld [vmem:[#allocation6 + $0xe40] sm:$0xff]
    %v874 = vld [vmem:[#allocation6 + $0xe48] sm:$0xff]
    %v875 = vld [vmem:[#allocation6 + $0xe50] sm:$0xff]
    %v876 = vld [vmem:[#allocation6 + $0xe58] sm:$0xff]
    %v877 = vld [vmem:[#allocation6 + $0xe60] sm:$0xff]
    %v878 = vld [vmem:[#allocation6 + $0xe68] sm:$0xff]
    %v879 = vld [vmem:[#allocation6 + $0xe70] sm:$0xff]
    %v880 = vld [vmem:[#allocation6 + $0xe78] sm:$0xff]
    %v881 = vld [vmem:[#allocation6 + $0xe80] sm:$0xff]
    %v882 = vld [vmem:[#allocation6 + $0xe88] sm:$0xff]
    %v883 = vld [vmem:[#allocation6 + $0xe90] sm:$0xff]
    %v884 = vld [vmem:[#allocation6 + $0xe98] sm:$0xff]
    %v885 = vld [vmem:[#allocation6 + $0xea0] sm:$0xff]
    %v886 = vld [vmem:[#allocation6 + $0xea8] sm:$0xff]
    %v887 = vld [vmem:[#allocation6 + $0xeb0] sm:$0xff]
    %v888 = vld [vmem:[#allocation6 + $0xeb8] sm:$0xff]
    %v889 = vld [vmem:[#allocation6 + $0xec0] sm:$0xff]
    %v890 = vld [vmem:[#allocation6 + $0xec8] sm:$0xff]
    %v891 = vld [vmem:[#allocation6 + $0xed0] sm:$0xff]
    %v892 = vld [vmem:[#allocation6 + $0xed8] sm:$0xff]
    %v893 = vld [vmem:[#allocation6 + $0xee0] sm:$0xff]
    %v894 = vld [vmem:[#allocation6 + $0xee8] sm:$0xff]
    %v895 = vld [vmem:[#allocation6 + $0xef0] sm:$0xff]
    %v896 = vld [vmem:[#allocation6 + $0xef8] sm:$0xff]
    %v897 = vld [vmem:[#allocation6 + $0xf00] sm:$0xff]
    %v898 = vld [vmem:[#allocation6 + $0xf08] sm:$0xff]
    %v899 = vld [vmem:[#allocation6 + $0xf10] sm:$0xff]
    %v900 = vld [vmem:[#allocation6 + $0xf18] sm:$0xff]
    %v901 = vld [vmem:[#allocation6 + $0xf20] sm:$0xff]
    %v902 = vld [vmem:[#allocation6 + $0xf28] sm:$0xff]
    %v903 = vld [vmem:[#allocation6 + $0xf30] sm:$0xff]
    %v904 = vld [vmem:[#allocation6 + $0xf38] sm:$0xff]
    %v905 = vld [vmem:[#allocation6 + $0xf40] sm:$0xff]
    %v906 = vld [vmem:[#allocation6 + $0xf48] sm:$0xff]
    %v907 = vld [vmem:[#allocation6 + $0xf50] sm:$0xff]
    %v908 = vld [vmem:[#allocation6 + $0xf58] sm:$0xff]
    %v909 = vld [vmem:[#allocation6 + $0xf60] sm:$0xff]
    %v910 = vld [vmem:[#allocation6 + $0xf68] sm:$0xff]
    %v911 = vld [vmem:[#allocation6 + $0xf70] sm:$0xff]
    %v912 = vld [vmem:[#allocation6 + $0xf78] sm:$0xff]
    %v913 = vld [vmem:[#allocation6 + $0xf80] sm:$0xff]
    %v914 = vld [vmem:[#allocation6 + $0xf88] sm:$0xff]
    %v915 = vld [vmem:[#allocation6 + $0xf90] sm:$0xff]
    %v916 = vld [vmem:[#allocation6 + $0xf98] sm:$0xff]
    %v917 = vld [vmem:[#allocation6 + $0xfa0] sm:$0xff]
    %v918 = vld [vmem:[#allocation6 + $0xfa8] sm:$0xff]
    %v919 = vld [vmem:[#allocation6 + $0xfb0] sm:$0xff]
    %v920 = vld [vmem:[#allocation6 + $0xfb8] sm:$0xff]
    %v921 = vld [vmem:[#allocation6 + $0xfc0] sm:$0xff]
    %v922 = vld [vmem:[#allocation6 + $0xfc8] sm:$0xff]
    %v923 = vld [vmem:[#allocation6 + $0xfd0] sm:$0xff]
    %v924 = vld [vmem:[#allocation6 + $0xfd8] sm:$0xff]
    %v925 = vld [vmem:[#allocation6 + $0xfe0] sm:$0xff]
    %v926 = vld [vmem:[#allocation6 + $0xfe8] sm:$0xff]
    %v927 = vld [vmem:[#allocation6 + $0xff0] sm:$0xff]
    %v928 = vld [vmem:[#allocation6 + $0xff8] sm:$0xff]
    %v929 = vld [vmem:[#allocation7] sm:$0xff]
    %v931 = vlaneseq
    %v932 = vshrl.u32 %v931, 7
    %v933 = vsub.s32 0, %v932
    %v934 = vrot.slane %v929, %v933
    %v935 = vlaneseq
    %v936 = vshrl.u32 %v935, 7
    %v937 = vsub.s32 1, %v936
    %v938 = vrot.slane %v929, %v937
    %v939 = vlaneseq
    %v940 = vshrl.u32 %v939, 7
    %v941 = vsub.s32 2, %v940
    %v942 = vrot.slane %v929, %v941
    %v943 = vlaneseq
    %v944 = vshrl.u32 %v943, 7
    %v945 = vsub.s32 3, %v944
    %v946 = vrot.slane %v929, %v945
    %v947 = vlaneseq
    %v948 = vshrl.u32 %v947, 7
    %v949 = vsub.s32 4, %v948
    %v950 = vrot.slane %v929, %v949
    %v951 = vlaneseq
    %v952 = vshrl.u32 %v951, 7
    %v953 = vsub.s32 5, %v952
    %v954 = vrot.slane %v929, %v953
    %v955 = vlaneseq
    %v956 = vshrl.u32 %v955, 7
    %v957 = vsub.s32 6, %v956
    %v958 = vrot.slane %v929, %v957
    %v959 = vlaneseq
    %v960 = vshrl.u32 %v959, 7
    %v961 = vsub.s32 7, %v960
    %v962 = vrot.slane %v929, %v961
    %v1483 = vunpack.c.l.b16 %v417
    %v1484 = vunpack.c.h.b16 %v417
    %v1485 = vunpack.c.l.b16 %v418
    %v1486 = vunpack.c.h.b16 %v418
    %v1487 = vunpack.c.l.b16 %v419
    %v1488 = vunpack.c.h.b16 %v419
    %v1489 = vunpack.c.l.b16 %v420
    %v1490 = vunpack.c.h.b16 %v420
    %v1491 = vunpack.c.l.b16 %v421
    %v1492 = vunpack.c.h.b16 %v421
    %v1493 = vunpack.c.l.b16 %v422
    %v1494 = vunpack.c.h.b16 %v422
    %v1495 = vunpack.c.l.b16 %v423
    %v1496 = vunpack.c.h.b16 %v423
    %v1497 = vunpack.c.l.b16 %v424
    %v1498 = vunpack.c.h.b16 %v424
    %v1499 = vunpack.c.l.b16 %v425
    %v1500 = vunpack.c.h.b16 %v425
    %v1501 = vunpack.c.l.b16 %v426
    %v1502 = vunpack.c.h.b16 %v426
    %v1503 = vunpack.c.l.b16 %v427
    %v1504 = vunpack.c.h.b16 %v427
    %v1505 = vunpack.c.l.b16 %v428
    %v1506 = vunpack.c.h.b16 %v428
    %v1507 = vunpack.c.l.b16 %v429
    %v1508 = vunpack.c.h.b16 %v429
    %v1509 = vunpack.c.l.b16 %v430
    %v1510 = vunpack.c.h.b16 %v430
    %v1511 = vunpack.c.l.b16 %v431
    %v1512 = vunpack.c.h.b16 %v431
    %v1513 = vunpack.c.l.b16 %v432
    %v1514 = vunpack.c.h.b16 %v432
    %v1515 = vunpack.c.l.b16 %v433
    %v1516 = vunpack.c.h.b16 %v433
    %v1517 = vunpack.c.l.b16 %v434
    %v1518 = vunpack.c.h.b16 %v434
    %v1519 = vunpack.c.l.b16 %v435
    %v1520 = vunpack.c.h.b16 %v435
    %v1521 = vunpack.c.l.b16 %v436
    %v1522 = vunpack.c.h.b16 %v436
    %v1523 = vunpack.c.l.b16 %v437
    %v1524 = vunpack.c.h.b16 %v437
    %v1525 = vunpack.c.l.b16 %v438
    %v1526 = vunpack.c.h.b16 %v438
    %v1527 = vunpack.c.l.b16 %v439
    %v1528 = vunpack.c.h.b16 %v439
    %v1529 = vunpack.c.l.b16 %v440
    %v1530 = vunpack.c.h.b16 %v440
    %v1531 = vunpack.c.l.b16 %v441
    %v1532 = vunpack.c.h.b16 %v441
    %v1533 = vunpack.c.l.b16 %v442
    %v1534 = vunpack.c.h.b16 %v442
    %v1535 = vunpack.c.l.b16 %v443
    %v1536 = vunpack.c.h.b16 %v443
    %v1537 = vunpack.c.l.b16 %v444
    %v1538 = vunpack.c.h.b16 %v444
    %v1539 = vunpack.c.l.b16 %v445
    %v1540 = vunpack.c.h.b16 %v445
    %v1541 = vunpack.c.l.b16 %v446
    %v1542 = vunpack.c.h.b16 %v446
    %v1543 = vunpack.c.l.b16 %v447
    %v1544 = vunpack.c.h.b16 %v447
    %v1545 = vunpack.c.l.b16 %v448
    %v1546 = vunpack.c.h.b16 %v448
    %v1547 = vunpack.c.l.b16 %v449
    %v1548 = vunpack.c.h.b16 %v449
    %v1549 = vunpack.c.l.b16 %v450
    %v1550 = vunpack.c.h.b16 %v450
    %v1551 = vunpack.c.l.b16 %v451
    %v1552 = vunpack.c.h.b16 %v451
    %v1553 = vunpack.c.l.b16 %v452
    %v1554 = vunpack.c.h.b16 %v452
    %v1555 = vunpack.c.l.b16 %v453
    %v1556 = vunpack.c.h.b16 %v453
    %v1557 = vunpack.c.l.b16 %v454
    %v1558 = vunpack.c.h.b16 %v454
    %v1559 = vunpack.c.l.b16 %v455
    %v1560 = vunpack.c.h.b16 %v455
    %v1561 = vunpack.c.l.b16 %v456
    %v1562 = vunpack.c.h.b16 %v456
    %v1563 = vunpack.c.l.b16 %v457
    %v1564 = vunpack.c.h.b16 %v457
    %v1565 = vunpack.c.l.b16 %v458
    %v1566 = vunpack.c.h.b16 %v458
    %v1567 = vunpack.c.l.b16 %v459
    %v1568 = vunpack.c.h.b16 %v459
    %v1569 = vunpack.c.l.b16 %v460
    %v1570 = vunpack.c.h.b16 %v460
    %v1571 = vunpack.c.l.b16 %v461
    %v1572 = vunpack.c.h.b16 %v461
    %v1573 = vunpack.c.l.b16 %v462
    %v1574 = vunpack.c.h.b16 %v462
    %v1575 = vunpack.c.l.b16 %v463
    %v1576 = vunpack.c.h.b16 %v463
    %v1577 = vunpack.c.l.b16 %v464
    %v1578 = vunpack.c.h.b16 %v464
    %v1579 = vunpack.c.l.b16 %v465
    %v1580 = vunpack.c.h.b16 %v465
    %v1581 = vunpack.c.l.b16 %v466
    %v1582 = vunpack.c.h.b16 %v466
    %v1583 = vunpack.c.l.b16 %v467
    %v1584 = vunpack.c.h.b16 %v467
    %v1585 = vunpack.c.l.b16 %v468
    %v1586 = vunpack.c.h.b16 %v468
    %v1587 = vunpack.c.l.b16 %v469
    %v1588 = vunpack.c.h.b16 %v469
    %v1589 = vunpack.c.l.b16 %v470
    %v1590 = vunpack.c.h.b16 %v470
    %v1591 = vunpack.c.l.b16 %v471
    %v1592 = vunpack.c.h.b16 %v471
    %v1593 = vunpack.c.l.b16 %v472
    %v1594 = vunpack.c.h.b16 %v472
    %v1595 = vunpack.c.l.b16 %v473
    %v1596 = vunpack.c.h.b16 %v473
    %v1597 = vunpack.c.l.b16 %v474
    %v1598 = vunpack.c.h.b16 %v474
    %v1599 = vunpack.c.l.b16 %v475
    %v1600 = vunpack.c.h.b16 %v475
    %v1601 = vunpack.c.l.b16 %v476
    %v1602 = vunpack.c.h.b16 %v476
    %v1603 = vunpack.c.l.b16 %v477
    %v1604 = vunpack.c.h.b16 %v477
    %v1605 = vunpack.c.l.b16 %v478
    %v1606 = vunpack.c.h.b16 %v478
    %v1607 = vunpack.c.l.b16 %v479
    %v1608 = vunpack.c.h.b16 %v479
    %v1609 = vunpack.c.l.b16 %v480
    %v1610 = vunpack.c.h.b16 %v480
    %v1611 = vunpack.c.l.b16 %v481
    %v1612 = vunpack.c.h.b16 %v481
    %v1613 = vunpack.c.l.b16 %v482
    %v1614 = vunpack.c.h.b16 %v482
    %v1615 = vunpack.c.l.b16 %v483
    %v1616 = vunpack.c.h.b16 %v483
    %v1617 = vunpack.c.l.b16 %v484
    %v1618 = vunpack.c.h.b16 %v484
    %v1619 = vunpack.c.l.b16 %v485
    %v1620 = vunpack.c.h.b16 %v485
    %v1621 = vunpack.c.l.b16 %v486
    %v1622 = vunpack.c.h.b16 %v486
    %v1623 = vunpack.c.l.b16 %v487
    %v1624 = vunpack.c.h.b16 %v487
    %v1625 = vunpack.c.l.b16 %v488
    %v1626 = vunpack.c.h.b16 %v488
    %v1627 = vunpack.c.l.b16 %v489
    %v1628 = vunpack.c.h.b16 %v489
    %v1629 = vunpack.c.l.b16 %v490
    %v1630 = vunpack.c.h.b16 %v490
    %v1631 = vunpack.c.l.b16 %v491
    %v1632 = vunpack.c.h.b16 %v491
    %v1633 = vunpack.c.l.b16 %v492
    %v1634 = vunpack.c.h.b16 %v492
    %v1635 = vunpack.c.l.b16 %v493
    %v1636 = vunpack.c.h.b16 %v493
    %v1637 = vunpack.c.l.b16 %v494
    %v1638 = vunpack.c.h.b16 %v494
    %v1639 = vunpack.c.l.b16 %v495
    %v1640 = vunpack.c.h.b16 %v495
    %v1641 = vunpack.c.l.b16 %v496
    %v1642 = vunpack.c.h.b16 %v496
    %v1643 = vunpack.c.l.b16 %v497
    %v1644 = vunpack.c.h.b16 %v497
    %v1645 = vunpack.c.l.b16 %v498
    %v1646 = vunpack.c.h.b16 %v498
    %v1647 = vunpack.c.l.b16 %v499
    %v1648 = vunpack.c.h.b16 %v499
    %v1649 = vunpack.c.l.b16 %v500
    %v1650 = vunpack.c.h.b16 %v500
    %v1651 = vunpack.c.l.b16 %v501
    %v1652 = vunpack.c.h.b16 %v501
    %v1653 = vunpack.c.l.b16 %v502
    %v1654 = vunpack.c.h.b16 %v502
    %v1655 = vunpack.c.l.b16 %v503
    %v1656 = vunpack.c.h.b16 %v503
    %v1657 = vunpack.c.l.b16 %v504
    %v1658 = vunpack.c.h.b16 %v504
    %v1659 = vunpack.c.l.b16 %v505
    %v1660 = vunpack.c.h.b16 %v505
    %v1661 = vunpack.c.l.b16 %v506
    %v1662 = vunpack.c.h.b16 %v506
    %v1663 = vunpack.c.l.b16 %v507
    %v1664 = vunpack.c.h.b16 %v507
    %v1665 = vunpack.c.l.b16 %v508
    %v1666 = vunpack.c.h.b16 %v508
    %v1667 = vunpack.c.l.b16 %v509
    %v1668 = vunpack.c.h.b16 %v509
    %v1669 = vunpack.c.l.b16 %v510
    %v1670 = vunpack.c.h.b16 %v510
    %v1671 = vunpack.c.l.b16 %v511
    %v1672 = vunpack.c.h.b16 %v511
    %v1673 = vunpack.c.l.b16 %v512
    %v1674 = vunpack.c.h.b16 %v512
    %v1675 = vunpack.c.l.b16 %v513
    %v1676 = vunpack.c.h.b16 %v513
    %v1677 = vunpack.c.l.b16 %v514
    %v1678 = vunpack.c.h.b16 %v514
    %v1679 = vunpack.c.l.b16 %v515
    %v1680 = vunpack.c.h.b16 %v515
    %v1681 = vunpack.c.l.b16 %v516
    %v1682 = vunpack.c.h.b16 %v516
    %v1683 = vunpack.c.l.b16 %v517
    %v1684 = vunpack.c.h.b16 %v517
    %v1685 = vunpack.c.l.b16 %v518
    %v1686 = vunpack.c.h.b16 %v518
    %v1687 = vunpack.c.l.b16 %v519
    %v1688 = vunpack.c.h.b16 %v519
    %v1689 = vunpack.c.l.b16 %v520
    %v1690 = vunpack.c.h.b16 %v520
    %v1691 = vunpack.c.l.b16 %v521
    %v1692 = vunpack.c.h.b16 %v521
    %v1693 = vunpack.c.l.b16 %v522
    %v1694 = vunpack.c.h.b16 %v522
    %v1695 = vunpack.c.l.b16 %v523
    %v1696 = vunpack.c.h.b16 %v523
    %v1697 = vunpack.c.l.b16 %v524
    %v1698 = vunpack.c.h.b16 %v524
    %v1699 = vunpack.c.l.b16 %v525
    %v1700 = vunpack.c.h.b16 %v525
    %v1701 = vunpack.c.l.b16 %v526
    %v1702 = vunpack.c.h.b16 %v526
    %v1703 = vunpack.c.l.b16 %v527
    %v1704 = vunpack.c.h.b16 %v527
    %v1705 = vunpack.c.l.b16 %v528
    %v1706 = vunpack.c.h.b16 %v528
    %v1707 = vunpack.c.l.b16 %v529
    %v1708 = vunpack.c.h.b16 %v529
    %v1709 = vunpack.c.l.b16 %v530
    %v1710 = vunpack.c.h.b16 %v530
    %v1711 = vunpack.c.l.b16 %v531
    %v1712 = vunpack.c.h.b16 %v531
    %v1713 = vunpack.c.l.b16 %v532
    %v1714 = vunpack.c.h.b16 %v532
    %v1715 = vunpack.c.l.b16 %v533
    %v1716 = vunpack.c.h.b16 %v533
    %v1717 = vunpack.c.l.b16 %v534
    %v1718 = vunpack.c.h.b16 %v534
    %v1719 = vunpack.c.l.b16 %v535
    %v1720 = vunpack.c.h.b16 %v535
    %v1721 = vunpack.c.l.b16 %v536
    %v1722 = vunpack.c.h.b16 %v536
    %v1723 = vunpack.c.l.b16 %v537
    %v1724 = vunpack.c.h.b16 %v537
    %v1725 = vunpack.c.l.b16 %v538
    %v1726 = vunpack.c.h.b16 %v538
    %v1727 = vunpack.c.l.b16 %v539
    %v1728 = vunpack.c.h.b16 %v539
    %v1729 = vunpack.c.l.b16 %v540
    %v1730 = vunpack.c.h.b16 %v540
    %v1731 = vunpack.c.l.b16 %v541
    %v1732 = vunpack.c.h.b16 %v541
    %v1733 = vunpack.c.l.b16 %v542
    %v1734 = vunpack.c.h.b16 %v542
    %v1735 = vunpack.c.l.b16 %v543
    %v1736 = vunpack.c.h.b16 %v543
    %v1737 = vunpack.c.l.b16 %v544
    %v1738 = vunpack.c.h.b16 %v544
    %v1739 = vunpack.c.l.b16 %v545
    %v1740 = vunpack.c.h.b16 %v545
    %v1741 = vunpack.c.l.b16 %v546
    %v1742 = vunpack.c.h.b16 %v546
    %v1743 = vunpack.c.l.b16 %v547
    %v1744 = vunpack.c.h.b16 %v547
    %v1745 = vunpack.c.l.b16 %v548
    %v1746 = vunpack.c.h.b16 %v548
    %v1747 = vunpack.c.l.b16 %v549
    %v1748 = vunpack.c.h.b16 %v549
    %v1749 = vunpack.c.l.b16 %v550
    %v1750 = vunpack.c.h.b16 %v550
    %v1751 = vunpack.c.l.b16 %v551
    %v1752 = vunpack.c.h.b16 %v551
    %v1753 = vunpack.c.l.b16 %v552
    %v1754 = vunpack.c.h.b16 %v552
    %v1755 = vunpack.c.l.b16 %v553
    %v1756 = vunpack.c.h.b16 %v553
    %v1757 = vunpack.c.l.b16 %v554
    %v1758 = vunpack.c.h.b16 %v554
    %v1759 = vunpack.c.l.b16 %v555
    %v1760 = vunpack.c.h.b16 %v555
    %v1761 = vunpack.c.l.b16 %v556
    %v1762 = vunpack.c.h.b16 %v556
    %v1763 = vunpack.c.l.b16 %v557
    %v1764 = vunpack.c.h.b16 %v557
    %v1765 = vunpack.c.l.b16 %v558
    %v1766 = vunpack.c.h.b16 %v558
    %v1767 = vunpack.c.l.b16 %v559
    %v1768 = vunpack.c.h.b16 %v559
    %v1769 = vunpack.c.l.b16 %v560
    %v1770 = vunpack.c.h.b16 %v560
    %v1771 = vunpack.c.l.b16 %v561
    %v1772 = vunpack.c.h.b16 %v561
    %v1773 = vunpack.c.l.b16 %v562
    %v1774 = vunpack.c.h.b16 %v562
    %v1775 = vunpack.c.l.b16 %v563
    %v1776 = vunpack.c.h.b16 %v563
    %v1777 = vunpack.c.l.b16 %v564
    %v1778 = vunpack.c.h.b16 %v564
    %v1779 = vunpack.c.l.b16 %v565
    %v1780 = vunpack.c.h.b16 %v565
    %v1781 = vunpack.c.l.b16 %v566
    %v1782 = vunpack.c.h.b16 %v566
    %v1783 = vunpack.c.l.b16 %v567
    %v1784 = vunpack.c.h.b16 %v567
    %v1785 = vunpack.c.l.b16 %v568
    %v1786 = vunpack.c.h.b16 %v568
    %v1787 = vunpack.c.l.b16 %v569
    %v1788 = vunpack.c.h.b16 %v569
    %v1789 = vunpack.c.l.b16 %v570
    %v1790 = vunpack.c.h.b16 %v570
    %v1791 = vunpack.c.l.b16 %v571
    %v1792 = vunpack.c.h.b16 %v571
    %v1793 = vunpack.c.l.b16 %v572
    %v1794 = vunpack.c.h.b16 %v572
    %v1795 = vunpack.c.l.b16 %v573
    %v1796 = vunpack.c.h.b16 %v573
    %v1797 = vunpack.c.l.b16 %v574
    %v1798 = vunpack.c.h.b16 %v574
    %v1799 = vunpack.c.l.b16 %v575
    %v1800 = vunpack.c.h.b16 %v575
    %v1801 = vunpack.c.l.b16 %v576
    %v1802 = vunpack.c.h.b16 %v576
    %v1803 = vunpack.c.l.b16 %v577
    %v1804 = vunpack.c.h.b16 %v577
    %v1805 = vunpack.c.l.b16 %v578
    %v1806 = vunpack.c.h.b16 %v578
    %v1807 = vunpack.c.l.b16 %v579
    %v1808 = vunpack.c.h.b16 %v579
    %v1809 = vunpack.c.l.b16 %v580
    %v1810 = vunpack.c.h.b16 %v580
    %v1811 = vunpack.c.l.b16 %v581
    %v1812 = vunpack.c.h.b16 %v581
    %v1813 = vunpack.c.l.b16 %v582
    %v1814 = vunpack.c.h.b16 %v582
    %v1815 = vunpack.c.l.b16 %v583
    %v1816 = vunpack.c.h.b16 %v583
    %v1817 = vunpack.c.l.b16 %v584
    %v1818 = vunpack.c.h.b16 %v584
    %v1819 = vunpack.c.l.b16 %v585
    %v1820 = vunpack.c.h.b16 %v585
    %v1821 = vunpack.c.l.b16 %v586
    %v1822 = vunpack.c.h.b16 %v586
    %v1823 = vunpack.c.l.b16 %v587
    %v1824 = vunpack.c.h.b16 %v587
    %v1825 = vunpack.c.l.b16 %v588
    %v1826 = vunpack.c.h.b16 %v588
    %v1827 = vunpack.c.l.b16 %v589
    %v1828 = vunpack.c.h.b16 %v589
    %v1829 = vunpack.c.l.b16 %v590
    %v1830 = vunpack.c.h.b16 %v590
    %v1831 = vunpack.c.l.b16 %v591
    %v1832 = vunpack.c.h.b16 %v591
    %v1833 = vunpack.c.l.b16 %v592
    %v1834 = vunpack.c.h.b16 %v592
    %v1835 = vunpack.c.l.b16 %v593
    %v1836 = vunpack.c.h.b16 %v593
    %v1837 = vunpack.c.l.b16 %v594
    %v1838 = vunpack.c.h.b16 %v594
    %v1839 = vunpack.c.l.b16 %v595
    %v1840 = vunpack.c.h.b16 %v595
    %v1841 = vunpack.c.l.b16 %v596
    %v1842 = vunpack.c.h.b16 %v596
    %v1843 = vunpack.c.l.b16 %v597
    %v1844 = vunpack.c.h.b16 %v597
    %v1845 = vunpack.c.l.b16 %v598
    %v1846 = vunpack.c.h.b16 %v598
    %v1847 = vunpack.c.l.b16 %v599
    %v1848 = vunpack.c.h.b16 %v599
    %v1849 = vunpack.c.l.b16 %v600
    %v1850 = vunpack.c.h.b16 %v600
    %v1851 = vunpack.c.l.b16 %v601
    %v1852 = vunpack.c.h.b16 %v601
    %v1853 = vunpack.c.l.b16 %v602
    %v1854 = vunpack.c.h.b16 %v602
    %v1855 = vunpack.c.l.b16 %v603
    %v1856 = vunpack.c.h.b16 %v603
    %v1857 = vunpack.c.l.b16 %v604
    %v1858 = vunpack.c.h.b16 %v604
    %v1859 = vunpack.c.l.b16 %v605
    %v1860 = vunpack.c.h.b16 %v605
    %v1861 = vunpack.c.l.b16 %v606
    %v1862 = vunpack.c.h.b16 %v606
    %v1863 = vunpack.c.l.b16 %v607
    %v1864 = vunpack.c.h.b16 %v607
    %v1865 = vunpack.c.l.b16 %v608
    %v1866 = vunpack.c.h.b16 %v608
    %v1867 = vunpack.c.l.b16 %v609
    %v1868 = vunpack.c.h.b16 %v609
    %v1869 = vunpack.c.l.b16 %v610
    %v1870 = vunpack.c.h.b16 %v610
    %v1871 = vunpack.c.l.b16 %v611
    %v1872 = vunpack.c.h.b16 %v611
    %v1873 = vunpack.c.l.b16 %v612
    %v1874 = vunpack.c.h.b16 %v612
    %v1875 = vunpack.c.l.b16 %v613
    %v1876 = vunpack.c.h.b16 %v613
    %v1877 = vunpack.c.l.b16 %v614
    %v1878 = vunpack.c.h.b16 %v614
    %v1879 = vunpack.c.l.b16 %v615
    %v1880 = vunpack.c.h.b16 %v615
    %v1881 = vunpack.c.l.b16 %v616
    %v1882 = vunpack.c.h.b16 %v616
    %v1883 = vunpack.c.l.b16 %v617
    %v1884 = vunpack.c.h.b16 %v617
    %v1885 = vunpack.c.l.b16 %v618
    %v1886 = vunpack.c.h.b16 %v618
    %v1887 = vunpack.c.l.b16 %v619
    %v1888 = vunpack.c.h.b16 %v619
    %v1889 = vunpack.c.l.b16 %v620
    %v1890 = vunpack.c.h.b16 %v620
    %v1891 = vunpack.c.l.b16 %v621
    %v1892 = vunpack.c.h.b16 %v621
    %v1893 = vunpack.c.l.b16 %v622
    %v1894 = vunpack.c.h.b16 %v622
    %v1895 = vunpack.c.l.b16 %v623
    %v1896 = vunpack.c.h.b16 %v623
    %v1897 = vunpack.c.l.b16 %v624
    %v1898 = vunpack.c.h.b16 %v624
    %v1899 = vunpack.c.l.b16 %v625
    %v1900 = vunpack.c.h.b16 %v625
    %v1901 = vunpack.c.l.b16 %v626
    %v1902 = vunpack.c.h.b16 %v626
    %v1903 = vunpack.c.l.b16 %v627
    %v1904 = vunpack.c.h.b16 %v627
    %v1905 = vunpack.c.l.b16 %v628
    %v1906 = vunpack.c.h.b16 %v628
    %v1907 = vunpack.c.l.b16 %v629
    %v1908 = vunpack.c.h.b16 %v629
    %v1909 = vunpack.c.l.b16 %v630
    %v1910 = vunpack.c.h.b16 %v630
    %v1911 = vunpack.c.l.b16 %v631
    %v1912 = vunpack.c.h.b16 %v631
    %v1913 = vunpack.c.l.b16 %v632
    %v1914 = vunpack.c.h.b16 %v632
    %v1915 = vunpack.c.l.b16 %v633
    %v1916 = vunpack.c.h.b16 %v633
    %v1917 = vunpack.c.l.b16 %v634
    %v1918 = vunpack.c.h.b16 %v634
    %v1919 = vunpack.c.l.b16 %v635
    %v1920 = vunpack.c.h.b16 %v635
    %v1921 = vunpack.c.l.b16 %v636
    %v1922 = vunpack.c.h.b16 %v636
    %v1923 = vunpack.c.l.b16 %v637
    %v1924 = vunpack.c.h.b16 %v637
    %v1925 = vunpack.c.l.b16 %v638
    %v1926 = vunpack.c.h.b16 %v638
    %v1927 = vunpack.c.l.b16 %v639
    %v1928 = vunpack.c.h.b16 %v639
    %v1929 = vunpack.c.l.b16 %v640
    %v1930 = vunpack.c.h.b16 %v640
    %v1931 = vunpack.c.l.b16 %v641
    %v1932 = vunpack.c.h.b16 %v641
    %v1933 = vunpack.c.l.b16 %v642
    %v1934 = vunpack.c.h.b16 %v642
    %v1935 = vunpack.c.l.b16 %v643
    %v1936 = vunpack.c.h.b16 %v643
    %v1937 = vunpack.c.l.b16 %v644
    %v1938 = vunpack.c.h.b16 %v644
    %v1939 = vunpack.c.l.b16 %v645
    %v1940 = vunpack.c.h.b16 %v645
    %v1941 = vunpack.c.l.b16 %v646
    %v1942 = vunpack.c.h.b16 %v646
    %v1943 = vunpack.c.l.b16 %v647
    %v1944 = vunpack.c.h.b16 %v647
    %v1945 = vunpack.c.l.b16 %v648
    %v1946 = vunpack.c.h.b16 %v648
    %v1947 = vunpack.c.l.b16 %v649
    %v1948 = vunpack.c.h.b16 %v649
    %v1949 = vunpack.c.l.b16 %v650
    %v1950 = vunpack.c.h.b16 %v650
    %v1951 = vunpack.c.l.b16 %v651
    %v1952 = vunpack.c.h.b16 %v651
    %v1953 = vunpack.c.l.b16 %v652
    %v1954 = vunpack.c.h.b16 %v652
    %v1955 = vunpack.c.l.b16 %v653
    %v1956 = vunpack.c.h.b16 %v653
    %v1957 = vunpack.c.l.b16 %v654
    %v1958 = vunpack.c.h.b16 %v654
    %v1959 = vunpack.c.l.b16 %v655
    %v1960 = vunpack.c.h.b16 %v655
    %v1961 = vunpack.c.l.b16 %v656
    %v1962 = vunpack.c.h.b16 %v656
    %v1963 = vunpack.c.l.b16 %v657
    %v1964 = vunpack.c.h.b16 %v657
    %v1965 = vunpack.c.l.b16 %v658
    %v1966 = vunpack.c.h.b16 %v658
    %v1967 = vunpack.c.l.b16 %v659
    %v1968 = vunpack.c.h.b16 %v659
    %v1969 = vunpack.c.l.b16 %v660
    %v1970 = vunpack.c.h.b16 %v660
    %v1971 = vunpack.c.l.b16 %v661
    %v1972 = vunpack.c.h.b16 %v661
    %v1973 = vunpack.c.l.b16 %v662
    %v1974 = vunpack.c.h.b16 %v662
    %v1975 = vunpack.c.l.b16 %v663
    %v1976 = vunpack.c.h.b16 %v663
    %v1977 = vunpack.c.l.b16 %v664
    %v1978 = vunpack.c.h.b16 %v664
    %v1979 = vunpack.c.l.b16 %v665
    %v1980 = vunpack.c.h.b16 %v665
    %v1981 = vunpack.c.l.b16 %v666
    %v1982 = vunpack.c.h.b16 %v666
    %v1983 = vunpack.c.l.b16 %v667
    %v1984 = vunpack.c.h.b16 %v667
    %v1985 = vunpack.c.l.b16 %v668
    %v1986 = vunpack.c.h.b16 %v668
    %v1987 = vunpack.c.l.b16 %v669
    %v1988 = vunpack.c.h.b16 %v669
    %v1989 = vunpack.c.l.b16 %v670
    %v1990 = vunpack.c.h.b16 %v670
    %v1991 = vunpack.c.l.b16 %v671
    %v1992 = vunpack.c.h.b16 %v671
    %v1993 = vunpack.c.l.b16 %v672
    %v1994 = vunpack.c.h.b16 %v672
    %v1995 = vunpack.c.l.b16 %v673
    %v1996 = vunpack.c.h.b16 %v673
    %v1997 = vunpack.c.l.b16 %v674
    %v1998 = vunpack.c.h.b16 %v674
    %v1999 = vunpack.c.l.b16 %v675
    %v2000 = vunpack.c.h.b16 %v675
    %v2001 = vunpack.c.l.b16 %v676
    %v2002 = vunpack.c.h.b16 %v676
    %v2003 = vunpack.c.l.b16 %v677
    %v2004 = vunpack.c.h.b16 %v677
    %v2005 = vunpack.c.l.b16 %v678
    %v2006 = vunpack.c.h.b16 %v678
    %v2007 = vunpack.c.l.b16 %v679
    %v2008 = vunpack.c.h.b16 %v679
    %v2009 = vunpack.c.l.b16 %v680
    %v2010 = vunpack.c.h.b16 %v680
    %v2011 = vunpack.c.l.b16 %v681
    %v2012 = vunpack.c.h.b16 %v681
    %v2013 = vunpack.c.l.b16 %v682
    %v2014 = vunpack.c.h.b16 %v682
    %v2015 = vunpack.c.l.b16 %v683
    %v2016 = vunpack.c.h.b16 %v683
    %v2017 = vunpack.c.l.b16 %v684
    %v2018 = vunpack.c.h.b16 %v684
    %v2019 = vunpack.c.l.b16 %v685
    %v2020 = vunpack.c.h.b16 %v685
    %v2021 = vunpack.c.l.b16 %v686
    %v2022 = vunpack.c.h.b16 %v686
    %v2023 = vunpack.c.l.b16 %v687
    %v2024 = vunpack.c.h.b16 %v687
    %v2025 = vunpack.c.l.b16 %v688
    %v2026 = vunpack.c.h.b16 %v688
    %v2027 = vunpack.c.l.b16 %v689
    %v2028 = vunpack.c.h.b16 %v689
    %v2029 = vunpack.c.l.b16 %v690
    %v2030 = vunpack.c.h.b16 %v690
    %v2031 = vunpack.c.l.b16 %v691
    %v2032 = vunpack.c.h.b16 %v691
    %v2033 = vunpack.c.l.b16 %v692
    %v2034 = vunpack.c.h.b16 %v692
    %v2035 = vunpack.c.l.b16 %v693
    %v2036 = vunpack.c.h.b16 %v693
    %v2037 = vunpack.c.l.b16 %v694
    %v2038 = vunpack.c.h.b16 %v694
    %v2039 = vunpack.c.l.b16 %v695
    %v2040 = vunpack.c.h.b16 %v695
    %v2041 = vunpack.c.l.b16 %v696
    %v2042 = vunpack.c.h.b16 %v696
    %v2043 = vunpack.c.l.b16 %v697
    %v2044 = vunpack.c.h.b16 %v697
    %v2045 = vunpack.c.l.b16 %v698
    %v2046 = vunpack.c.h.b16 %v698
    %v2047 = vunpack.c.l.b16 %v699
    %v2048 = vunpack.c.h.b16 %v699
    %v2049 = vunpack.c.l.b16 %v700
    %v2050 = vunpack.c.h.b16 %v700
    %v2051 = vunpack.c.l.b16 %v701
    %v2052 = vunpack.c.h.b16 %v701
    %v2053 = vunpack.c.l.b16 %v702
    %v2054 = vunpack.c.h.b16 %v702
    %v2055 = vunpack.c.l.b16 %v703
    %v2056 = vunpack.c.h.b16 %v703
    %v2057 = vunpack.c.l.b16 %v704
    %v2058 = vunpack.c.h.b16 %v704
    %v2059 = vunpack.c.l.b16 %v705
    %v2060 = vunpack.c.h.b16 %v705
    %v2061 = vunpack.c.l.b16 %v706
    %v2062 = vunpack.c.h.b16 %v706
    %v2063 = vunpack.c.l.b16 %v707
    %v2064 = vunpack.c.h.b16 %v707
    %v2065 = vunpack.c.l.b16 %v708
    %v2066 = vunpack.c.h.b16 %v708
    %v2067 = vunpack.c.l.b16 %v709
    %v2068 = vunpack.c.h.b16 %v709
    %v2069 = vunpack.c.l.b16 %v710
    %v2070 = vunpack.c.h.b16 %v710
    %v2071 = vunpack.c.l.b16 %v711
    %v2072 = vunpack.c.h.b16 %v711
    %v2073 = vunpack.c.l.b16 %v712
    %v2074 = vunpack.c.h.b16 %v712
    %v2075 = vunpack.c.l.b16 %v713
    %v2076 = vunpack.c.h.b16 %v713
    %v2077 = vunpack.c.l.b16 %v714
    %v2078 = vunpack.c.h.b16 %v714
    %v2079 = vunpack.c.l.b16 %v715
    %v2080 = vunpack.c.h.b16 %v715
    %v2081 = vunpack.c.l.b16 %v716
    %v2082 = vunpack.c.h.b16 %v716
    %v2083 = vunpack.c.l.b16 %v717
    %v2084 = vunpack.c.h.b16 %v717
    %v2085 = vunpack.c.l.b16 %v718
    %v2086 = vunpack.c.h.b16 %v718
    %v2087 = vunpack.c.l.b16 %v719
    %v2088 = vunpack.c.h.b16 %v719
    %v2089 = vunpack.c.l.b16 %v720
    %v2090 = vunpack.c.h.b16 %v720
    %v2091 = vunpack.c.l.b16 %v721
    %v2092 = vunpack.c.h.b16 %v721
    %v2093 = vunpack.c.l.b16 %v722
    %v2094 = vunpack.c.h.b16 %v722
    %v2095 = vunpack.c.l.b16 %v723
    %v2096 = vunpack.c.h.b16 %v723
    %v2097 = vunpack.c.l.b16 %v724
    %v2098 = vunpack.c.h.b16 %v724
    %v2099 = vunpack.c.l.b16 %v725
    %v2100 = vunpack.c.h.b16 %v725
    %v2101 = vunpack.c.l.b16 %v726
    %v2102 = vunpack.c.h.b16 %v726
    %v2103 = vunpack.c.l.b16 %v727
    %v2104 = vunpack.c.h.b16 %v727
    %v2105 = vunpack.c.l.b16 %v728
    %v2106 = vunpack.c.h.b16 %v728
    %v2107 = vunpack.c.l.b16 %v729
    %v2108 = vunpack.c.h.b16 %v729
    %v2109 = vunpack.c.l.b16 %v730
    %v2110 = vunpack.c.h.b16 %v730
    %v2111 = vunpack.c.l.b16 %v731
    %v2112 = vunpack.c.h.b16 %v731
    %v2113 = vunpack.c.l.b16 %v732
    %v2114 = vunpack.c.h.b16 %v732
    %v2115 = vunpack.c.l.b16 %v733
    %v2116 = vunpack.c.h.b16 %v733
    %v2117 = vunpack.c.l.b16 %v734
    %v2118 = vunpack.c.h.b16 %v734
    %v2119 = vunpack.c.l.b16 %v735
    %v2120 = vunpack.c.h.b16 %v735
    %v2121 = vunpack.c.l.b16 %v736
    %v2122 = vunpack.c.h.b16 %v736
    %v2123 = vunpack.c.l.b16 %v737
    %v2124 = vunpack.c.h.b16 %v737
    %v2125 = vunpack.c.l.b16 %v738
    %v2126 = vunpack.c.h.b16 %v738
    %v2127 = vunpack.c.l.b16 %v739
    %v2128 = vunpack.c.h.b16 %v739
    %v2129 = vunpack.c.l.b16 %v740
    %v2130 = vunpack.c.h.b16 %v740
    %v2131 = vunpack.c.l.b16 %v741
    %v2132 = vunpack.c.h.b16 %v741
    %v2133 = vunpack.c.l.b16 %v742
    %v2134 = vunpack.c.h.b16 %v742
    %v2135 = vunpack.c.l.b16 %v743
    %v2136 = vunpack.c.h.b16 %v743
    %v2137 = vunpack.c.l.b16 %v744
    %v2138 = vunpack.c.h.b16 %v744
    %v2139 = vunpack.c.l.b16 %v745
    %v2140 = vunpack.c.h.b16 %v745
    %v2141 = vunpack.c.l.b16 %v746
    %v2142 = vunpack.c.h.b16 %v746
    %v2143 = vunpack.c.l.b16 %v747
    %v2144 = vunpack.c.h.b16 %v747
    %v2145 = vunpack.c.l.b16 %v748
    %v2146 = vunpack.c.h.b16 %v748
    %v2147 = vunpack.c.l.b16 %v749
    %v2148 = vunpack.c.h.b16 %v749
    %v2149 = vunpack.c.l.b16 %v750
    %v2150 = vunpack.c.h.b16 %v750
    %v2151 = vunpack.c.l.b16 %v751
    %v2152 = vunpack.c.h.b16 %v751
    %v2153 = vunpack.c.l.b16 %v752
    %v2154 = vunpack.c.h.b16 %v752
    %v2155 = vunpack.c.l.b16 %v753
    %v2156 = vunpack.c.h.b16 %v753
    %v2157 = vunpack.c.l.b16 %v754
    %v2158 = vunpack.c.h.b16 %v754
    %v2159 = vunpack.c.l.b16 %v755
    %v2160 = vunpack.c.h.b16 %v755
    %v2161 = vunpack.c.l.b16 %v756
    %v2162 = vunpack.c.h.b16 %v756
    %v2163 = vunpack.c.l.b16 %v757
    %v2164 = vunpack.c.h.b16 %v757
    %v2165 = vunpack.c.l.b16 %v758
    %v2166 = vunpack.c.h.b16 %v758
    %v2167 = vunpack.c.l.b16 %v759
    %v2168 = vunpack.c.h.b16 %v759
    %v2169 = vunpack.c.l.b16 %v760
    %v2170 = vunpack.c.h.b16 %v760
    %v2171 = vunpack.c.l.b16 %v761
    %v2172 = vunpack.c.h.b16 %v761
    %v2173 = vunpack.c.l.b16 %v762
    %v2174 = vunpack.c.h.b16 %v762
    %v2175 = vunpack.c.l.b16 %v763
    %v2176 = vunpack.c.h.b16 %v763
    %v2177 = vunpack.c.l.b16 %v764
    %v2178 = vunpack.c.h.b16 %v764
    %v2179 = vunpack.c.l.b16 %v765
    %v2180 = vunpack.c.h.b16 %v765
    %v2181 = vunpack.c.l.b16 %v766
    %v2182 = vunpack.c.h.b16 %v766
    %v2183 = vunpack.c.l.b16 %v767
    %v2184 = vunpack.c.h.b16 %v767
    %v2185 = vunpack.c.l.b16 %v768
    %v2186 = vunpack.c.h.b16 %v768
    %v2187 = vunpack.c.l.b16 %v769
    %v2188 = vunpack.c.h.b16 %v769
    %v2189 = vunpack.c.l.b16 %v770
    %v2190 = vunpack.c.h.b16 %v770
    %v2191 = vunpack.c.l.b16 %v771
    %v2192 = vunpack.c.h.b16 %v771
    %v2193 = vunpack.c.l.b16 %v772
    %v2194 = vunpack.c.h.b16 %v772
    %v2195 = vunpack.c.l.b16 %v773
    %v2196 = vunpack.c.h.b16 %v773
    %v2197 = vunpack.c.l.b16 %v774
    %v2198 = vunpack.c.h.b16 %v774
    %v2199 = vunpack.c.l.b16 %v775
    %v2200 = vunpack.c.h.b16 %v775
    %v2201 = vunpack.c.l.b16 %v776
    %v2202 = vunpack.c.h.b16 %v776
    %v2203 = vunpack.c.l.b16 %v777
    %v2204 = vunpack.c.h.b16 %v777
    %v2205 = vunpack.c.l.b16 %v778
    %v2206 = vunpack.c.h.b16 %v778
    %v2207 = vunpack.c.l.b16 %v779
    %v2208 = vunpack.c.h.b16 %v779
    %v2209 = vunpack.c.l.b16 %v780
    %v2210 = vunpack.c.h.b16 %v780
    %v2211 = vunpack.c.l.b16 %v781
    %v2212 = vunpack.c.h.b16 %v781
    %v2213 = vunpack.c.l.b16 %v782
    %v2214 = vunpack.c.h.b16 %v782
    %v2215 = vunpack.c.l.b16 %v783
    %v2216 = vunpack.c.h.b16 %v783
    %v2217 = vunpack.c.l.b16 %v784
    %v2218 = vunpack.c.h.b16 %v784
    %v2219 = vunpack.c.l.b16 %v785
    %v2220 = vunpack.c.h.b16 %v785
    %v2221 = vunpack.c.l.b16 %v786
    %v2222 = vunpack.c.h.b16 %v786
    %v2223 = vunpack.c.l.b16 %v787
    %v2224 = vunpack.c.h.b16 %v787
    %v2225 = vunpack.c.l.b16 %v788
    %v2226 = vunpack.c.h.b16 %v788
    %v2227 = vunpack.c.l.b16 %v789
    %v2228 = vunpack.c.h.b16 %v789
    %v2229 = vunpack.c.l.b16 %v790
    %v2230 = vunpack.c.h.b16 %v790
    %v2231 = vunpack.c.l.b16 %v791
    %v2232 = vunpack.c.h.b16 %v791
    %v2233 = vunpack.c.l.b16 %v792
    %v2234 = vunpack.c.h.b16 %v792
    %v2235 = vunpack.c.l.b16 %v793
    %v2236 = vunpack.c.h.b16 %v793
    %v2237 = vunpack.c.l.b16 %v794
    %v2238 = vunpack.c.h.b16 %v794
    %v2239 = vunpack.c.l.b16 %v795
    %v2240 = vunpack.c.h.b16 %v795
    %v2241 = vunpack.c.l.b16 %v796
    %v2242 = vunpack.c.h.b16 %v796
    %v2243 = vunpack.c.l.b16 %v797
    %v2244 = vunpack.c.h.b16 %v797
    %v2245 = vunpack.c.l.b16 %v798
    %v2246 = vunpack.c.h.b16 %v798
    %v2247 = vunpack.c.l.b16 %v799
    %v2248 = vunpack.c.h.b16 %v799
    %v2249 = vunpack.c.l.b16 %v800
    %v2250 = vunpack.c.h.b16 %v800
    %v2251 = vunpack.c.l.b16 %v801
    %v2252 = vunpack.c.h.b16 %v801
    %v2253 = vunpack.c.l.b16 %v802
    %v2254 = vunpack.c.h.b16 %v802
    %v2255 = vunpack.c.l.b16 %v803
    %v2256 = vunpack.c.h.b16 %v803
    %v2257 = vunpack.c.l.b16 %v804
    %v2258 = vunpack.c.h.b16 %v804
    %v2259 = vunpack.c.l.b16 %v805
    %v2260 = vunpack.c.h.b16 %v805
    %v2261 = vunpack.c.l.b16 %v806
    %v2262 = vunpack.c.h.b16 %v806
    %v2263 = vunpack.c.l.b16 %v807
    %v2264 = vunpack.c.h.b16 %v807
    %v2265 = vunpack.c.l.b16 %v808
    %v2266 = vunpack.c.h.b16 %v808
    %v2267 = vunpack.c.l.b16 %v809
    %v2268 = vunpack.c.h.b16 %v809
    %v2269 = vunpack.c.l.b16 %v810
    %v2270 = vunpack.c.h.b16 %v810
    %v2271 = vunpack.c.l.b16 %v811
    %v2272 = vunpack.c.h.b16 %v811
    %v2273 = vunpack.c.l.b16 %v812
    %v2274 = vunpack.c.h.b16 %v812
    %v2275 = vunpack.c.l.b16 %v813
    %v2276 = vunpack.c.h.b16 %v813
    %v2277 = vunpack.c.l.b16 %v814
    %v2278 = vunpack.c.h.b16 %v814
    %v2279 = vunpack.c.l.b16 %v815
    %v2280 = vunpack.c.h.b16 %v815
    %v2281 = vunpack.c.l.b16 %v816
    %v2282 = vunpack.c.h.b16 %v816
    %v2283 = vunpack.c.l.b16 %v817
    %v2284 = vunpack.c.h.b16 %v817
    %v2285 = vunpack.c.l.b16 %v818
    %v2286 = vunpack.c.h.b16 %v818
    %v2287 = vunpack.c.l.b16 %v819
    %v2288 = vunpack.c.h.b16 %v819
    %v2289 = vunpack.c.l.b16 %v820
    %v2290 = vunpack.c.h.b16 %v820
    %v2291 = vunpack.c.l.b16 %v821
    %v2292 = vunpack.c.h.b16 %v821
    %v2293 = vunpack.c.l.b16 %v822
    %v2294 = vunpack.c.h.b16 %v822
    %v2295 = vunpack.c.l.b16 %v823
    %v2296 = vunpack.c.h.b16 %v823
    %v2297 = vunpack.c.l.b16 %v824
    %v2298 = vunpack.c.h.b16 %v824
    %v2299 = vunpack.c.l.b16 %v825
    %v2300 = vunpack.c.h.b16 %v825
    %v2301 = vunpack.c.l.b16 %v826
    %v2302 = vunpack.c.h.b16 %v826
    %v2303 = vunpack.c.l.b16 %v827
    %v2304 = vunpack.c.h.b16 %v827
    %v2305 = vunpack.c.l.b16 %v828
    %v2306 = vunpack.c.h.b16 %v828
    %v2307 = vunpack.c.l.b16 %v829
    %v2308 = vunpack.c.h.b16 %v829
    %v2309 = vunpack.c.l.b16 %v830
    %v2310 = vunpack.c.h.b16 %v830
    %v2311 = vunpack.c.l.b16 %v831
    %v2312 = vunpack.c.h.b16 %v831
    %v2313 = vunpack.c.l.b16 %v832
    %v2314 = vunpack.c.h.b16 %v832
    %v2315 = vunpack.c.l.b16 %v833
    %v2316 = vunpack.c.h.b16 %v833
    %v2317 = vunpack.c.l.b16 %v834
    %v2318 = vunpack.c.h.b16 %v834
    %v2319 = vunpack.c.l.b16 %v835
    %v2320 = vunpack.c.h.b16 %v835
    %v2321 = vunpack.c.l.b16 %v836
    %v2322 = vunpack.c.h.b16 %v836
    %v2323 = vunpack.c.l.b16 %v837
    %v2324 = vunpack.c.h.b16 %v837
    %v2325 = vunpack.c.l.b16 %v838
    %v2326 = vunpack.c.h.b16 %v838
    %v2327 = vunpack.c.l.b16 %v839
    %v2328 = vunpack.c.h.b16 %v839
    %v2329 = vunpack.c.l.b16 %v840
    %v2330 = vunpack.c.h.b16 %v840
    %v2331 = vunpack.c.l.b16 %v841
    %v2332 = vunpack.c.h.b16 %v841
    %v2333 = vunpack.c.l.b16 %v842
    %v2334 = vunpack.c.h.b16 %v842
    %v2335 = vunpack.c.l.b16 %v843
    %v2336 = vunpack.c.h.b16 %v843
    %v2337 = vunpack.c.l.b16 %v844
    %v2338 = vunpack.c.h.b16 %v844
    %v2339 = vunpack.c.l.b16 %v845
    %v2340 = vunpack.c.h.b16 %v845
    %v2341 = vunpack.c.l.b16 %v846
    %v2342 = vunpack.c.h.b16 %v846
    %v2343 = vunpack.c.l.b16 %v847
    %v2344 = vunpack.c.h.b16 %v847
    %v2345 = vunpack.c.l.b16 %v848
    %v2346 = vunpack.c.h.b16 %v848
    %v2347 = vunpack.c.l.b16 %v849
    %v2348 = vunpack.c.h.b16 %v849
    %v2349 = vunpack.c.l.b16 %v850
    %v2350 = vunpack.c.h.b16 %v850
    %v2351 = vunpack.c.l.b16 %v851
    %v2352 = vunpack.c.h.b16 %v851
    %v2353 = vunpack.c.l.b16 %v852
    %v2354 = vunpack.c.h.b16 %v852
    %v2355 = vunpack.c.l.b16 %v853
    %v2356 = vunpack.c.h.b16 %v853
    %v2357 = vunpack.c.l.b16 %v854
    %v2358 = vunpack.c.h.b16 %v854
    %v2359 = vunpack.c.l.b16 %v855
    %v2360 = vunpack.c.h.b16 %v855
    %v2361 = vunpack.c.l.b16 %v856
    %v2362 = vunpack.c.h.b16 %v856
    %v2363 = vunpack.c.l.b16 %v857
    %v2364 = vunpack.c.h.b16 %v857
    %v2365 = vunpack.c.l.b16 %v858
    %v2366 = vunpack.c.h.b16 %v858
    %v2367 = vunpack.c.l.b16 %v859
    %v2368 = vunpack.c.h.b16 %v859
    %v2369 = vunpack.c.l.b16 %v860
    %v2370 = vunpack.c.h.b16 %v860
    %v2371 = vunpack.c.l.b16 %v861
    %v2372 = vunpack.c.h.b16 %v861
    %v2373 = vunpack.c.l.b16 %v862
    %v2374 = vunpack.c.h.b16 %v862
    %v2375 = vunpack.c.l.b16 %v863
    %v2376 = vunpack.c.h.b16 %v863
    %v2377 = vunpack.c.l.b16 %v864
    %v2378 = vunpack.c.h.b16 %v864
    %v2379 = vunpack.c.l.b16 %v865
    %v2380 = vunpack.c.h.b16 %v865
    %v2381 = vunpack.c.l.b16 %v866
    %v2382 = vunpack.c.h.b16 %v866
    %v2383 = vunpack.c.l.b16 %v867
    %v2384 = vunpack.c.h.b16 %v867
    %v2385 = vunpack.c.l.b16 %v868
    %v2386 = vunpack.c.h.b16 %v868
    %v2387 = vunpack.c.l.b16 %v869
    %v2388 = vunpack.c.h.b16 %v869
    %v2389 = vunpack.c.l.b16 %v870
    %v2390 = vunpack.c.h.b16 %v870
    %v2391 = vunpack.c.l.b16 %v871
    %v2392 = vunpack.c.h.b16 %v871
    %v2393 = vunpack.c.l.b16 %v872
    %v2394 = vunpack.c.h.b16 %v872
    %v2395 = vunpack.c.l.b16 %v873
    %v2396 = vunpack.c.h.b16 %v873
    %v2397 = vunpack.c.l.b16 %v874
    %v2398 = vunpack.c.h.b16 %v874
    %v2399 = vunpack.c.l.b16 %v875
    %v2400 = vunpack.c.h.b16 %v875
    %v2401 = vunpack.c.l.b16 %v876
    %v2402 = vunpack.c.h.b16 %v876
    %v2403 = vunpack.c.l.b16 %v877
    %v2404 = vunpack.c.h.b16 %v877
    %v2405 = vunpack.c.l.b16 %v878
    %v2406 = vunpack.c.h.b16 %v878
    %v2407 = vunpack.c.l.b16 %v879
    %v2408 = vunpack.c.h.b16 %v879
    %v2409 = vunpack.c.l.b16 %v880
    %v2410 = vunpack.c.h.b16 %v880
    %v2411 = vunpack.c.l.b16 %v881
    %v2412 = vunpack.c.h.b16 %v881
    %v2413 = vunpack.c.l.b16 %v882
    %v2414 = vunpack.c.h.b16 %v882
    %v2415 = vunpack.c.l.b16 %v883
    %v2416 = vunpack.c.h.b16 %v883
    %v2417 = vunpack.c.l.b16 %v884
    %v2418 = vunpack.c.h.b16 %v884
    %v2419 = vunpack.c.l.b16 %v885
    %v2420 = vunpack.c.h.b16 %v885
    %v2421 = vunpack.c.l.b16 %v886
    %v2422 = vunpack.c.h.b16 %v886
    %v2423 = vunpack.c.l.b16 %v887
    %v2424 = vunpack.c.h.b16 %v887
    %v2425 = vunpack.c.l.b16 %v888
    %v2426 = vunpack.c.h.b16 %v888
    %v2427 = vunpack.c.l.b16 %v889
    %v2428 = vunpack.c.h.b16 %v889
    %v2429 = vunpack.c.l.b16 %v890
    %v2430 = vunpack.c.h.b16 %v890
    %v2431 = vunpack.c.l.b16 %v891
    %v2432 = vunpack.c.h.b16 %v891
    %v2433 = vunpack.c.l.b16 %v892
    %v2434 = vunpack.c.h.b16 %v892
    %v2435 = vunpack.c.l.b16 %v893
    %v2436 = vunpack.c.h.b16 %v893
    %v2437 = vunpack.c.l.b16 %v894
    %v2438 = vunpack.c.h.b16 %v894
    %v2439 = vunpack.c.l.b16 %v895
    %v2440 = vunpack.c.h.b16 %v895
    %v2441 = vunpack.c.l.b16 %v896
    %v2442 = vunpack.c.h.b16 %v896
    %v2443 = vunpack.c.l.b16 %v897
    %v2444 = vunpack.c.h.b16 %v897
    %v2445 = vunpack.c.l.b16 %v898
    %v2446 = vunpack.c.h.b16 %v898
    %v2447 = vunpack.c.l.b16 %v899
    %v2448 = vunpack.c.h.b16 %v899
    %v2449 = vunpack.c.l.b16 %v900
    %v2450 = vunpack.c.h.b16 %v900
    %v2451 = vunpack.c.l.b16 %v901
    %v2452 = vunpack.c.h.b16 %v901
    %v2453 = vunpack.c.l.b16 %v902
    %v2454 = vunpack.c.h.b16 %v902
    %v2455 = vunpack.c.l.b16 %v903
    %v2456 = vunpack.c.h.b16 %v903
    %v2457 = vunpack.c.l.b16 %v904
    %v2458 = vunpack.c.h.b16 %v904
    %v2459 = vunpack.c.l.b16 %v905
    %v2460 = vunpack.c.h.b16 %v905
    %v2461 = vunpack.c.l.b16 %v906
    %v2462 = vunpack.c.h.b16 %v906
    %v2463 = vunpack.c.l.b16 %v907
    %v2464 = vunpack.c.h.b16 %v907
    %v2465 = vunpack.c.l.b16 %v908
    %v2466 = vunpack.c.h.b16 %v908
    %v2467 = vunpack.c.l.b16 %v909
    %v2468 = vunpack.c.h.b16 %v909
    %v2469 = vunpack.c.l.b16 %v910
    %v2470 = vunpack.c.h.b16 %v910
    %v2471 = vunpack.c.l.b16 %v911
    %v2472 = vunpack.c.h.b16 %v911
    %v2473 = vunpack.c.l.b16 %v912
    %v2474 = vunpack.c.h.b16 %v912
    %v2475 = vunpack.c.l.b16 %v913
    %v2476 = vunpack.c.h.b16 %v913
    %v2477 = vunpack.c.l.b16 %v914
    %v2478 = vunpack.c.h.b16 %v914
    %v2479 = vunpack.c.l.b16 %v915
    %v2480 = vunpack.c.h.b16 %v915
    %v2481 = vunpack.c.l.b16 %v916
    %v2482 = vunpack.c.h.b16 %v916
    %v2483 = vunpack.c.l.b16 %v917
    %v2484 = vunpack.c.h.b16 %v917
    %v2485 = vunpack.c.l.b16 %v918
    %v2486 = vunpack.c.h.b16 %v918
    %v2487 = vunpack.c.l.b16 %v919
    %v2488 = vunpack.c.h.b16 %v919
    %v2489 = vunpack.c.l.b16 %v920
    %v2490 = vunpack.c.h.b16 %v920
    %v2491 = vunpack.c.l.b16 %v921
    %v2492 = vunpack.c.h.b16 %v921
    %v2493 = vunpack.c.l.b16 %v922
    %v2494 = vunpack.c.h.b16 %v922
    %v2495 = vunpack.c.l.b16 %v923
    %v2496 = vunpack.c.h.b16 %v923
    %v2497 = vunpack.c.l.b16 %v924
    %v2498 = vunpack.c.h.b16 %v924
    %v2499 = vunpack.c.l.b16 %v925
    %v2500 = vunpack.c.h.b16 %v925
    %v2501 = vunpack.c.l.b16 %v926
    %v2502 = vunpack.c.h.b16 %v926
    %v2503 = vunpack.c.l.b16 %v927
    %v2504 = vunpack.c.h.b16 %v927
    %v2505 = vunpack.c.l.b16 %v928
    %v2506 = vunpack.c.h.b16 %v928
    %v2507 = vpack.c.b16 %v1491, %v1483
    %v2508 = vpack.c.b16 %v1492, %v1484
    %v2509 = vpack.c.b16 %v1493, %v1485
    %v2510 = vpack.c.b16 %v1494, %v1486
    %v2511 = vpack.c.b16 %v1495, %v1487
    %v2512 = vpack.c.b16 %v1496, %v1488
    %v2513 = vpack.c.b16 %v1497, %v1489
    %v2514 = vpack.c.b16 %v1498, %v1490
    %v2515 = vpack.c.b16 %v1507, %v1499
    %v2516 = vpack.c.b16 %v1508, %v1500
    %v2517 = vpack.c.b16 %v1509, %v1501
    %v2518 = vpack.c.b16 %v1510, %v1502
    %v2519 = vpack.c.b16 %v1511, %v1503
    %v2520 = vpack.c.b16 %v1512, %v1504
    %v2521 = vpack.c.b16 %v1513, %v1505
    %v2522 = vpack.c.b16 %v1514, %v1506
    %v2523 = vpack.c.b16 %v1523, %v1515
    %v2524 = vpack.c.b16 %v1524, %v1516
    %v2525 = vpack.c.b16 %v1525, %v1517
    %v2526 = vpack.c.b16 %v1526, %v1518
    %v2527 = vpack.c.b16 %v1527, %v1519
    %v2528 = vpack.c.b16 %v1528, %v1520
    %v2529 = vpack.c.b16 %v1529, %v1521
    %v2530 = vpack.c.b16 %v1530, %v1522
    %v2531 = vpack.c.b16 %v1539, %v1531
    %v2532 = vpack.c.b16 %v1540, %v1532
    %v2533 = vpack.c.b16 %v1541, %v1533
    %v2534 = vpack.c.b16 %v1542, %v1534
    %v2535 = vpack.c.b16 %v1543, %v1535
    %v2536 = vpack.c.b16 %v1544, %v1536
    %v2537 = vpack.c.b16 %v1545, %v1537
    %v2538 = vpack.c.b16 %v1546, %v1538
    %v2539 = vpack.c.b16 %v1555, %v1547
    %v2540 = vpack.c.b16 %v1556, %v1548
    %v2541 = vpack.c.b16 %v1557, %v1549
    %v2542 = vpack.c.b16 %v1558, %v1550
    %v2543 = vpack.c.b16 %v1559, %v1551
    %v2544 = vpack.c.b16 %v1560, %v1552
    %v2545 = vpack.c.b16 %v1561, %v1553
    %v2546 = vpack.c.b16 %v1562, %v1554
    %v2547 = vpack.c.b16 %v1571, %v1563
    %v2548 = vpack.c.b16 %v1572, %v1564
    %v2549 = vpack.c.b16 %v1573, %v1565
    %v2550 = vpack.c.b16 %v1574, %v1566
    %v2551 = vpack.c.b16 %v1575, %v1567
    %v2552 = vpack.c.b16 %v1576, %v1568
    %v2553 = vpack.c.b16 %v1577, %v1569
    %v2554 = vpack.c.b16 %v1578, %v1570
    %v2555 = vpack.c.b16 %v1587, %v1579
    %v2556 = vpack.c.b16 %v1588, %v1580
    %v2557 = vpack.c.b16 %v1589, %v1581
    %v2558 = vpack.c.b16 %v1590, %v1582
    %v2559 = vpack.c.b16 %v1591, %v1583
    %v2560 = vpack.c.b16 %v1592, %v1584
    %v2561 = vpack.c.b16 %v1593, %v1585
    %v2562 = vpack.c.b16 %v1594, %v1586
    %v2563 = vpack.c.b16 %v1603, %v1595
    %v2564 = vpack.c.b16 %v1604, %v1596
    %v2565 = vpack.c.b16 %v1605, %v1597
    %v2566 = vpack.c.b16 %v1606, %v1598
    %v2567 = vpack.c.b16 %v1607, %v1599
    %v2568 = vpack.c.b16 %v1608, %v1600
    %v2569 = vpack.c.b16 %v1609, %v1601
    %v2570 = vpack.c.b16 %v1610, %v1602
    %v2571 = vpack.c.b16 %v1619, %v1611
    %v2572 = vpack.c.b16 %v1620, %v1612
    %v2573 = vpack.c.b16 %v1621, %v1613
    %v2574 = vpack.c.b16 %v1622, %v1614
    %v2575 = vpack.c.b16 %v1623, %v1615
    %v2576 = vpack.c.b16 %v1624, %v1616
    %v2577 = vpack.c.b16 %v1625, %v1617
    %v2578 = vpack.c.b16 %v1626, %v1618
    %v2579 = vpack.c.b16 %v1635, %v1627
    %v2580 = vpack.c.b16 %v1636, %v1628
    %v2581 = vpack.c.b16 %v1637, %v1629
    %v2582 = vpack.c.b16 %v1638, %v1630
    %v2583 = vpack.c.b16 %v1639, %v1631
    %v2584 = vpack.c.b16 %v1640, %v1632
    %v2585 = vpack.c.b16 %v1641, %v1633
    %v2586 = vpack.c.b16 %v1642, %v1634
    %v2587 = vpack.c.b16 %v1651, %v1643
    %v2588 = vpack.c.b16 %v1652, %v1644
    %v2589 = vpack.c.b16 %v1653, %v1645
    %v2590 = vpack.c.b16 %v1654, %v1646
    %v2591 = vpack.c.b16 %v1655, %v1647
    %v2592 = vpack.c.b16 %v1656, %v1648
    %v2593 = vpack.c.b16 %v1657, %v1649
    %v2594 = vpack.c.b16 %v1658, %v1650
    %v2595 = vpack.c.b16 %v1667, %v1659
    %v2596 = vpack.c.b16 %v1668, %v1660
    %v2597 = vpack.c.b16 %v1669, %v1661
    %v2598 = vpack.c.b16 %v1670, %v1662
    %v2599 = vpack.c.b16 %v1671, %v1663
    %v2600 = vpack.c.b16 %v1672, %v1664
    %v2601 = vpack.c.b16 %v1673, %v1665
    %v2602 = vpack.c.b16 %v1674, %v1666
    %v2603 = vpack.c.b16 %v1683, %v1675
    %v2604 = vpack.c.b16 %v1684, %v1676
    %v2605 = vpack.c.b16 %v1685, %v1677
    %v2606 = vpack.c.b16 %v1686, %v1678
    %v2607 = vpack.c.b16 %v1687, %v1679
    %v2608 = vpack.c.b16 %v1688, %v1680
    %v2609 = vpack.c.b16 %v1689, %v1681
    %v2610 = vpack.c.b16 %v1690, %v1682
    %v2611 = vpack.c.b16 %v1699, %v1691
    %v2612 = vpack.c.b16 %v1700, %v1692
    %v2613 = vpack.c.b16 %v1701, %v1693
    %v2614 = vpack.c.b16 %v1702, %v1694
    %v2615 = vpack.c.b16 %v1703, %v1695
    %v2616 = vpack.c.b16 %v1704, %v1696
    %v2617 = vpack.c.b16 %v1705, %v1697
    %v2618 = vpack.c.b16 %v1706, %v1698
    %v2619 = vpack.c.b16 %v1715, %v1707
    %v2620 = vpack.c.b16 %v1716, %v1708
    %v2621 = vpack.c.b16 %v1717, %v1709
    %v2622 = vpack.c.b16 %v1718, %v1710
    %v2623 = vpack.c.b16 %v1719, %v1711
    %v2624 = vpack.c.b16 %v1720, %v1712
    %v2625 = vpack.c.b16 %v1721, %v1713
    %v2626 = vpack.c.b16 %v1722, %v1714
    %v2627 = vpack.c.b16 %v1731, %v1723
    %v2628 = vpack.c.b16 %v1732, %v1724
    %v2629 = vpack.c.b16 %v1733, %v1725
    %v2630 = vpack.c.b16 %v1734, %v1726
    %v2631 = vpack.c.b16 %v1735, %v1727
    %v2632 = vpack.c.b16 %v1736, %v1728
    %v2633 = vpack.c.b16 %v1737, %v1729
    %v2634 = vpack.c.b16 %v1738, %v1730
    %v2635 = vpack.c.b16 %v1747, %v1739
    %v2636 = vpack.c.b16 %v1748, %v1740
    %v2637 = vpack.c.b16 %v1749, %v1741
    %v2638 = vpack.c.b16 %v1750, %v1742
    %v2639 = vpack.c.b16 %v1751, %v1743
    %v2640 = vpack.c.b16 %v1752, %v1744
    %v2641 = vpack.c.b16 %v1753, %v1745
    %v2642 = vpack.c.b16 %v1754, %v1746
    %v2643 = vpack.c.b16 %v1763, %v1755
    %v2644 = vpack.c.b16 %v1764, %v1756
    %v2645 = vpack.c.b16 %v1765, %v1757
    %v2646 = vpack.c.b16 %v1766, %v1758
    %v2647 = vpack.c.b16 %v1767, %v1759
    %v2648 = vpack.c.b16 %v1768, %v1760
    %v2649 = vpack.c.b16 %v1769, %v1761
    %v2650 = vpack.c.b16 %v1770, %v1762
    %v2651 = vpack.c.b16 %v1779, %v1771
    %v2652 = vpack.c.b16 %v1780, %v1772
    %v2653 = vpack.c.b16 %v1781, %v1773
    %v2654 = vpack.c.b16 %v1782, %v1774
    %v2655 = vpack.c.b16 %v1783, %v1775
    %v2656 = vpack.c.b16 %v1784, %v1776
    %v2657 = vpack.c.b16 %v1785, %v1777
    %v2658 = vpack.c.b16 %v1786, %v1778
    %v2659 = vpack.c.b16 %v1795, %v1787
    %v2660 = vpack.c.b16 %v1796, %v1788
    %v2661 = vpack.c.b16 %v1797, %v1789
    %v2662 = vpack.c.b16 %v1798, %v1790
    %v2663 = vpack.c.b16 %v1799, %v1791
    %v2664 = vpack.c.b16 %v1800, %v1792
    %v2665 = vpack.c.b16 %v1801, %v1793
    %v2666 = vpack.c.b16 %v1802, %v1794
    %v2667 = vpack.c.b16 %v1811, %v1803
    %v2668 = vpack.c.b16 %v1812, %v1804
    %v2669 = vpack.c.b16 %v1813, %v1805
    %v2670 = vpack.c.b16 %v1814, %v1806
    %v2671 = vpack.c.b16 %v1815, %v1807
    %v2672 = vpack.c.b16 %v1816, %v1808
    %v2673 = vpack.c.b16 %v1817, %v1809
    %v2674 = vpack.c.b16 %v1818, %v1810
    %v2675 = vpack.c.b16 %v1827, %v1819
    %v2676 = vpack.c.b16 %v1828, %v1820
    %v2677 = vpack.c.b16 %v1829, %v1821
    %v2678 = vpack.c.b16 %v1830, %v1822
    %v2679 = vpack.c.b16 %v1831, %v1823
    %v2680 = vpack.c.b16 %v1832, %v1824
    %v2681 = vpack.c.b16 %v1833, %v1825
    %v2682 = vpack.c.b16 %v1834, %v1826
    %v2683 = vpack.c.b16 %v1843, %v1835
    %v2684 = vpack.c.b16 %v1844, %v1836
    %v2685 = vpack.c.b16 %v1845, %v1837
    %v2686 = vpack.c.b16 %v1846, %v1838
    %v2687 = vpack.c.b16 %v1847, %v1839
    %v2688 = vpack.c.b16 %v1848, %v1840
    %v2689 = vpack.c.b16 %v1849, %v1841
    %v2690 = vpack.c.b16 %v1850, %v1842
    %v2691 = vpack.c.b16 %v1859, %v1851
    %v2692 = vpack.c.b16 %v1860, %v1852
    %v2693 = vpack.c.b16 %v1861, %v1853
    %v2694 = vpack.c.b16 %v1862, %v1854
    %v2695 = vpack.c.b16 %v1863, %v1855
    %v2696 = vpack.c.b16 %v1864, %v1856
    %v2697 = vpack.c.b16 %v1865, %v1857
    %v2698 = vpack.c.b16 %v1866, %v1858
    %v2699 = vpack.c.b16 %v1875, %v1867
    %v2700 = vpack.c.b16 %v1876, %v1868
    %v2701 = vpack.c.b16 %v1877, %v1869
    %v2702 = vpack.c.b16 %v1878, %v1870
    %v2703 = vpack.c.b16 %v1879, %v1871
    %v2704 = vpack.c.b16 %v1880, %v1872
    %v2705 = vpack.c.b16 %v1881, %v1873
    %v2706 = vpack.c.b16 %v1882, %v1874
    %v2707 = vpack.c.b16 %v1891, %v1883
    %v2708 = vpack.c.b16 %v1892, %v1884
    %v2709 = vpack.c.b16 %v1893, %v1885
    %v2710 = vpack.c.b16 %v1894, %v1886
    %v2711 = vpack.c.b16 %v1895, %v1887
    %v2712 = vpack.c.b16 %v1896, %v1888
    %v2713 = vpack.c.b16 %v1897, %v1889
    %v2714 = vpack.c.b16 %v1898, %v1890
    %v2715 = vpack.c.b16 %v1907, %v1899
    %v2716 = vpack.c.b16 %v1908, %v1900
    %v2717 = vpack.c.b16 %v1909, %v1901
    %v2718 = vpack.c.b16 %v1910, %v1902
    %v2719 = vpack.c.b16 %v1911, %v1903
    %v2720 = vpack.c.b16 %v1912, %v1904
    %v2721 = vpack.c.b16 %v1913, %v1905
    %v2722 = vpack.c.b16 %v1914, %v1906
    %v2723 = vpack.c.b16 %v1923, %v1915
    %v2724 = vpack.c.b16 %v1924, %v1916
    %v2725 = vpack.c.b16 %v1925, %v1917
    %v2726 = vpack.c.b16 %v1926, %v1918
    %v2727 = vpack.c.b16 %v1927, %v1919
    %v2728 = vpack.c.b16 %v1928, %v1920
    %v2729 = vpack.c.b16 %v1929, %v1921
    %v2730 = vpack.c.b16 %v1930, %v1922
    %v2731 = vpack.c.b16 %v1939, %v1931
    %v2732 = vpack.c.b16 %v1940, %v1932
    %v2733 = vpack.c.b16 %v1941, %v1933
    %v2734 = vpack.c.b16 %v1942, %v1934
    %v2735 = vpack.c.b16 %v1943, %v1935
    %v2736 = vpack.c.b16 %v1944, %v1936
    %v2737 = vpack.c.b16 %v1945, %v1937
    %v2738 = vpack.c.b16 %v1946, %v1938
    %v2739 = vpack.c.b16 %v1955, %v1947
    %v2740 = vpack.c.b16 %v1956, %v1948
    %v2741 = vpack.c.b16 %v1957, %v1949
    %v2742 = vpack.c.b16 %v1958, %v1950
    %v2743 = vpack.c.b16 %v1959, %v1951
    %v2744 = vpack.c.b16 %v1960, %v1952
    %v2745 = vpack.c.b16 %v1961, %v1953
    %v2746 = vpack.c.b16 %v1962, %v1954
    %v2747 = vpack.c.b16 %v1971, %v1963
    %v2748 = vpack.c.b16 %v1972, %v1964
    %v2749 = vpack.c.b16 %v1973, %v1965
    %v2750 = vpack.c.b16 %v1974, %v1966
    %v2751 = vpack.c.b16 %v1975, %v1967
    %v2752 = vpack.c.b16 %v1976, %v1968
    %v2753 = vpack.c.b16 %v1977, %v1969
    %v2754 = vpack.c.b16 %v1978, %v1970
    %v2755 = vpack.c.b16 %v1987, %v1979
    %v2756 = vpack.c.b16 %v1988, %v1980
    %v2757 = vpack.c.b16 %v1989, %v1981
    %v2758 = vpack.c.b16 %v1990, %v1982
    %v2759 = vpack.c.b16 %v1991, %v1983
    %v2760 = vpack.c.b16 %v1992, %v1984
    %v2761 = vpack.c.b16 %v1993, %v1985
    %v2762 = vpack.c.b16 %v1994, %v1986
    %v2763 = vpack.c.b16 %v2003, %v1995
    %v2764 = vpack.c.b16 %v2004, %v1996
    %v2765 = vpack.c.b16 %v2005, %v1997
    %v2766 = vpack.c.b16 %v2006, %v1998
    %v2767 = vpack.c.b16 %v2007, %v1999
    %v2768 = vpack.c.b16 %v2008, %v2000
    %v2769 = vpack.c.b16 %v2009, %v2001
    %v2770 = vpack.c.b16 %v2010, %v2002
    %v2771 = vpack.c.b16 %v2019, %v2011
    %v2772 = vpack.c.b16 %v2020, %v2012
    %v2773 = vpack.c.b16 %v2021, %v2013
    %v2774 = vpack.c.b16 %v2022, %v2014
    %v2775 = vpack.c.b16 %v2023, %v2015
    %v2776 = vpack.c.b16 %v2024, %v2016
    %v2777 = vpack.c.b16 %v2025, %v2017
    %v2778 = vpack.c.b16 %v2026, %v2018
    %v2779 = vpack.c.b16 %v2035, %v2027
    %v2780 = vpack.c.b16 %v2036, %v2028
    %v2781 = vpack.c.b16 %v2037, %v2029
    %v2782 = vpack.c.b16 %v2038, %v2030
    %v2783 = vpack.c.b16 %v2039, %v2031
    %v2784 = vpack.c.b16 %v2040, %v2032
    %v2785 = vpack.c.b16 %v2041, %v2033
    %v2786 = vpack.c.b16 %v2042, %v2034
    %v2787 = vpack.c.b16 %v2051, %v2043
    %v2788 = vpack.c.b16 %v2052, %v2044
    %v2789 = vpack.c.b16 %v2053, %v2045
    %v2790 = vpack.c.b16 %v2054, %v2046
    %v2791 = vpack.c.b16 %v2055, %v2047
    %v2792 = vpack.c.b16 %v2056, %v2048
    %v2793 = vpack.c.b16 %v2057, %v2049
    %v2794 = vpack.c.b16 %v2058, %v2050
    %v2795 = vpack.c.b16 %v2067, %v2059
    %v2796 = vpack.c.b16 %v2068, %v2060
    %v2797 = vpack.c.b16 %v2069, %v2061
    %v2798 = vpack.c.b16 %v2070, %v2062
    %v2799 = vpack.c.b16 %v2071, %v2063
    %v2800 = vpack.c.b16 %v2072, %v2064
    %v2801 = vpack.c.b16 %v2073, %v2065
    %v2802 = vpack.c.b16 %v2074, %v2066
    %v2803 = vpack.c.b16 %v2083, %v2075
    %v2804 = vpack.c.b16 %v2084, %v2076
    %v2805 = vpack.c.b16 %v2085, %v2077
    %v2806 = vpack.c.b16 %v2086, %v2078
    %v2807 = vpack.c.b16 %v2087, %v2079
    %v2808 = vpack.c.b16 %v2088, %v2080
    %v2809 = vpack.c.b16 %v2089, %v2081
    %v2810 = vpack.c.b16 %v2090, %v2082
    %v2811 = vpack.c.b16 %v2099, %v2091
    %v2812 = vpack.c.b16 %v2100, %v2092
    %v2813 = vpack.c.b16 %v2101, %v2093
    %v2814 = vpack.c.b16 %v2102, %v2094
    %v2815 = vpack.c.b16 %v2103, %v2095
    %v2816 = vpack.c.b16 %v2104, %v2096
    %v2817 = vpack.c.b16 %v2105, %v2097
    %v2818 = vpack.c.b16 %v2106, %v2098
    %v2819 = vpack.c.b16 %v2115, %v2107
    %v2820 = vpack.c.b16 %v2116, %v2108
    %v2821 = vpack.c.b16 %v2117, %v2109
    %v2822 = vpack.c.b16 %v2118, %v2110
    %v2823 = vpack.c.b16 %v2119, %v2111
    %v2824 = vpack.c.b16 %v2120, %v2112
    %v2825 = vpack.c.b16 %v2121, %v2113
    %v2826 = vpack.c.b16 %v2122, %v2114
    %v2827 = vpack.c.b16 %v2131, %v2123
    %v2828 = vpack.c.b16 %v2132, %v2124
    %v2829 = vpack.c.b16 %v2133, %v2125
    %v2830 = vpack.c.b16 %v2134, %v2126
    %v2831 = vpack.c.b16 %v2135, %v2127
    %v2832 = vpack.c.b16 %v2136, %v2128
    %v2833 = vpack.c.b16 %v2137, %v2129
    %v2834 = vpack.c.b16 %v2138, %v2130
    %v2835 = vpack.c.b16 %v2147, %v2139
    %v2836 = vpack.c.b16 %v2148, %v2140
    %v2837 = vpack.c.b16 %v2149, %v2141
    %v2838 = vpack.c.b16 %v2150, %v2142
    %v2839 = vpack.c.b16 %v2151, %v2143
    %v2840 = vpack.c.b16 %v2152, %v2144
    %v2841 = vpack.c.b16 %v2153, %v2145
    %v2842 = vpack.c.b16 %v2154, %v2146
    %v2843 = vpack.c.b16 %v2163, %v2155
    %v2844 = vpack.c.b16 %v2164, %v2156
    %v2845 = vpack.c.b16 %v2165, %v2157
    %v2846 = vpack.c.b16 %v2166, %v2158
    %v2847 = vpack.c.b16 %v2167, %v2159
    %v2848 = vpack.c.b16 %v2168, %v2160
    %v2849 = vpack.c.b16 %v2169, %v2161
    %v2850 = vpack.c.b16 %v2170, %v2162
    %v2851 = vpack.c.b16 %v2179, %v2171
    %v2852 = vpack.c.b16 %v2180, %v2172
    %v2853 = vpack.c.b16 %v2181, %v2173
    %v2854 = vpack.c.b16 %v2182, %v2174
    %v2855 = vpack.c.b16 %v2183, %v2175
    %v2856 = vpack.c.b16 %v2184, %v2176
    %v2857 = vpack.c.b16 %v2185, %v2177
    %v2858 = vpack.c.b16 %v2186, %v2178
    %v2859 = vpack.c.b16 %v2195, %v2187
    %v2860 = vpack.c.b16 %v2196, %v2188
    %v2861 = vpack.c.b16 %v2197, %v2189
    %v2862 = vpack.c.b16 %v2198, %v2190
    %v2863 = vpack.c.b16 %v2199, %v2191
    %v2864 = vpack.c.b16 %v2200, %v2192
    %v2865 = vpack.c.b16 %v2201, %v2193
    %v2866 = vpack.c.b16 %v2202, %v2194
    %v2867 = vpack.c.b16 %v2211, %v2203
    %v2868 = vpack.c.b16 %v2212, %v2204
    %v2869 = vpack.c.b16 %v2213, %v2205
    %v2870 = vpack.c.b16 %v2214, %v2206
    %v2871 = vpack.c.b16 %v2215, %v2207
    %v2872 = vpack.c.b16 %v2216, %v2208
    %v2873 = vpack.c.b16 %v2217, %v2209
    %v2874 = vpack.c.b16 %v2218, %v2210
    %v2875 = vpack.c.b16 %v2227, %v2219
    %v2876 = vpack.c.b16 %v2228, %v2220
    %v2877 = vpack.c.b16 %v2229, %v2221
    %v2878 = vpack.c.b16 %v2230, %v2222
    %v2879 = vpack.c.b16 %v2231, %v2223
    %v2880 = vpack.c.b16 %v2232, %v2224
    %v2881 = vpack.c.b16 %v2233, %v2225
    %v2882 = vpack.c.b16 %v2234, %v2226
    %v2883 = vpack.c.b16 %v2243, %v2235
    %v2884 = vpack.c.b16 %v2244, %v2236
    %v2885 = vpack.c.b16 %v2245, %v2237
    %v2886 = vpack.c.b16 %v2246, %v2238
    %v2887 = vpack.c.b16 %v2247, %v2239
    %v2888 = vpack.c.b16 %v2248, %v2240
    %v2889 = vpack.c.b16 %v2249, %v2241
    %v2890 = vpack.c.b16 %v2250, %v2242
    %v2891 = vpack.c.b16 %v2259, %v2251
    %v2892 = vpack.c.b16 %v2260, %v2252
    %v2893 = vpack.c.b16 %v2261, %v2253
    %v2894 = vpack.c.b16 %v2262, %v2254
    %v2895 = vpack.c.b16 %v2263, %v2255
    %v2896 = vpack.c.b16 %v2264, %v2256
    %v2897 = vpack.c.b16 %v2265, %v2257
    %v2898 = vpack.c.b16 %v2266, %v2258
    %v2899 = vpack.c.b16 %v2275, %v2267
    %v2900 = vpack.c.b16 %v2276, %v2268
    %v2901 = vpack.c.b16 %v2277, %v2269
    %v2902 = vpack.c.b16 %v2278, %v2270
    %v2903 = vpack.c.b16 %v2279, %v2271
    %v2904 = vpack.c.b16 %v2280, %v2272
    %v2905 = vpack.c.b16 %v2281, %v2273
    %v2906 = vpack.c.b16 %v2282, %v2274
    %v2907 = vpack.c.b16 %v2291, %v2283
    %v2908 = vpack.c.b16 %v2292, %v2284
    %v2909 = vpack.c.b16 %v2293, %v2285
    %v2910 = vpack.c.b16 %v2294, %v2286
    %v2911 = vpack.c.b16 %v2295, %v2287
    %v2912 = vpack.c.b16 %v2296, %v2288
    %v2913 = vpack.c.b16 %v2297, %v2289
    %v2914 = vpack.c.b16 %v2298, %v2290
    %v2915 = vpack.c.b16 %v2307, %v2299
    %v2916 = vpack.c.b16 %v2308, %v2300
    %v2917 = vpack.c.b16 %v2309, %v2301
    %v2918 = vpack.c.b16 %v2310, %v2302
    %v2919 = vpack.c.b16 %v2311, %v2303
    %v2920 = vpack.c.b16 %v2312, %v2304
    %v2921 = vpack.c.b16 %v2313, %v2305
    %v2922 = vpack.c.b16 %v2314, %v2306
    %v2923 = vpack.c.b16 %v2323, %v2315
    %v2924 = vpack.c.b16 %v2324, %v2316
    %v2925 = vpack.c.b16 %v2325, %v2317
    %v2926 = vpack.c.b16 %v2326, %v2318
    %v2927 = vpack.c.b16 %v2327, %v2319
    %v2928 = vpack.c.b16 %v2328, %v2320
    %v2929 = vpack.c.b16 %v2329, %v2321
    %v2930 = vpack.c.b16 %v2330, %v2322
    %v2931 = vpack.c.b16 %v2339, %v2331
    %v2932 = vpack.c.b16 %v2340, %v2332
    %v2933 = vpack.c.b16 %v2341, %v2333
    %v2934 = vpack.c.b16 %v2342, %v2334
    %v2935 = vpack.c.b16 %v2343, %v2335
    %v2936 = vpack.c.b16 %v2344, %v2336
    %v2937 = vpack.c.b16 %v2345, %v2337
    %v2938 = vpack.c.b16 %v2346, %v2338
    %v2939 = vpack.c.b16 %v2355, %v2347
    %v2940 = vpack.c.b16 %v2356, %v2348
    %v2941 = vpack.c.b16 %v2357, %v2349
    %v2942 = vpack.c.b16 %v2358, %v2350
    %v2943 = vpack.c.b16 %v2359, %v2351
    %v2944 = vpack.c.b16 %v2360, %v2352
    %v2945 = vpack.c.b16 %v2361, %v2353
    %v2946 = vpack.c.b16 %v2362, %v2354
    %v2947 = vpack.c.b16 %v2371, %v2363
    %v2948 = vpack.c.b16 %v2372, %v2364
    %v2949 = vpack.c.b16 %v2373, %v2365
    %v2950 = vpack.c.b16 %v2374, %v2366
    %v2951 = vpack.c.b16 %v2375, %v2367
    %v2952 = vpack.c.b16 %v2376, %v2368
    %v2953 = vpack.c.b16 %v2377, %v2369
    %v2954 = vpack.c.b16 %v2378, %v2370
    %v2955 = vpack.c.b16 %v2387, %v2379
    %v2956 = vpack.c.b16 %v2388, %v2380
    %v2957 = vpack.c.b16 %v2389, %v2381
    %v2958 = vpack.c.b16 %v2390, %v2382
    %v2959 = vpack.c.b16 %v2391, %v2383
    %v2960 = vpack.c.b16 %v2392, %v2384
    %v2961 = vpack.c.b16 %v2393, %v2385
    %v2962 = vpack.c.b16 %v2394, %v2386
    %v2963 = vpack.c.b16 %v2403, %v2395
    %v2964 = vpack.c.b16 %v2404, %v2396
    %v2965 = vpack.c.b16 %v2405, %v2397
    %v2966 = vpack.c.b16 %v2406, %v2398
    %v2967 = vpack.c.b16 %v2407, %v2399
    %v2968 = vpack.c.b16 %v2408, %v2400
    %v2969 = vpack.c.b16 %v2409, %v2401
    %v2970 = vpack.c.b16 %v2410, %v2402
    %v2971 = vpack.c.b16 %v2419, %v2411
    %v2972 = vpack.c.b16 %v2420, %v2412
    %v2973 = vpack.c.b16 %v2421, %v2413
    %v2974 = vpack.c.b16 %v2422, %v2414
    %v2975 = vpack.c.b16 %v2423, %v2415
    %v2976 = vpack.c.b16 %v2424, %v2416
    %v2977 = vpack.c.b16 %v2425, %v2417
    %v2978 = vpack.c.b16 %v2426, %v2418
    %v2979 = vpack.c.b16 %v2435, %v2427
    %v2980 = vpack.c.b16 %v2436, %v2428
    %v2981 = vpack.c.b16 %v2437, %v2429
    %v2982 = vpack.c.b16 %v2438, %v2430
    %v2983 = vpack.c.b16 %v2439, %v2431
    %v2984 = vpack.c.b16 %v2440, %v2432
    %v2985 = vpack.c.b16 %v2441, %v2433
    %v2986 = vpack.c.b16 %v2442, %v2434
    %v2987 = vpack.c.b16 %v2451, %v2443
    %v2988 = vpack.c.b16 %v2452, %v2444
    %v2989 = vpack.c.b16 %v2453, %v2445
    %v2990 = vpack.c.b16 %v2454, %v2446
    %v2991 = vpack.c.b16 %v2455, %v2447
    %v2992 = vpack.c.b16 %v2456, %v2448
    %v2993 = vpack.c.b16 %v2457, %v2449
    %v2994 = vpack.c.b16 %v2458, %v2450
    %v2995 = vpack.c.b16 %v2467, %v2459
    %v2996 = vpack.c.b16 %v2468, %v2460
    %v2997 = vpack.c.b16 %v2469, %v2461
    %v2998 = vpack.c.b16 %v2470, %v2462
    %v2999 = vpack.c.b16 %v2471, %v2463
    %v3000 = vpack.c.b16 %v2472, %v2464
    %v3001 = vpack.c.b16 %v2473, %v2465
    %v3002 = vpack.c.b16 %v2474, %v2466
    %v3003 = vpack.c.b16 %v2483, %v2475
    %v3004 = vpack.c.b16 %v2484, %v2476
    %v3005 = vpack.c.b16 %v2485, %v2477
    %v3006 = vpack.c.b16 %v2486, %v2478
    %v3007 = vpack.c.b16 %v2487, %v2479
    %v3008 = vpack.c.b16 %v2488, %v2480
    %v3009 = vpack.c.b16 %v2489, %v2481
    %v3010 = vpack.c.b16 %v2490, %v2482
    %v3011 = vpack.c.b16 %v2499, %v2491
    %v3012 = vpack.c.b16 %v2500, %v2492
    %v3013 = vpack.c.b16 %v2501, %v2493
    %v3014 = vpack.c.b16 %v2502, %v2494
    %v3015 = vpack.c.b16 %v2503, %v2495
    %v3016 = vpack.c.b16 %v2504, %v2496
    %v3017 = vpack.c.b16 %v2505, %v2497
    %v3018 = vpack.c.b16 %v2506, %v2498
    %3531 = vmatprep.subr.bf16.mxu0 %v2508
    %3532 = vmatpush1.bf16.msra.mxu0 %v2507
    %3533 = vmatprep.subr.bf16.mxu0 %v2516
    %3534 = vmatpush1.bf16.msra.mxu0 %v2515
    %3535 = vmatprep.subr.bf16.mxu0 %v2524
    %3536 = vmatpush1.bf16.msra.mxu0 %v2523
    %3537 = vmatprep.subr.bf16.mxu0 %v2532
    %3538 = vmatpush1.bf16.msra.mxu0 %v2531
    %3539 = vmatprep.subr.bf16.mxu0 %v2540
    %3540 = vmatpush1.bf16.msra.mxu0 %v2539
    %3541 = vmatprep.subr.bf16.mxu0 %v2548
    %3542 = vmatpush1.bf16.msra.mxu0 %v2547
    %3543 = vmatprep.subr.bf16.mxu0 %v2556
    %3544 = vmatpush1.bf16.msra.mxu0 %v2555
    %3545 = vmatprep.subr.bf16.mxu0 %v2564
    %3546 = vmatpush1.bf16.msra.mxu0 %v2563
    %3547 = vmatprep.subr.bf16.mxu0 %v2572
    %3548 = vmatpush1.bf16.msra.mxu0 %v2571
    %3549 = vmatprep.subr.bf16.mxu0 %v2580
    %3550 = vmatpush1.bf16.msra.mxu0 %v2579
    %3551 = vmatprep.subr.bf16.mxu0 %v2588
    %3552 = vmatpush1.bf16.msra.mxu0 %v2587
    %3553 = vmatprep.subr.bf16.mxu0 %v2596
    %3554 = vmatpush1.bf16.msra.mxu0 %v2595
    %3555 = vmatprep.subr.bf16.mxu0 %v2604
    %3556 = vmatpush1.bf16.msra.mxu0 %v2603
    %3557 = vmatprep.subr.bf16.mxu0 %v2612
    %3558 = vmatpush1.bf16.msra.mxu0 %v2611
    %3559 = vmatprep.subr.bf16.mxu0 %v2620
    %3560 = vmatpush1.bf16.msra.mxu0 %v2619
    %3561 = vmatprep.subr.bf16.mxu0 %v2628
    %3562 = vmatpush1.bf16.msra.mxu0 %v2627
    %3563 = vmatprep.mubr.bf16.mxu0 %v410
    %3564 = vmatmul.mubr.bf16.gmra.mrb[0].mxu0 %v409
    %v3565 = vpop.f32.mrb[0].mxu0
    %v3566 = vadd.f32 %v934, %v3565
    %v3567 = vpop.f32.mrb[0].mxu0
    %v3568 = vadd.f32 %v938, %v3567
    %v3569 = vpop.f32.mrb[0].mxu0
    %v3570 = vpop.f32.mrb[0].mxu0
    %3571 = vdwg.mxu0
    %3572 = vmatprep.subr.bf16.mxu0 %v2636
    %3573 = vmatpush1.bf16.msra.mxu0 %v2635
    %3574 = vmatprep.subr.bf16.mxu0 %v2644
    %3575 = vmatpush1.bf16.msra.mxu0 %v2643
    %3576 = vmatprep.subr.bf16.mxu0 %v2652
    %3577 = vmatpush1.bf16.msra.mxu0 %v2651
    %3578 = vmatprep.subr.bf16.mxu0 %v2660
    %3579 = vmatpush1.bf16.msra.mxu0 %v2659
    %3580 = vmatprep.subr.bf16.mxu0 %v2668
    %3581 = vmatpush1.bf16.msra.mxu0 %v2667
    %3582 = vmatprep.subr.bf16.mxu0 %v2676
    %3583 = vmatpush1.bf16.msra.mxu0 %v2675
    %3584 = vmatprep.subr.bf16.mxu0 %v2684
    %3585 = vmatpush1.bf16.msra.mxu0 %v2683
    %3586 = vmatprep.subr.bf16.mxu0 %v2692
    %3587 = vmatpush1.bf16.msra.mxu0 %v2691
    %3588 = vmatprep.subr.bf16.mxu0 %v2700
    %3589 = vmatpush1.bf16.msra.mxu0 %v2699
    %3590 = vmatprep.subr.bf16.mxu0 %v2708
    %3591 = vmatpush1.bf16.msra.mxu0 %v2707
    %3592 = vmatprep.subr.bf16.mxu0 %v2716
    %3593 = vmatpush1.bf16.msra.mxu0 %v2715
    %3594 = vmatprep.subr.bf16.mxu0 %v2724
    %3595 = vmatpush1.bf16.msra.mxu0 %v2723
    %3596 = vmatprep.subr.bf16.mxu0 %v2732
    %3597 = vmatpush1.bf16.msra.mxu0 %v2731
    %3598 = vmatprep.subr.bf16.mxu0 %v2740
    %3599 = vmatpush1.bf16.msra.mxu0 %v2739
    %3600 = vmatprep.subr.bf16.mxu0 %v2748
    %3601 = vmatpush1.bf16.msra.mxu0 %v2747
    %3602 = vmatprep.subr.bf16.mxu0 %v2756
    %3603 = vmatpush1.bf16.msra.mxu0 %v2755
    %3604 = vmatprep.mubr.bf16.mxu0 %v412
    %3605 = vmatmul.mubr.bf16.gmra.mrb[0].mxu0 %v411
    %v3606 = vpop.f32.mrb[0].mxu0
    %v3607 = vadd.f32 %v3566, %v3606
    %v3608 = vpop.f32.mrb[0].mxu0
    %v3609 = vadd.f32 %v3568, %v3608
    %v3610 = vpop.f32.mrb[0].mxu0
    %v3611 = vpop.f32.mrb[0].mxu0
    %3612 = vdwg.mxu0
    %3613 = vmatprep.subr.bf16.mxu0 %v2764
    %3614 = vmatpush1.bf16.msra.mxu0 %v2763
    %3615 = vmatprep.subr.bf16.mxu0 %v2772
    %3616 = vmatpush1.bf16.msra.mxu0 %v2771
    %3617 = vmatprep.subr.bf16.mxu0 %v2780
    %3618 = vmatpush1.bf16.msra.mxu0 %v2779
    %3619 = vmatprep.subr.bf16.mxu0 %v2788
    %3620 = vmatpush1.bf16.msra.mxu0 %v2787
    %3621 = vmatprep.subr.bf16.mxu0 %v2796
    %3622 = vmatpush1.bf16.msra.mxu0 %v2795
    %3623 = vmatprep.subr.bf16.mxu0 %v2804
    %3624 = vmatpush1.bf16.msra.mxu0 %v2803
    %3625 = vmatprep.subr.bf16.mxu0 %v2812
    %3626 = vmatpush1.bf16.msra.mxu0 %v2811
    %3627 = vmatprep.subr.bf16.mxu0 %v2820
    %3628 = vmatpush1.bf16.msra.mxu0 %v2819
    %3629 = vmatprep.subr.bf16.mxu0 %v2828
    %3630 = vmatpush1.bf16.msra.mxu0 %v2827
    %3631 = vmatprep.subr.bf16.mxu0 %v2836
    %3632 = vmatpush1.bf16.msra.mxu0 %v2835
    %3633 = vmatprep.subr.bf16.mxu0 %v2844
    %3634 = vmatpush1.bf16.msra.mxu0 %v2843
    %3635 = vmatprep.subr.bf16.mxu0 %v2852
    %3636 = vmatpush1.bf16.msra.mxu0 %v2851
    %3637 = vmatprep.subr.bf16.mxu0 %v2860
    %3638 = vmatpush1.bf16.msra.mxu0 %v2859
    %3639 = vmatprep.subr.bf16.mxu0 %v2868
    %3640 = vmatpush1.bf16.msra.mxu0 %v2867
    %3641 = vmatprep.subr.bf16.mxu0 %v2876
    %3642 = vmatpush1.bf16.msra.mxu0 %v2875
    %3643 = vmatprep.subr.bf16.mxu0 %v2884
    %3644 = vmatpush1.bf16.msra.mxu0 %v2883
    %3645 = vmatprep.mubr.bf16.mxu0 %v414
    %3646 = vmatmul.mubr.bf16.gmra.mrb[0].mxu0 %v413
    %v3647 = vpop.f32.mrb[0].mxu0
    %v3648 = vadd.f32 %v3607, %v3647
    %v3649 = vpop.f32.mrb[0].mxu0
    %v3650 = vadd.f32 %v3609, %v3649
    %v3651 = vpop.f32.mrb[0].mxu0
    %v3652 = vpop.f32.mrb[0].mxu0
    %3653 = vdwg.mxu0
    %3654 = vmatprep.subr.bf16.mxu0 %v2892
    %3655 = vmatpush1.bf16.msra.mxu0 %v2891
    %3656 = vmatprep.subr.bf16.mxu0 %v2900
    %3657 = vmatpush1.bf16.msra.mxu0 %v2899
    %3658 = vmatprep.subr.bf16.mxu0 %v2908
    %3659 = vmatpush1.bf16.msra.mxu0 %v2907
    %3660 = vmatprep.subr.bf16.mxu0 %v2916
    %3661 = vmatpush1.bf16.msra.mxu0 %v2915
    %3662 = vmatprep.subr.bf16.mxu0 %v2924
    %3663 = vmatpush1.bf16.msra.mxu0 %v2923
    %3664 = vmatprep.subr.bf16.mxu0 %v2932
    %3665 = vmatpush1.bf16.msra.mxu0 %v2931
    %3666 = vmatprep.subr.bf16.mxu0 %v2940
    %3667 = vmatpush1.bf16.msra.mxu0 %v2939
    %3668 = vmatprep.subr.bf16.mxu0 %v2948
    %3669 = vmatpush1.bf16.msra.mxu0 %v2947
    %3670 = vmatprep.subr.bf16.mxu0 %v2956
    %3671 = vmatpush1.bf16.msra.mxu0 %v2955
    %3672 = vmatprep.subr.bf16.mxu0 %v2964
    %3673 = vmatpush1.bf16.msra.mxu0 %v2963
    %3674 = vmatprep.subr.bf16.mxu0 %v2972
    %3675 = vmatpush1.bf16.msra.mxu0 %v2971
    %3676 = vmatprep.subr.bf16.mxu0 %v2980
    %3677 = vmatpush1.bf16.msra.mxu0 %v2979
    %3678 = vmatprep.subr.bf16.mxu0 %v2988
    %3679 = vmatpush1.bf16.msra.mxu0 %v2987
    %3680 = vmatprep.subr.bf16.mxu0 %v2996
    %3681 = vmatpush1.bf16.msra.mxu0 %v2995
    %3682 = vmatprep.subr.bf16.mxu0 %v3004
    %3683 = vmatpush1.bf16.msra.mxu0 %v3003
    %3684 = vmatprep.subr.bf16.mxu0 %v3012
    %3685 = vmatpush1.bf16.msra.mxu0 %v3011
    %3686 = vmatprep.mubr.bf16.mxu0 %v416
    %3687 = vmatmul.mubr.bf16.gmra.mrb[0].mxu0 %v415
    %v3688 = vpop.f32.mrb[0].mxu0
    %v3689 = vadd.f32 %v3648, %v3688
    %v3690 = vpop.f32.mrb[0].mxu0
    %v3691 = vadd.f32 %v3650, %v3690
    %v3692 = vpop.f32.mrb[0].mxu0
    %v3693 = vpop.f32.mrb[0].mxu0
    %3694 = vdwg.mxu0
    %3695 = vmatprep.subr.bf16.mxu0 %v2510
    %3696 = vmatpush1.bf16.msra.mxu0 %v2509
    %3697 = vmatprep.subr.bf16.mxu0 %v2518
    %3698 = vmatpush1.bf16.msra.mxu0 %v2517
    %3699 = vmatprep.subr.bf16.mxu0 %v2526
    %3700 = vmatpush1.bf16.msra.mxu0 %v2525
    %3701 = vmatprep.subr.bf16.mxu0 %v2534
    %3702 = vmatpush1.bf16.msra.mxu0 %v2533
    %3703 = vmatprep.subr.bf16.mxu0 %v2542
    %3704 = vmatpush1.bf16.msra.mxu0 %v2541
    %3705 = vmatprep.subr.bf16.mxu0 %v2550
    %3706 = vmatpush1.bf16.msra.mxu0 %v2549
    %3707 = vmatprep.subr.bf16.mxu0 %v2558
    %3708 = vmatpush1.bf16.msra.mxu0 %v2557
    %3709 = vmatprep.subr.bf16.mxu0 %v2566
    %3710 = vmatpush1.bf16.msra.mxu0 %v2565
    %3711 = vmatprep.subr.bf16.mxu0 %v2574
    %3712 = vmatpush1.bf16.msra.mxu0 %v2573
    %3713 = vmatprep.subr.bf16.mxu0 %v2582
    %3714 = vmatpush1.bf16.msra.mxu0 %v2581
    %3715 = vmatprep.subr.bf16.mxu0 %v2590
    %3716 = vmatpush1.bf16.msra.mxu0 %v2589
    %3717 = vmatprep.subr.bf16.mxu0 %v2598
    %3718 = vmatpush1.bf16.msra.mxu0 %v2597
    %3719 = vmatprep.subr.bf16.mxu0 %v2606
    %3720 = vmatpush1.bf16.msra.mxu0 %v2605
    %3721 = vmatprep.subr.bf16.mxu0 %v2614
    %3722 = vmatpush1.bf16.msra.mxu0 %v2613
    %3723 = vmatprep.subr.bf16.mxu0 %v2622
    %3724 = vmatpush1.bf16.msra.mxu0 %v2621
    %3725 = vmatprep.subr.bf16.mxu0 %v2630
    %3726 = vmatpush1.bf16.msra.mxu0 %v2629
    %3727 = vmatprep.mubr.bf16.mxu0 %v410
    %3728 = vmatmul.mubr.bf16.gmra.mrb[0].mxu0 %v409
    %v3729 = vpop.f32.mrb[0].mxu0
    %v3730 = vadd.f32 %v942, %v3729
    %v3731 = vpop.f32.mrb[0].mxu0
    %v3732 = vadd.f32 %v946, %v3731
    %v3733 = vpop.f32.mrb[0].mxu0
    %v3734 = vpop.f32.mrb[0].mxu0
    %3735 = vdwg.mxu0
    %3736 = vmatprep.subr.bf16.mxu0 %v2638
    %3737 = vmatpush1.bf16.msra.mxu0 %v2637
    %3738 = vmatprep.subr.bf16.mxu0 %v2646
    %3739 = vmatpush1.bf16.msra.mxu0 %v2645
    %3740 = vmatprep.subr.bf16.mxu0 %v2654
    %3741 = vmatpush1.bf16.msra.mxu0 %v2653
    %3742 = vmatprep.subr.bf16.mxu0 %v2662
    %3743 = vmatpush1.bf16.msra.mxu0 %v2661
    %3744 = vmatprep.subr.bf16.mxu0 %v2670
    %3745 = vmatpush1.bf16.msra.mxu0 %v2669
    %3746 = vmatprep.subr.bf16.mxu0 %v2678
    %3747 = vmatpush1.bf16.msra.mxu0 %v2677
    %3748 = vmatprep.subr.bf16.mxu0 %v2686
    %3749 = vmatpush1.bf16.msra.mxu0 %v2685
    %3750 = vmatprep.subr.bf16.mxu0 %v2694
    %3751 = vmatpush1.bf16.msra.mxu0 %v2693
    %3752 = vmatprep.subr.bf16.mxu0 %v2702
    %3753 = vmatpush1.bf16.msra.mxu0 %v2701
    %3754 = vmatprep.subr.bf16.mxu0 %v2710
    %3755 = vmatpush1.bf16.msra.mxu0 %v2709
    %3756 = vmatprep.subr.bf16.mxu0 %v2718
    %3757 = vmatpush1.bf16.msra.mxu0 %v2717
    %3758 = vmatprep.subr.bf16.mxu0 %v2726
    %3759 = vmatpush1.bf16.msra.mxu0 %v2725
    %3760 = vmatprep.subr.bf16.mxu0 %v2734
    %3761 = vmatpush1.bf16.msra.mxu0 %v2733
    %3762 = vmatprep.subr.bf16.mxu0 %v2742
    %3763 = vmatpush1.bf16.msra.mxu0 %v2741
    %3764 = vmatprep.subr.bf16.mxu0 %v2750
    %3765 = vmatpush1.bf16.msra.mxu0 %v2749
    %3766 = vmatprep.subr.bf16.mxu0 %v2758
    %3767 = vmatpush1.bf16.msra.mxu0 %v2757
    %3768 = vmatprep.mubr.bf16.mxu0 %v412
    %3769 = vmatmul.mubr.bf16.gmra.mrb[0].mxu0 %v411
    %v3770 = vpop.f32.mrb[0].mxu0
    %v3771 = vadd.f32 %v3730, %v3770
    %v3772 = vpop.f32.mrb[0].mxu0
    %v3773 = vadd.f32 %v3732, %v3772
    %v3774 = vpop.f32.mrb[0].mxu0
    %v3775 = vpop.f32.mrb[0].mxu0
    %3776 = vdwg.mxu0
    %3777 = vmatprep.subr.bf16.mxu0 %v2766
    %3778 = vmatpush1.bf16.msra.mxu0 %v2765
    %3779 = vmatprep.subr.bf16.mxu0 %v2774
    %3780 = vmatpush1.bf16.msra.mxu0 %v2773
    %3781 = vmatprep.subr.bf16.mxu0 %v2782
    %3782 = vmatpush1.bf16.msra.mxu0 %v2781
    %3783 = vmatprep.subr.bf16.mxu0 %v2790
    %3784 = vmatpush1.bf16.msra.mxu0 %v2789
    %3785 = vmatprep.subr.bf16.mxu0 %v2798
    %3786 = vmatpush1.bf16.msra.mxu0 %v2797
    %3787 = vmatprep.subr.bf16.mxu0 %v2806
    %3788 = vmatpush1.bf16.msra.mxu0 %v2805
    %3789 = vmatprep.subr.bf16.mxu0 %v2814
    %3790 = vmatpush1.bf16.msra.mxu0 %v2813
    %3791 = vmatprep.subr.bf16.mxu0 %v2822
    %3792 = vmatpush1.bf16.msra.mxu0 %v2821
    %3793 = vmatprep.subr.bf16.mxu0 %v2830
    %3794 = vmatpush1.bf16.msra.mxu0 %v2829
    %3795 = vmatprep.subr.bf16.mxu0 %v2838
    %3796 = vmatpush1.bf16.msra.mxu0 %v2837
    %3797 = vmatprep.subr.bf16.mxu0 %v2846
    %3798 = vmatpush1.bf16.msra.mxu0 %v2845
    %3799 = vmatprep.subr.bf16.mxu0 %v2854
    %3800 = vmatpush1.bf16.msra.mxu0 %v2853
    %3801 = vmatprep.subr.bf16.mxu0 %v2862
    %3802 = vmatpush1.bf16.msra.mxu0 %v2861
    %3803 = vmatprep.subr.bf16.mxu0 %v2870
    %3804 = vmatpush1.bf16.msra.mxu0 %v2869
    %3805 = vmatprep.subr.bf16.mxu0 %v2878
    %3806 = vmatpush1.bf16.msra.mxu0 %v2877
    %3807 = vmatprep.subr.bf16.mxu0 %v2886
    %3808 = vmatpush1.bf16.msra.mxu0 %v2885
    %3809 = vmatprep.mubr.bf16.mxu0 %v414
    %3810 = vmatmul.mubr.bf16.gmra.mrb[0].mxu0 %v413
    %v3811 = vpop.f32.mrb[0].mxu0
    %v3812 = vadd.f32 %v3771, %v3811
    %v3813 = vpop.f32.mrb[0].mxu0
    %v3814 = vadd.f32 %v3773, %v3813
    %v3815 = vpop.f32.mrb[0].mxu0
    %v3816 = vpop.f32.mrb[0].mxu0
    %3817 = vdwg.mxu0
    %3818 = vmatprep.subr.bf16.mxu0 %v2894
    %3819 = vmatpush1.bf16.msra.mxu0 %v2893
    %3820 = vmatprep.subr.bf16.mxu0 %v2902
    %3821 = vmatpush1.bf16.msra.mxu0 %v2901
    %3822 = vmatprep.subr.bf16.mxu0 %v2910
    %3823 = vmatpush1.bf16.msra.mxu0 %v2909
    %3824 = vmatprep.subr.bf16.mxu0 %v2918
    %3825 = vmatpush1.bf16.msra.mxu0 %v2917
    %3826 = vmatprep.subr.bf16.mxu0 %v2926
    %3827 = vmatpush1.bf16.msra.mxu0 %v2925
    %3828 = vmatprep.subr.bf16.mxu0 %v2934
    %3829 = vmatpush1.bf16.msra.mxu0 %v2933
    %3830 = vmatprep.subr.bf16.mxu0 %v2942
    %3831 = vmatpush1.bf16.msra.mxu0 %v2941
    %3832 = vmatprep.subr.bf16.mxu0 %v2950
    %3833 = vmatpush1.bf16.msra.mxu0 %v2949
    %3834 = vmatprep.subr.bf16.mxu0 %v2958
    %3835 = vmatpush1.bf16.msra.mxu0 %v2957
    %3836 = vmatprep.subr.bf16.mxu0 %v2966
    %3837 = vmatpush1.bf16.msra.mxu0 %v2965
    %3838 = vmatprep.subr.bf16.mxu0 %v2974
    %3839 = vmatpush1.bf16.msra.mxu0 %v2973
    %3840 = vmatprep.subr.bf16.mxu0 %v2982
    %3841 = vmatpush1.bf16.msra.mxu0 %v2981
    %3842 = vmatprep.subr.bf16.mxu0 %v2990
    %3843 = vmatpush1.bf16.msra.mxu0 %v2989
    %3844 = vmatprep.subr.bf16.mxu0 %v2998
    %3845 = vmatpush1.bf16.msra.mxu0 %v2997
    %3846 = vmatprep.subr.bf16.mxu0 %v3006
    %3847 = vmatpush1.bf16.msra.mxu0 %v3005
    %3848 = vmatprep.subr.bf16.mxu0 %v3014
    %3849 = vmatpush1.bf16.msra.mxu0 %v3013
    %3850 = vmatprep.mubr.bf16.mxu0 %v416
    %3851 = vmatmul.mubr.bf16.gmra.mrb[0].mxu0 %v415
    %v3852 = vpop.f32.mrb[0].mxu0
    %v3853 = vadd.f32 %v3812, %v3852
    %v3854 = vpop.f32.mrb[0].mxu0
    %v3855 = vadd.f32 %v3814, %v3854
    %v3856 = vpop.f32.mrb[0].mxu0
    %v3857 = vpop.f32.mrb[0].mxu0
    %3858 = vdwg.mxu0
    %3859 = vmatprep.subr.bf16.mxu0 %v2512
    %3860 = vmatpush1.bf16.msra.mxu0 %v2511
    %3861 = vmatprep.subr.bf16.mxu0 %v2520
    %3862 = vmatpush1.bf16.msra.mxu0 %v2519
    %3863 = vmatprep.subr.bf16.mxu0 %v2528
    %3864 = vmatpush1.bf16.msra.mxu0 %v2527
    %3865 = vmatprep.subr.bf16.mxu0 %v2536
    %3866 = vmatpush1.bf16.msra.mxu0 %v2535
    %3867 = vmatprep.subr.bf16.mxu0 %v2544
    %3868 = vmatpush1.bf16.msra.mxu0 %v2543
    %3869 = vmatprep.subr.bf16.mxu0 %v2552
    %3870 = vmatpush1.bf16.msra.mxu0 %v2551
    %3871 = vmatprep.subr.bf16.mxu0 %v2560
    %3872 = vmatpush1.bf16.msra.mxu0 %v2559
    %3873 = vmatprep.subr.bf16.mxu0 %v2568
    %3874 = vmatpush1.bf16.msra.mxu0 %v2567
    %3875 = vmatprep.subr.bf16.mxu0 %v2576
    %3876 = vmatpush1.bf16.msra.mxu0 %v2575
    %3877 = vmatprep.subr.bf16.mxu0 %v2584
    %3878 = vmatpush1.bf16.msra.mxu0 %v2583
    %3879 = vmatprep.subr.bf16.mxu0 %v2592
    %3880 = vmatpush1.bf16.msra.mxu0 %v2591
    %3881 = vmatprep.subr.bf16.mxu0 %v2600
    %3882 = vmatpush1.bf16.msra.mxu0 %v2599
    %3883 = vmatprep.subr.bf16.mxu0 %v2608
    %3884 = vmatpush1.bf16.msra.mxu0 %v2607
    %3885 = vmatprep.subr.bf16.mxu0 %v2616
    %3886 = vmatpush1.bf16.msra.mxu0 %v2615
    %3887 = vmatprep.subr.bf16.mxu0 %v2624
    %3888 = vmatpush1.bf16.msra.mxu0 %v2623
    %3889 = vmatprep.subr.bf16.mxu0 %v2632
    %3890 = vmatpush1.bf16.msra.mxu0 %v2631
    %3891 = vmatprep.mubr.bf16.mxu0 %v410
    %3892 = vmatmul.mubr.bf16.gmra.mrb[0].mxu0 %v409
    %v3893 = vpop.f32.mrb[0].mxu0
    %v3894 = vadd.f32 %v950, %v3893
    %v3895 = vpop.f32.mrb[0].mxu0
    %v3896 = vadd.f32 %v954, %v3895
    %v3897 = vpop.f32.mrb[0].mxu0
    %v3898 = vpop.f32.mrb[0].mxu0
    %3899 = vdwg.mxu0
    %3900 = vmatprep.subr.bf16.mxu0 %v2640
    %3901 = vmatpush1.bf16.msra.mxu0 %v2639
    %3902 = vmatprep.subr.bf16.mxu0 %v2648
    %3903 = vmatpush1.bf16.msra.mxu0 %v2647
    %3904 = vmatprep.subr.bf16.mxu0 %v2656
    %3905 = vmatpush1.bf16.msra.mxu0 %v2655
    %3906 = vmatprep.subr.bf16.mxu0 %v2664
    %3907 = vmatpush1.bf16.msra.mxu0 %v2663
    %3908 = vmatprep.subr.bf16.mxu0 %v2672
    %3909 = vmatpush1.bf16.msra.mxu0 %v2671
    %3910 = vmatprep.subr.bf16.mxu0 %v2680
    %3911 = vmatpush1.bf16.msra.mxu0 %v2679
    %3912 = vmatprep.subr.bf16.mxu0 %v2688
    %3913 = vmatpush1.bf16.msra.mxu0 %v2687
    %3914 = vmatprep.subr.bf16.mxu0 %v2696
    %3915 = vmatpush1.bf16.msra.mxu0 %v2695
    %3916 = vmatprep.subr.bf16.mxu0 %v2704
    %3917 = vmatpush1.bf16.msra.mxu0 %v2703
    %3918 = vmatprep.subr.bf16.mxu0 %v2712
    %3919 = vmatpush1.bf16.msra.mxu0 %v2711
    %3920 = vmatprep.subr.bf16.mxu0 %v2720
    %3921 = vmatpush1.bf16.msra.mxu0 %v2719
    %3922 = vmatprep.subr.bf16.mxu0 %v2728
    %3923 = vmatpush1.bf16.msra.mxu0 %v2727
    %3924 = vmatprep.subr.bf16.mxu0 %v2736
    %3925 = vmatpush1.bf16.msra.mxu0 %v2735
    %3926 = vmatprep.subr.bf16.mxu0 %v2744
    %3927 = vmatpush1.bf16.msra.mxu0 %v2743
    %3928 = vmatprep.subr.bf16.mxu0 %v2752
    %3929 = vmatpush1.bf16.msra.mxu0 %v2751
    %3930 = vmatprep.subr.bf16.mxu0 %v2760
    %3931 = vmatpush1.bf16.msra.mxu0 %v2759
    %3932 = vmatprep.mubr.bf16.mxu0 %v412
    %3933 = vmatmul.mubr.bf16.gmra.mrb[0].mxu0 %v411
    %v3934 = vpop.f32.mrb[0].mxu0
    %v3935 = vadd.f32 %v3894, %v3934
    %v3936 = vpop.f32.mrb[0].mxu0
    %v3937 = vadd.f32 %v3896, %v3936
    %v3938 = vpop.f32.mrb[0].mxu0
    %v3939 = vpop.f32.mrb[0].mxu0
    %3940 = vdwg.mxu0
    %3941 = vmatprep.subr.bf16.mxu0 %v2768
    %3942 = vmatpush1.bf16.msra.mxu0 %v2767
    %3943 = vmatprep.subr.bf16.mxu0 %v2776
    %3944 = vmatpush1.bf16.msra.mxu0 %v2775
    %3945 = vmatprep.subr.bf16.mxu0 %v2784
    %3946 = vmatpush1.bf16.msra.mxu0 %v2783
    %3947 = vmatprep.subr.bf16.mxu0 %v2792
    %3948 = vmatpush1.bf16.msra.mxu0 %v2791
    %3949 = vmatprep.subr.bf16.mxu0 %v2800
    %3950 = vmatpush1.bf16.msra.mxu0 %v2799
    %3951 = vmatprep.subr.bf16.mxu0 %v2808
    %3952 = vmatpush1.bf16.msra.mxu0 %v2807
    %3953 = vmatprep.subr.bf16.mxu0 %v2816
    %3954 = vmatpush1.bf16.msra.mxu0 %v2815
    %3955 = vmatprep.subr.bf16.mxu0 %v2824
    %3956 = vmatpush1.bf16.msra.mxu0 %v2823
    %3957 = vmatprep.subr.bf16.mxu0 %v2832
    %3958 = vmatpush1.bf16.msra.mxu0 %v2831
    %3959 = vmatprep.subr.bf16.mxu0 %v2840
    %3960 = vmatpush1.bf16.msra.mxu0 %v2839
    %3961 = vmatprep.subr.bf16.mxu0 %v2848
    %3962 = vmatpush1.bf16.msra.mxu0 %v2847
    %3963 = vmatprep.subr.bf16.mxu0 %v2856
    %3964 = vmatpush1.bf16.msra.mxu0 %v2855
    %3965 = vmatprep.subr.bf16.mxu0 %v2864
    %3966 = vmatpush1.bf16.msra.mxu0 %v2863
    %3967 = vmatprep.subr.bf16.mxu0 %v2872
    %3968 = vmatpush1.bf16.msra.mxu0 %v2871
    %3969 = vmatprep.subr.bf16.mxu0 %v2880
    %3970 = vmatpush1.bf16.msra.mxu0 %v2879
    %3971 = vmatprep.subr.bf16.mxu0 %v2888
    %3972 = vmatpush1.bf16.msra.mxu0 %v2887
    %3973 = vmatprep.mubr.bf16.mxu0 %v414
    %3974 = vmatmul.mubr.bf16.gmra.mrb[0].mxu0 %v413
    %v3975 = vpop.f32.mrb[0].mxu0
    %v3976 = vadd.f32 %v3935, %v3975
    %v3977 = vpop.f32.mrb[0].mxu0
    %v3978 = vadd.f32 %v3937, %v3977
    %v3979 = vpop.f32.mrb[0].mxu0
    %v3980 = vpop.f32.mrb[0].mxu0
    %3981 = vdwg.mxu0
    %3982 = vmatprep.subr.bf16.mxu0 %v2896
    %3983 = vmatpush1.bf16.msra.mxu0 %v2895
    %3984 = vmatprep.subr.bf16.mxu0 %v2904
    %3985 = vmatpush1.bf16.msra.mxu0 %v2903
    %3986 = vmatprep.subr.bf16.mxu0 %v2912
    %3987 = vmatpush1.bf16.msra.mxu0 %v2911
    %3988 = vmatprep.subr.bf16.mxu0 %v2920
    %3989 = vmatpush1.bf16.msra.mxu0 %v2919
    %3990 = vmatprep.subr.bf16.mxu0 %v2928
    %3991 = vmatpush1.bf16.msra.mxu0 %v2927
    %3992 = vmatprep.subr.bf16.mxu0 %v2936
    %3993 = vmatpush1.bf16.msra.mxu0 %v2935
    %3994 = vmatprep.subr.bf16.mxu0 %v2944
    %3995 = vmatpush1.bf16.msra.mxu0 %v2943
    %3996 = vmatprep.subr.bf16.mxu0 %v2952
    %3997 = vmatpush1.bf16.msra.mxu0 %v2951
    %3998 = vmatprep.subr.bf16.mxu0 %v2960
    %3999 = vmatpush1.bf16.msra.mxu0 %v2959
    %4000 = vmatprep.subr.bf16.mxu0 %v2968
    %4001 = vmatpush1.bf16.msra.mxu0 %v2967
    %4002 = vmatprep.subr.bf16.mxu0 %v2976
    %4003 = vmatpush1.bf16.msra.mxu0 %v2975
    %4004 = vmatprep.subr.bf16.mxu0 %v2984
    %4005 = vmatpush1.bf16.msra.mxu0 %v2983
    %4006 = vmatprep.subr.bf16.mxu0 %v2992
    %4007 = vmatpush1.bf16.msra.mxu0 %v2991
    %4008 = vmatprep.subr.bf16.mxu0 %v3000
    %4009 = vmatpush1.bf16.msra.mxu0 %v2999
    %4010 = vmatprep.subr.bf16.mxu0 %v3008
    %4011 = vmatpush1.bf16.msra.mxu0 %v3007
    %4012 = vmatprep.subr.bf16.mxu0 %v3016
    %4013 = vmatpush1.bf16.msra.mxu0 %v3015
    %4014 = vmatprep.mubr.bf16.mxu0 %v416
    %4015 = vmatmul.mubr.bf16.gmra.mrb[0].mxu0 %v415
    %v4016 = vpop.f32.mrb[0].mxu0
    %v4017 = vadd.f32 %v3976, %v4016
    %v4018 = vpop.f32.mrb[0].mxu0
    %v4019 = vadd.f32 %v3978, %v4018
    %v4020 = vpop.f32.mrb[0].mxu0
    %v4021 = vpop.f32.mrb[0].mxu0
    %4022 = vdwg.mxu0
    %4023 = vmatprep.subr.bf16.mxu0 %v2514
    %4024 = vmatpush1.bf16.msra.mxu0 %v2513
    %4025 = vmatprep.subr.bf16.mxu0 %v2522
    %4026 = vmatpush1.bf16.msra.mxu0 %v2521
    %4027 = vmatprep.subr.bf16.mxu0 %v2530
    %4028 = vmatpush1.bf16.msra.mxu0 %v2529
    %4029 = vmatprep.subr.bf16.mxu0 %v2538
    %4030 = vmatpush1.bf16.msra.mxu0 %v2537
    %4031 = vmatprep.subr.bf16.mxu0 %v2546
    %4032 = vmatpush1.bf16.msra.mxu0 %v2545
    %4033 = vmatprep.subr.bf16.mxu0 %v2554
    %4034 = vmatpush1.bf16.msra.mxu0 %v2553
    %4035 = vmatprep.subr.bf16.mxu0 %v2562
    %4036 = vmatpush1.bf16.msra.mxu0 %v2561
    %4037 = vmatprep.subr.bf16.mxu0 %v2570
    %4038 = vmatpush1.bf16.msra.mxu0 %v2569
    %4039 = vmatprep.subr.bf16.mxu0 %v2578
    %4040 = vmatpush1.bf16.msra.mxu0 %v2577
    %4041 = vmatprep.subr.bf16.mxu0 %v2586
    %4042 = vmatpush1.bf16.msra.mxu0 %v2585
    %4043 = vmatprep.subr.bf16.mxu0 %v2594
    %4044 = vmatpush1.bf16.msra.mxu0 %v2593
    %4045 = vmatprep.subr.bf16.mxu0 %v2602
    %4046 = vmatpush1.bf16.msra.mxu0 %v2601
    %4047 = vmatprep.subr.bf16.mxu0 %v2610
    %4048 = vmatpush1.bf16.msra.mxu0 %v2609
    %4049 = vmatprep.subr.bf16.mxu0 %v2618
    %4050 = vmatpush1.bf16.msra.mxu0 %v2617
    %4051 = vmatprep.subr.bf16.mxu0 %v2626
    %4052 = vmatpush1.bf16.msra.mxu0 %v2625
    %4053 = vmatprep.subr.bf16.mxu0 %v2634
    %4054 = vmatpush1.bf16.msra.mxu0 %v2633
    %4055 = vmatprep.mubr.bf16.mxu0 %v410
    %4056 = vmatmul.mubr.bf16.gmra.mrb[0].mxu0 %v409
    %v4057 = vpop.f32.mrb[0].mxu0
    %v4058 = vadd.f32 %v958, %v4057
    %v4059 = vpop.f32.mrb[0].mxu0
    %v4060 = vadd.f32 %v962, %v4059
    %v4061 = vpop.f32.mrb[0].mxu0
    %v4062 = vpop.f32.mrb[0].mxu0
    %4063 = vdwg.mxu0
    %4064 = vmatprep.subr.bf16.mxu0 %v2642
    %4065 = vmatpush1.bf16.msra.mxu0 %v2641
    %4066 = vmatprep.subr.bf16.mxu0 %v2650
    %4067 = vmatpush1.bf16.msra.mxu0 %v2649
    %4068 = vmatprep.subr.bf16.mxu0 %v2658
    %4069 = vmatpush1.bf16.msra.mxu0 %v2657
    %4070 = vmatprep.subr.bf16.mxu0 %v2666
    %4071 = vmatpush1.bf16.msra.mxu0 %v2665
    %4072 = vmatprep.subr.bf16.mxu0 %v2674
    %4073 = vmatpush1.bf16.msra.mxu0 %v2673
    %4074 = vmatprep.subr.bf16.mxu0 %v2682
    %4075 = vmatpush1.bf16.msra.mxu0 %v2681
    %4076 = vmatprep.subr.bf16.mxu0 %v2690
    %4077 = vmatpush1.bf16.msra.mxu0 %v2689
    %4078 = vmatprep.subr.bf16.mxu0 %v2698
    %4079 = vmatpush1.bf16.msra.mxu0 %v2697
    %4080 = vmatprep.subr.bf16.mxu0 %v2706
    %4081 = vmatpush1.bf16.msra.mxu0 %v2705
    %4082 = vmatprep.subr.bf16.mxu0 %v2714
    %4083 = vmatpush1.bf16.msra.mxu0 %v2713
    %4084 = vmatprep.subr.bf16.mxu0 %v2722
    %4085 = vmatpush1.bf16.msra.mxu0 %v2721
    %4086 = vmatprep.subr.bf16.mxu0 %v2730
    %4087 = vmatpush1.bf16.msra.mxu0 %v2729
    %4088 = vmatprep.subr.bf16.mxu0 %v2738
    %4089 = vmatpush1.bf16.msra.mxu0 %v2737
    %4090 = vmatprep.subr.bf16.mxu0 %v2746
    %4091 = vmatpush1.bf16.msra.mxu0 %v2745
    %4092 = vmatprep.subr.bf16.mxu0 %v2754
    %4093 = vmatpush1.bf16.msra.mxu0 %v2753
    %4094 = vmatprep.subr.bf16.mxu0 %v2762
    %4095 = vmatpush1.bf16.msra.mxu0 %v2761
    %4096 = vmatprep.mubr.bf16.mxu0 %v412
    %4097 = vmatmul.mubr.bf16.gmra.mrb[0].mxu0 %v411
    %v4098 = vpop.f32.mrb[0].mxu0
    %v4099 = vadd.f32 %v4058, %v4098
    %v4100 = vpop.f32.mrb[0].mxu0
    %v4101 = vadd.f32 %v4060, %v4100
    %v4102 = vpop.f32.mrb[0].mxu0
    %v4103 = vpop.f32.mrb[0].mxu0
    %4104 = vdwg.mxu0
    %4105 = vmatprep.subr.bf16.mxu0 %v2770
    %4106 = vmatpush1.bf16.msra.mxu0 %v2769
    %4107 = vmatprep.subr.bf16.mxu0 %v2778
    %4108 = vmatpush1.bf16.msra.mxu0 %v2777
    %4109 = vmatprep.subr.bf16.mxu0 %v2786
    %4110 = vmatpush1.bf16.msra.mxu0 %v2785
    %4111 = vmatprep.subr.bf16.mxu0 %v2794
    %4112 = vmatpush1.bf16.msra.mxu0 %v2793
    %4113 = vmatprep.subr.bf16.mxu0 %v2802
    %4114 = vmatpush1.bf16.msra.mxu0 %v2801
    %4115 = vmatprep.subr.bf16.mxu0 %v2810
    %4116 = vmatpush1.bf16.msra.mxu0 %v2809
    %4117 = vmatprep.subr.bf16.mxu0 %v2818
    %4118 = vmatpush1.bf16.msra.mxu0 %v2817
    %4119 = vmatprep.subr.bf16.mxu0 %v2826
    %4120 = vmatpush1.bf16.msra.mxu0 %v2825
    %4121 = vmatprep.subr.bf16.mxu0 %v2834
    %4122 = vmatpush1.bf16.msra.mxu0 %v2833
    %4123 = vmatprep.subr.bf16.mxu0 %v2842
    %4124 = vmatpush1.bf16.msra.mxu0 %v2841
    %4125 = vmatprep.subr.bf16.mxu0 %v2850
    %4126 = vmatpush1.bf16.msra.mxu0 %v2849
    %4127 = vmatprep.subr.bf16.mxu0 %v2858
    %4128 = vmatpush1.bf16.msra.mxu0 %v2857
    %4129 = vmatprep.subr.bf16.mxu0 %v2866
    %4130 = vmatpush1.bf16.msra.mxu0 %v2865
    %4131 = vmatprep.subr.bf16.mxu0 %v2874
    %4132 = vmatpush1.bf16.msra.mxu0 %v2873
    %4133 = vmatprep.subr.bf16.mxu0 %v2882
    %4134 = vmatpush1.bf16.msra.mxu0 %v2881
    %4135 = vmatprep.subr.bf16.mxu0 %v2890
    %4136 = vmatpush1.bf16.msra.mxu0 %v2889
    %4137 = vmatprep.mubr.bf16.mxu0 %v414
    %4138 = vmatmul.mubr.bf16.gmra.mrb[0].mxu0 %v413
    %v4139 = vpop.f32.mrb[0].mxu0
    %v4140 = vadd.f32 %v4099, %v4139
    %v4141 = vpop.f32.mrb[0].mxu0
    %v4142 = vadd.f32 %v4101, %v4141
    %v4143 = vpop.f32.mrb[0].mxu0
    %v4144 = vpop.f32.mrb[0].mxu0
    %4145 = vdwg.mxu0
    %4146 = vmatprep.subr.bf16.mxu0 %v2898
    %4147 = vmatpush1.bf16.msra.mxu0 %v2897
    %4148 = vmatprep.subr.bf16.mxu0 %v2906
    %4149 = vmatpush1.bf16.msra.mxu0 %v2905
    %4150 = vmatprep.subr.bf16.mxu0 %v2914
    %4151 = vmatpush1.bf16.msra.mxu0 %v2913
    %4152 = vmatprep.subr.bf16.mxu0 %v2922
    %4153 = vmatpush1.bf16.msra.mxu0 %v2921
    %4154 = vmatprep.subr.bf16.mxu0 %v2930
    %4155 = vmatpush1.bf16.msra.mxu0 %v2929
    %4156 = vmatprep.subr.bf16.mxu0 %v2938
    %4157 = vmatpush1.bf16.msra.mxu0 %v2937
    %4158 = vmatprep.subr.bf16.mxu0 %v2946
    %4159 = vmatpush1.bf16.msra.mxu0 %v2945
    %4160 = vmatprep.subr.bf16.mxu0 %v2954
    %4161 = vmatpush1.bf16.msra.mxu0 %v2953
    %4162 = vmatprep.subr.bf16.mxu0 %v2962
    %4163 = vmatpush1.bf16.msra.mxu0 %v2961
    %4164 = vmatprep.subr.bf16.mxu0 %v2970
    %4165 = vmatpush1.bf16.msra.mxu0 %v2969
    %4166 = vmatprep.subr.bf16.mxu0 %v2978
    %4167 = vmatpush1.bf16.msra.mxu0 %v2977
    %4168 = vmatprep.subr.bf16.mxu0 %v2986
    %4169 = vmatpush1.bf16.msra.mxu0 %v2985
    %4170 = vmatprep.subr.bf16.mxu0 %v2994
    %4171 = vmatpush1.bf16.msra.mxu0 %v2993
    %4172 = vmatprep.subr.bf16.mxu0 %v3002
    %4173 = vmatpush1.bf16.msra.mxu0 %v3001
    %4174 = vmatprep.subr.bf16.mxu0 %v3010
    %4175 = vmatpush1.bf16.msra.mxu0 %v3009
    %4176 = vmatprep.subr.bf16.mxu0 %v3018
    %4177 = vmatpush1.bf16.msra.mxu0 %v3017
    %4178 = vmatprep.mubr.bf16.mxu0 %v416
    %4179 = vmatmul.mubr.bf16.gmra.mrb[0].mxu0 %v415
    %v4180 = vpop.f32.mrb[0].mxu0
    %v4181 = vadd.f32 %v4140, %v4180
    %v4182 = vpop.f32.mrb[0].mxu0
    %v4183 = vadd.f32 %v4142, %v4182
    %v4184 = vpop.f32.mrb[0].mxu0
    %v4185 = vpop.f32.mrb[0].mxu0
    %4186 = vdwg.mxu0
    %v4187 = vmul.f32 %v3689, 0.01
    %v4188 = vmul.f32 %v3691, 0.01
    %v4189 = vmul.f32 %v3853, 0.01
    %v4190 = vmul.f32 %v3855, 0.01
    %v4191 = vmul.f32 %v4017, 0.01
    %v4192 = vmul.f32 %v4019, 0.01
    %v4193 = vmul.f32 %v4181, 0.01
    %v4194 = vmul.f32 %v4183, 0.01
    %v4195 = vmax.f32 %v3689, %v4187
    %v4196 = vmax.f32 %v3691, %v4188
    %v4197 = vmax.f32 %v3853, %v4189
    %v4198 = vmax.f32 %v3855, %v4190
    %v4199 = vmax.f32 %v4017, %v4191
    %v4200 = vmax.f32 %v4019, %v4192
    %v4201 = vmax.f32 %v4181, %v4193
    %v4202 = vmax.f32 %v4183, %v4194
    %v4203 = vpack.c.bf16 %v4195, %v4195
    %v4204 = vpack.c.bf16 %v4196, %v4196
    %v4205 = vpack.c.bf16 %v4197, %v4197
    %v4206 = vpack.c.bf16 %v4198, %v4198
    %v4207 = vpack.c.bf16 %v4199, %v4199
    %v4208 = vpack.c.bf16 %v4200, %v4200
    %v4209 = vpack.c.bf16 %v4201, %v4201
    %v4210 = vpack.c.bf16 %v4202, %v4202
    %v4211 = vld [vmem:[%s5] sm:$0xf]
    %v4212 = vld [vmem:[%s5 + $0x4] sm:$0xf]
    %v4213 = vld [vmem:[%s5 + $0x8] sm:$0xf]
    %v4214 = vld [vmem:[%s5 + $0xc] sm:$0xf]
    %v4215 = vld [vmem:[%s5 + $0x10] sm:$0xf]
    %v4216 = vld [vmem:[%s5 + $0x14] sm:$0xf]
    %v4217 = vld [vmem:[%s5 + $0x18] sm:$0xf]
    %v4218 = vld [vmem:[%s5 + $0x1c] sm:$0xf]
    %v4219 = vld [vmem:[%s5 + $0x20] sm:$0xf]
    %v4220 = vld [vmem:[%s5 + $0x24] sm:$0xf]
    %v4221 = vld [vmem:[%s5 + $0x28] sm:$0xf]
    %v4222 = vld [vmem:[%s5 + $0x2c] sm:$0xf]
    %v4223 = vld [vmem:[%s5 + $0x30] sm:$0xf]
    %v4224 = vld [vmem:[%s5 + $0x34] sm:$0xf]
    %v4225 = vld [vmem:[%s5 + $0x38] sm:$0xf]
    %v4226 = vld [vmem:[%s5 + $0x3c] sm:$0xf]
    %v4227 = vld [vmem:[%s5 + $0x40] sm:$0xf]
    %v4228 = vld [vmem:[%s5 + $0x44] sm:$0xf]
    %v4229 = vld [vmem:[%s5 + $0x48] sm:$0xf]
    %v4230 = vld [vmem:[%s5 + $0x4c] sm:$0xf]
    %v4231 = vld [vmem:[%s5 + $0x50] sm:$0xf]
    %v4232 = vld [vmem:[%s5 + $0x54] sm:$0xf]
    %v4233 = vld [vmem:[%s5 + $0x58] sm:$0xf]
    %v4234 = vld [vmem:[%s5 + $0x5c] sm:$0xf]
    %v4235 = vld [vmem:[%s5 + $0x60] sm:$0xf]
    %v4236 = vld [vmem:[%s5 + $0x64] sm:$0xf]
    %v4237 = vld [vmem:[%s5 + $0x68] sm:$0xf]
    %v4238 = vld [vmem:[%s5 + $0x6c] sm:$0xf]
    %v4239 = vld [vmem:[%s5 + $0x70] sm:$0xf]
    %v4240 = vld [vmem:[%s5 + $0x74] sm:$0xf]
    %v4241 = vld [vmem:[%s5 + $0x78] sm:$0xf]
    %v4242 = vld [vmem:[%s5 + $0x7c] sm:$0xf]
    %v4243 = vld [vmem:[%s5 + $0x80] sm:$0xf]
    %v4244 = vld [vmem:[%s5 + $0x84] sm:$0xf]
    %v4245 = vld [vmem:[%s5 + $0x88] sm:$0xf]
    %v4246 = vld [vmem:[%s5 + $0x8c] sm:$0xf]
    %v4247 = vld [vmem:[%s5 + $0x90] sm:$0xf]
    %v4248 = vld [vmem:[%s5 + $0x94] sm:$0xf]
    %v4249 = vld [vmem:[%s5 + $0x98] sm:$0xf]
    %v4250 = vld [vmem:[%s5 + $0x9c] sm:$0xf]
    %v4251 = vld [vmem:[%s5 + $0xa0] sm:$0xf]
    %v4252 = vld [vmem:[%s5 + $0xa4] sm:$0xf]
    %v4253 = vld [vmem:[%s5 + $0xa8] sm:$0xf]
    %v4254 = vld [vmem:[%s5 + $0xac] sm:$0xf]
    %v4255 = vld [vmem:[%s5 + $0xb0] sm:$0xf]
    %v4256 = vld [vmem:[%s5 + $0xb4] sm:$0xf]
    %v4257 = vld [vmem:[%s5 + $0xb8] sm:$0xf]
    %v4258 = vld [vmem:[%s5 + $0xbc] sm:$0xf]
    %v4259 = vld [vmem:[%s5 + $0xc0] sm:$0xf]
    %v4260 = vld [vmem:[%s5 + $0xc4] sm:$0xf]
    %v4261 = vld [vmem:[%s5 + $0xc8] sm:$0xf]
    %v4262 = vld [vmem:[%s5 + $0xcc] sm:$0xf]
    %v4263 = vld [vmem:[%s5 + $0xd0] sm:$0xf]
    %v4264 = vld [vmem:[%s5 + $0xd4] sm:$0xf]
    %v4265 = vld [vmem:[%s5 + $0xd8] sm:$0xf]
    %v4266 = vld [vmem:[%s5 + $0xdc] sm:$0xf]
    %v4267 = vld [vmem:[%s5 + $0xe0] sm:$0xf]
    %v4268 = vld [vmem:[%s5 + $0xe4] sm:$0xf]
    %v4269 = vld [vmem:[%s5 + $0xe8] sm:$0xf]
    %v4270 = vld [vmem:[%s5 + $0xec] sm:$0xf]
    %v4271 = vld [vmem:[%s5 + $0xf0] sm:$0xf]
    %v4272 = vld [vmem:[%s5 + $0xf4] sm:$0xf]
    %v4273 = vld [vmem:[%s5 + $0xf8] sm:$0xf]
    %v4274 = vld [vmem:[%s5 + $0xfc] sm:$0xf]
    %v4275 = vld [vmem:[%s5 + $0x100] sm:$0xf]
    %v4276 = vld [vmem:[%s5 + $0x104] sm:$0xf]
    %v4277 = vld [vmem:[%s5 + $0x108] sm:$0xf]
    %v4278 = vld [vmem:[%s5 + $0x10c] sm:$0xf]
    %v4279 = vld [vmem:[%s5 + $0x110] sm:$0xf]
    %v4280 = vld [vmem:[%s5 + $0x114] sm:$0xf]
    %v4281 = vld [vmem:[%s5 + $0x118] sm:$0xf]
    %v4282 = vld [vmem:[%s5 + $0x11c] sm:$0xf]
    %v4283 = vld [vmem:[%s5 + $0x120] sm:$0xf]
    %v4284 = vld [vmem:[%s5 + $0x124] sm:$0xf]
    %v4285 = vld [vmem:[%s5 + $0x128] sm:$0xf]
    %v4286 = vld [vmem:[%s5 + $0x12c] sm:$0xf]
    %v4287 = vld [vmem:[%s5 + $0x130] sm:$0xf]
    %v4288 = vld [vmem:[%s5 + $0x134] sm:$0xf]
    %v4289 = vld [vmem:[%s5 + $0x138] sm:$0xf]
    %v4290 = vld [vmem:[%s5 + $0x13c] sm:$0xf]
    %v4291 = vld [vmem:[%s5 + $0x140] sm:$0xf]
    %v4292 = vld [vmem:[%s5 + $0x144] sm:$0xf]
    %v4293 = vld [vmem:[%s5 + $0x148] sm:$0xf]
    %v4294 = vld [vmem:[%s5 + $0x14c] sm:$0xf]
    %v4295 = vld [vmem:[%s5 + $0x150] sm:$0xf]
    %v4296 = vld [vmem:[%s5 + $0x154] sm:$0xf]
    %v4297 = vld [vmem:[%s5 + $0x158] sm:$0xf]
    %v4298 = vld [vmem:[%s5 + $0x15c] sm:$0xf]
    %v4299 = vld [vmem:[%s5 + $0x160] sm:$0xf]
    %v4300 = vld [vmem:[%s5 + $0x164] sm:$0xf]
    %v4301 = vld [vmem:[%s5 + $0x168] sm:$0xf]
    %v4302 = vld [vmem:[%s5 + $0x16c] sm:$0xf]
    %v4303 = vld [vmem:[%s5 + $0x170] sm:$0xf]
    %v4304 = vld [vmem:[%s5 + $0x174] sm:$0xf]
    %v4305 = vld [vmem:[%s5 + $0x178] sm:$0xf]
    %v4306 = vld [vmem:[%s5 + $0x17c] sm:$0xf]
    %v4307 = vld [vmem:[%s5 + $0x180] sm:$0xf]
    %v4308 = vld [vmem:[%s5 + $0x184] sm:$0xf]
    %v4309 = vld [vmem:[%s5 + $0x188] sm:$0xf]
    %v4310 = vld [vmem:[%s5 + $0x18c] sm:$0xf]
    %v4311 = vld [vmem:[%s5 + $0x190] sm:$0xf]
    %v4312 = vld [vmem:[%s5 + $0x194] sm:$0xf]
    %v4313 = vld [vmem:[%s5 + $0x198] sm:$0xf]
    %v4314 = vld [vmem:[%s5 + $0x19c] sm:$0xf]
    %v4315 = vld [vmem:[%s5 + $0x1a0] sm:$0xf]
    %v4316 = vld [vmem:[%s5 + $0x1a4] sm:$0xf]
    %v4317 = vld [vmem:[%s5 + $0x1a8] sm:$0xf]
    %v4318 = vld [vmem:[%s5 + $0x1ac] sm:$0xf]
    %v4319 = vld [vmem:[%s5 + $0x1b0] sm:$0xf]
    %v4320 = vld [vmem:[%s5 + $0x1b4] sm:$0xf]
    %v4321 = vld [vmem:[%s5 + $0x1b8] sm:$0xf]
    %v4322 = vld [vmem:[%s5 + $0x1bc] sm:$0xf]
    %v4323 = vld [vmem:[%s5 + $0x1c0] sm:$0xf]
    %v4324 = vld [vmem:[%s5 + $0x1c4] sm:$0xf]
    %v4325 = vld [vmem:[%s5 + $0x1c8] sm:$0xf]
    %v4326 = vld [vmem:[%s5 + $0x1cc] sm:$0xf]
    %v4327 = vld [vmem:[%s5 + $0x1d0] sm:$0xf]
    %v4328 = vld [vmem:[%s5 + $0x1d4] sm:$0xf]
    %v4329 = vld [vmem:[%s5 + $0x1d8] sm:$0xf]
    %v4330 = vld [vmem:[%s5 + $0x1dc] sm:$0xf]
    %v4331 = vld [vmem:[%s5 + $0x1e0] sm:$0xf]
    %v4332 = vld [vmem:[%s5 + $0x1e4] sm:$0xf]
    %v4333 = vld [vmem:[%s5 + $0x1e8] sm:$0xf]
    %v4334 = vld [vmem:[%s5 + $0x1ec] sm:$0xf]
    %v4335 = vld [vmem:[%s5 + $0x1f0] sm:$0xf]
    %v4336 = vld [vmem:[%s5 + $0x1f4] sm:$0xf]
    %v4337 = vld [vmem:[%s5 + $0x1f8] sm:$0xf]
    %v4338 = vld [vmem:[%s5 + $0x1fc] sm:$0xf]
    %v4339 = vld [vmem:[#allocation9] sm:$0x1]
    %v4341 = vlaneseq
    %v4342 = vshrl.u32 %v4341, 7
    %v4343 = vsub.s32 0, %v4342
    %v4344 = vrot.slane %v4339, %v4343
    %v4474 = vunpack.c.l.b16 %v4211
    %v4475 = vunpack.c.l.b16 %v4212
    %v4476 = vunpack.c.l.b16 %v4213
    %v4477 = vunpack.c.l.b16 %v4214
    %v4478 = vunpack.c.l.b16 %v4215
    %v4479 = vunpack.c.l.b16 %v4216
    %v4480 = vunpack.c.l.b16 %v4217
    %v4481 = vunpack.c.l.b16 %v4218
    %v4482 = vunpack.c.l.b16 %v4219
    %v4483 = vunpack.c.l.b16 %v4220
    %v4484 = vunpack.c.l.b16 %v4221
    %v4485 = vunpack.c.l.b16 %v4222
    %v4486 = vunpack.c.l.b16 %v4223
    %v4487 = vunpack.c.l.b16 %v4224
    %v4488 = vunpack.c.l.b16 %v4225
    %v4489 = vunpack.c.l.b16 %v4226
    %v4490 = vunpack.c.l.b16 %v4227
    %v4491 = vunpack.c.l.b16 %v4228
    %v4492 = vunpack.c.l.b16 %v4229
    %v4493 = vunpack.c.l.b16 %v4230
    %v4494 = vunpack.c.l.b16 %v4231
    %v4495 = vunpack.c.l.b16 %v4232
    %v4496 = vunpack.c.l.b16 %v4233
    %v4497 = vunpack.c.l.b16 %v4234
    %v4498 = vunpack.c.l.b16 %v4235
    %v4499 = vunpack.c.l.b16 %v4236
    %v4500 = vunpack.c.l.b16 %v4237
    %v4501 = vunpack.c.l.b16 %v4238
    %v4502 = vunpack.c.l.b16 %v4239
    %v4503 = vunpack.c.l.b16 %v4240
    %v4504 = vunpack.c.l.b16 %v4241
    %v4505 = vunpack.c.l.b16 %v4242
    %v4506 = vunpack.c.l.b16 %v4243
    %v4507 = vunpack.c.l.b16 %v4244
    %v4508 = vunpack.c.l.b16 %v4245
    %v4509 = vunpack.c.l.b16 %v4246
    %v4510 = vunpack.c.l.b16 %v4247
    %v4511 = vunpack.c.l.b16 %v4248
    %v4512 = vunpack.c.l.b16 %v4249
    %v4513 = vunpack.c.l.b16 %v4250
    %v4514 = vunpack.c.l.b16 %v4251
    %v4515 = vunpack.c.l.b16 %v4252
    %v4516 = vunpack.c.l.b16 %v4253
    %v4517 = vunpack.c.l.b16 %v4254
    %v4518 = vunpack.c.l.b16 %v4255
    %v4519 = vunpack.c.l.b16 %v4256
    %v4520 = vunpack.c.l.b16 %v4257
    %v4521 = vunpack.c.l.b16 %v4258
    %v4522 = vunpack.c.l.b16 %v4259
    %v4523 = vunpack.c.l.b16 %v4260
    %v4524 = vunpack.c.l.b16 %v4261
    %v4525 = vunpack.c.l.b16 %v4262
    %v4526 = vunpack.c.l.b16 %v4263
    %v4527 = vunpack.c.l.b16 %v4264
    %v4528 = vunpack.c.l.b16 %v4265
    %v4529 = vunpack.c.l.b16 %v4266
    %v4530 = vunpack.c.l.b16 %v4267
    %v4531 = vunpack.c.l.b16 %v4268
    %v4532 = vunpack.c.l.b16 %v4269
    %v4533 = vunpack.c.l.b16 %v4270
    %v4534 = vunpack.c.l.b16 %v4271
    %v4535 = vunpack.c.l.b16 %v4272
    %v4536 = vunpack.c.l.b16 %v4273
    %v4537 = vunpack.c.l.b16 %v4274
    %v4538 = vunpack.c.l.b16 %v4275
    %v4539 = vunpack.c.l.b16 %v4276
    %v4540 = vunpack.c.l.b16 %v4277
    %v4541 = vunpack.c.l.b16 %v4278
    %v4542 = vunpack.c.l.b16 %v4279
    %v4543 = vunpack.c.l.b16 %v4280
    %v4544 = vunpack.c.l.b16 %v4281
    %v4545 = vunpack.c.l.b16 %v4282
    %v4546 = vunpack.c.l.b16 %v4283
    %v4547 = vunpack.c.l.b16 %v4284
    %v4548 = vunpack.c.l.b16 %v4285
    %v4549 = vunpack.c.l.b16 %v4286
    %v4550 = vunpack.c.l.b16 %v4287
    %v4551 = vunpack.c.l.b16 %v4288
    %v4552 = vunpack.c.l.b16 %v4289
    %v4553 = vunpack.c.l.b16 %v4290
    %v4554 = vunpack.c.l.b16 %v4291
    %v4555 = vunpack.c.l.b16 %v4292
    %v4556 = vunpack.c.l.b16 %v4293
    %v4557 = vunpack.c.l.b16 %v4294
    %v4558 = vunpack.c.l.b16 %v4295
    %v4559 = vunpack.c.l.b16 %v4296
    %v4560 = vunpack.c.l.b16 %v4297
    %v4561 = vunpack.c.l.b16 %v4298
    %v4562 = vunpack.c.l.b16 %v4299
    %v4563 = vunpack.c.l.b16 %v4300
    %v4564 = vunpack.c.l.b16 %v4301
    %v4565 = vunpack.c.l.b16 %v4302
    %v4566 = vunpack.c.l.b16 %v4303
    %v4567 = vunpack.c.l.b16 %v4304
    %v4568 = vunpack.c.l.b16 %v4305
    %v4569 = vunpack.c.l.b16 %v4306
    %v4570 = vunpack.c.l.b16 %v4307
    %v4571 = vunpack.c.l.b16 %v4308
    %v4572 = vunpack.c.l.b16 %v4309
    %v4573 = vunpack.c.l.b16 %v4310
    %v4574 = vunpack.c.l.b16 %v4311
    %v4575 = vunpack.c.l.b16 %v4312
    %v4576 = vunpack.c.l.b16 %v4313
    %v4577 = vunpack.c.l.b16 %v4314
    %v4578 = vunpack.c.l.b16 %v4315
    %v4579 = vunpack.c.l.b16 %v4316
    %v4580 = vunpack.c.l.b16 %v4317
    %v4581 = vunpack.c.l.b16 %v4318
    %v4582 = vunpack.c.l.b16 %v4319
    %v4583 = vunpack.c.l.b16 %v4320
    %v4584 = vunpack.c.l.b16 %v4321
    %v4585 = vunpack.c.l.b16 %v4322
    %v4586 = vunpack.c.l.b16 %v4323
    %v4587 = vunpack.c.l.b16 %v4324
    %v4588 = vunpack.c.l.b16 %v4325
    %v4589 = vunpack.c.l.b16 %v4326
    %v4590 = vunpack.c.l.b16 %v4327
    %v4591 = vunpack.c.l.b16 %v4328
    %v4592 = vunpack.c.l.b16 %v4329
    %v4593 = vunpack.c.l.b16 %v4330
    %v4594 = vunpack.c.l.b16 %v4331
    %v4595 = vunpack.c.l.b16 %v4332
    %v4596 = vunpack.c.l.b16 %v4333
    %v4597 = vunpack.c.l.b16 %v4334
    %v4598 = vunpack.c.l.b16 %v4335
    %v4599 = vunpack.c.l.b16 %v4336
    %v4600 = vunpack.c.l.b16 %v4337
    %v4601 = vunpack.c.l.b16 %v4338
    %v4602 = vpack.c.b16 %v4475, %v4474
    %v4603 = vpack.c.b16 %v4477, %v4476
    %v4604 = vpack.c.b16 %v4479, %v4478
    %v4605 = vpack.c.b16 %v4481, %v4480
    %v4606 = vpack.c.b16 %v4483, %v4482
    %v4607 = vpack.c.b16 %v4485, %v4484
    %v4608 = vpack.c.b16 %v4487, %v4486
    %v4609 = vpack.c.b16 %v4489, %v4488
    %v4610 = vpack.c.b16 %v4491, %v4490
    %v4611 = vpack.c.b16 %v4493, %v4492
    %v4612 = vpack.c.b16 %v4495, %v4494
    %v4613 = vpack.c.b16 %v4497, %v4496
    %v4614 = vpack.c.b16 %v4499, %v4498
    %v4615 = vpack.c.b16 %v4501, %v4500
    %v4616 = vpack.c.b16 %v4503, %v4502
    %v4617 = vpack.c.b16 %v4505, %v4504
    %v4618 = vpack.c.b16 %v4507, %v4506
    %v4619 = vpack.c.b16 %v4509, %v4508
    %v4620 = vpack.c.b16 %v4511, %v4510
    %v4621 = vpack.c.b16 %v4513, %v4512
    %v4622 = vpack.c.b16 %v4515, %v4514
    %v4623 = vpack.c.b16 %v4517, %v4516
    %v4624 = vpack.c.b16 %v4519, %v4518
    %v4625 = vpack.c.b16 %v4521, %v4520
    %v4626 = vpack.c.b16 %v4523, %v4522
    %v4627 = vpack.c.b16 %v4525, %v4524
    %v4628 = vpack.c.b16 %v4527, %v4526
    %v4629 = vpack.c.b16 %v4529, %v4528
    %v4630 = vpack.c.b16 %v4531, %v4530
    %v4631 = vpack.c.b16 %v4533, %v4532
    %v4632 = vpack.c.b16 %v4535, %v4534
    %v4633 = vpack.c.b16 %v4537, %v4536
    %v4634 = vpack.c.b16 %v4539, %v4538
    %v4635 = vpack.c.b16 %v4541, %v4540
    %v4636 = vpack.c.b16 %v4543, %v4542
    %v4637 = vpack.c.b16 %v4545, %v4544
    %v4638 = vpack.c.b16 %v4547, %v4546
    %v4639 = vpack.c.b16 %v4549, %v4548
    %v4640 = vpack.c.b16 %v4551, %v4550
    %v4641 = vpack.c.b16 %v4553, %v4552
    %v4642 = vpack.c.b16 %v4555, %v4554
    %v4643 = vpack.c.b16 %v4557, %v4556
    %v4644 = vpack.c.b16 %v4559, %v4558
    %v4645 = vpack.c.b16 %v4561, %v4560
    %v4646 = vpack.c.b16 %v4563, %v4562
    %v4647 = vpack.c.b16 %v4565, %v4564
    %v4648 = vpack.c.b16 %v4567, %v4566
    %v4649 = vpack.c.b16 %v4569, %v4568
    %v4650 = vpack.c.b16 %v4571, %v4570
    %v4651 = vpack.c.b16 %v4573, %v4572
    %v4652 = vpack.c.b16 %v4575, %v4574
    %v4653 = vpack.c.b16 %v4577, %v4576
    %v4654 = vpack.c.b16 %v4579, %v4578
    %v4655 = vpack.c.b16 %v4581, %v4580
    %v4656 = vpack.c.b16 %v4583, %v4582
    %v4657 = vpack.c.b16 %v4585, %v4584
    %v4658 = vpack.c.b16 %v4587, %v4586
    %v4659 = vpack.c.b16 %v4589, %v4588
    %v4660 = vpack.c.b16 %v4591, %v4590
    %v4661 = vpack.c.b16 %v4593, %v4592
    %v4662 = vpack.c.b16 %v4595, %v4594
    %v4663 = vpack.c.b16 %v4597, %v4596
    %v4664 = vpack.c.b16 %v4599, %v4598
    %v4665 = vpack.c.b16 %v4601, %v4600
    %4730 = vmatprep.subr.bf16.mxu0 0
    %4731 = vmatpush1.bf16.msra.mxu0 %v4602
    %4732 = vmatprep.subr.bf16.mxu0 0
    %4733 = vmatpush1.bf16.msra.mxu0 %v4603
    %4734 = vmatprep.subr.bf16.mxu0 0
    %4735 = vmatpush1.bf16.msra.mxu0 %v4604
    %4736 = vmatprep.subr.bf16.mxu0 0
    %4737 = vmatpush1.bf16.msra.mxu0 %v4605
    %4738 = vmatprep.subr.bf16.mxu0 0
    %4739 = vmatpush1.bf16.msra.mxu0 %v4606
    %4740 = vmatprep.subr.bf16.mxu0 0
    %4741 = vmatpush1.bf16.msra.mxu0 %v4607
    %4742 = vmatprep.subr.bf16.mxu0 0
    %4743 = vmatpush1.bf16.msra.mxu0 %v4608
    %4744 = vmatprep.subr.bf16.mxu0 0
    %4745 = vmatpush1.bf16.msra.mxu0 %v4609
    %4746 = vmatprep.subr.bf16.mxu0 0
    %4747 = vmatpush1.bf16.msra.mxu0 %v4610
    %4748 = vmatprep.subr.bf16.mxu0 0
    %4749 = vmatpush1.bf16.msra.mxu0 %v4611
    %4750 = vmatprep.subr.bf16.mxu0 0
    %4751 = vmatpush1.bf16.msra.mxu0 %v4612
    %4752 = vmatprep.subr.bf16.mxu0 0
    %4753 = vmatpush1.bf16.msra.mxu0 %v4613
    %4754 = vmatprep.subr.bf16.mxu0 0
    %4755 = vmatpush1.bf16.msra.mxu0 %v4614
    %4756 = vmatprep.subr.bf16.mxu0 0
    %4757 = vmatpush1.bf16.msra.mxu0 %v4615
    %4758 = vmatprep.subr.bf16.mxu0 0
    %4759 = vmatpush1.bf16.msra.mxu0 %v4616
    %4760 = vmatprep.subr.bf16.mxu0 0
    %4761 = vmatpush1.bf16.msra.mxu0 %v4617
    %4762 = vmatprep.mubr.bf16.mxu0 %v4204
    %4763 = vmatmul.mubr.bf16.gmra.mrb[0].mxu0 %v4203
    %v4764 = vpop.f32.mrb[0].mxu0
    %v4765 = vadd.f32 %v4344, %v4764
    %v4766 = vpop.f32.mrb[0].mxu0
    %v4767 = vpop.f32.mrb[0].mxu0
    %v4768 = vpop.f32.mrb[0].mxu0
    %4769 = vdwg.mxu0
    %4770 = vmatprep.subr.bf16.mxu0 0
    %4771 = vmatpush1.bf16.msra.mxu0 %v4618
    %4772 = vmatprep.subr.bf16.mxu0 0
    %4773 = vmatpush1.bf16.msra.mxu0 %v4619
    %4774 = vmatprep.subr.bf16.mxu0 0
    %4775 = vmatpush1.bf16.msra.mxu0 %v4620
    %4776 = vmatprep.subr.bf16.mxu0 0
    %4777 = vmatpush1.bf16.msra.mxu0 %v4621
    %4778 = vmatprep.subr.bf16.mxu0 0
    %4779 = vmatpush1.bf16.msra.mxu0 %v4622
    %4780 = vmatprep.subr.bf16.mxu0 0
    %4781 = vmatpush1.bf16.msra.mxu0 %v4623
    %4782 = vmatprep.subr.bf16.mxu0 0
    %4783 = vmatpush1.bf16.msra.mxu0 %v4624
    %4784 = vmatprep.subr.bf16.mxu0 0
    %4785 = vmatpush1.bf16.msra.mxu0 %v4625
    %4786 = vmatprep.subr.bf16.mxu0 0
    %4787 = vmatpush1.bf16.msra.mxu0 %v4626
    %4788 = vmatprep.subr.bf16.mxu0 0
    %4789 = vmatpush1.bf16.msra.mxu0 %v4627
    %4790 = vmatprep.subr.bf16.mxu0 0
    %4791 = vmatpush1.bf16.msra.mxu0 %v4628
    %4792 = vmatprep.subr.bf16.mxu0 0
    %4793 = vmatpush1.bf16.msra.mxu0 %v4629
    %4794 = vmatprep.subr.bf16.mxu0 0
    %4795 = vmatpush1.bf16.msra.mxu0 %v4630
    %4796 = vmatprep.subr.bf16.mxu0 0
    %4797 = vmatpush1.bf16.msra.mxu0 %v4631
    %4798 = vmatprep.subr.bf16.mxu0 0
    %4799 = vmatpush1.bf16.msra.mxu0 %v4632
    %4800 = vmatprep.subr.bf16.mxu0 0
    %4801 = vmatpush1.bf16.msra.mxu0 %v4633
    %4802 = vmatprep.mubr.bf16.mxu0 %v4206
    %4803 = vmatmul.mubr.bf16.gmra.mrb[0].mxu0 %v4205
    %v4804 = vpop.f32.mrb[0].mxu0
    %v4805 = vadd.f32 %v4765, %v4804
    %v4806 = vpop.f32.mrb[0].mxu0
    %v4807 = vpop.f32.mrb[0].mxu0
    %v4808 = vpop.f32.mrb[0].mxu0
    %4809 = vdwg.mxu0
    %4810 = vmatprep.subr.bf16.mxu0 0
    %4811 = vmatpush1.bf16.msra.mxu0 %v4634
    %4812 = vmatprep.subr.bf16.mxu0 0
    %4813 = vmatpush1.bf16.msra.mxu0 %v4635
    %4814 = vmatprep.subr.bf16.mxu0 0
    %4815 = vmatpush1.bf16.msra.mxu0 %v4636
    %4816 = vmatprep.subr.bf16.mxu0 0
    %4817 = vmatpush1.bf16.msra.mxu0 %v4637
    %4818 = vmatprep.subr.bf16.mxu0 0
    %4819 = vmatpush1.bf16.msra.mxu0 %v4638
    %4820 = vmatprep.subr.bf16.mxu0 0
    %4821 = vmatpush1.bf16.msra.mxu0 %v4639
    %4822 = vmatprep.subr.bf16.mxu0 0
    %4823 = vmatpush1.bf16.msra.mxu0 %v4640
    %4824 = vmatprep.subr.bf16.mxu0 0
    %4825 = vmatpush1.bf16.msra.mxu0 %v4641
    %4826 = vmatprep.subr.bf16.mxu0 0
    %4827 = vmatpush1.bf16.msra.mxu0 %v4642
    %4828 = vmatprep.subr.bf16.mxu0 0
    %4829 = vmatpush1.bf16.msra.mxu0 %v4643
    %4830 = vmatprep.subr.bf16.mxu0 0
    %4831 = vmatpush1.bf16.msra.mxu0 %v4644
    %4832 = vmatprep.subr.bf16.mxu0 0
    %4833 = vmatpush1.bf16.msra.mxu0 %v4645
    %4834 = vmatprep.subr.bf16.mxu0 0
    %4835 = vmatpush1.bf16.msra.mxu0 %v4646
    %4836 = vmatprep.subr.bf16.mxu0 0
    %4837 = vmatpush1.bf16.msra.mxu0 %v4647
    %4838 = vmatprep.subr.bf16.mxu0 0
    %4839 = vmatpush1.bf16.msra.mxu0 %v4648
    %4840 = vmatprep.subr.bf16.mxu0 0
    %4841 = vmatpush1.bf16.msra.mxu0 %v4649
    %4842 = vmatprep.mubr.bf16.mxu0 %v4208
    %4843 = vmatmul.mubr.bf16.gmra.mrb[0].mxu0 %v4207
    %v4844 = vpop.f32.mrb[0].mxu0
    %v4845 = vadd.f32 %v4805, %v4844
    %v4846 = vpop.f32.mrb[0].mxu0
    %v4847 = vpop.f32.mrb[0].mxu0
    %v4848 = vpop.f32.mrb[0].mxu0
    %4849 = vdwg.mxu0
    %4850 = vmatprep.subr.bf16.mxu0 0
    %4851 = vmatpush1.bf16.msra.mxu0 %v4650
    %4852 = vmatprep.subr.bf16.mxu0 0
    %4853 = vmatpush1.bf16.msra.mxu0 %v4651
    %4854 = vmatprep.subr.bf16.mxu0 0
    %4855 = vmatpush1.bf16.msra.mxu0 %v4652
    %4856 = vmatprep.subr.bf16.mxu0 0
    %4857 = vmatpush1.bf16.msra.mxu0 %v4653
    %4858 = vmatprep.subr.bf16.mxu0 0
    %4859 = vmatpush1.bf16.msra.mxu0 %v4654
    %4860 = vmatprep.subr.bf16.mxu0 0
    %4861 = vmatpush1.bf16.msra.mxu0 %v4655
    %4862 = vmatprep.subr.bf16.mxu0 0
    %4863 = vmatpush1.bf16.msra.mxu0 %v4656
    %4864 = vmatprep.subr.bf16.mxu0 0
    %4865 = vmatpush1.bf16.msra.mxu0 %v4657
    %4866 = vmatprep.subr.bf16.mxu0 0
    %4867 = vmatpush1.bf16.msra.mxu0 %v4658
    %4868 = vmatprep.subr.bf16.mxu0 0
    %4869 = vmatpush1.bf16.msra.mxu0 %v4659
    %4870 = vmatprep.subr.bf16.mxu0 0
    %4871 = vmatpush1.bf16.msra.mxu0 %v4660
    %4872 = vmatprep.subr.bf16.mxu0 0
    %4873 = vmatpush1.bf16.msra.mxu0 %v4661
    %4874 = vmatprep.subr.bf16.mxu0 0
    %4875 = vmatpush1.bf16.msra.mxu0 %v4662
    %4876 = vmatprep.subr.bf16.mxu0 0
    %4877 = vmatpush1.bf16.msra.mxu0 %v4663
    %4878 = vmatprep.subr.bf16.mxu0 0
    %4879 = vmatpush1.bf16.msra.mxu0 %v4664
    %4880 = vmatprep.subr.bf16.mxu0 0
    %4881 = vmatpush1.bf16.msra.mxu0 %v4665
    %4882 = vmatprep.mubr.bf16.mxu0 %v4210
    %4883 = vmatmul.mubr.bf16.gmra.mrb[0].mxu0 %v4209
    %v4884 = vpop.f32.mrb[0].mxu0
    %v4885 = vadd.f32 %v4845, %v4884
    %v4886 = vpop.f32.mrb[0].mxu0
    %v4887 = vpop.f32.mrb[0].mxu0
    %v4888 = vpop.f32.mrb[0].mxu0
    %4889 = vdwg.mxu0
    %vm4890 = vcmask 15360
    %4891 = vst.msk [vmem:[%s7] sm:$0xff] %vm4890, %v4885
    // Predicated region
    $region50: #{tpu_custom_call.1} parent=1 // pred_check
      _
    $region51: #{tpu_custom_call.1} parent=1 // pred_check_branch
      %4893 = sbr.rel (0) target = $region53
    $region52: #{tpu_custom_call.1} parent=1 // pred_region
      _
    $region53: #{tpu_custom_call.1} parent=1 // pred_fallthru
      _
    // Predicated region
    $region54: #{tpu_custom_call.1} parent=1 // pred_check
      _
    $region55: #{tpu_custom_call.1} parent=1 // pred_check_branch
      %4895 = sbr.rel (0) target = $region57
    $region56: #{tpu_custom_call.1} parent=1 // pred_region
      _
    $region57: #{tpu_custom_call.1} parent=1 // pred_fallthru
      _
    %4896 = vsyncpa [#allocation3], 1
    %4897 = vsyncpa [#allocation5], 1
    %4898 = vsyncpa [#allocation8], 1

</llo_original>
